<compile_context>
chip_gen: v7x
topology: tpu7x:2x2x1
jax: 0.10.0
libtpu: 0.0.40
codegen_flags: <defaults>
</compile_context>

<pallas_src>
import math

import jax
import jax.numpy as jnp
from jax import lax
from jax.experimental import pallas as pl
from jax.experimental.pallas import tpu as pltpu

# --------------------------------------------------------------------------
# Model hyper-parameters (small, consistent with the module's forward).
# --------------------------------------------------------------------------
IMAGE_SIZE = 16
PATCH_SIZE = 4
VIT_OUT_CHANNEL = 8
DIM = 32
VIT_HEAD = 4
VIT_FF = 64
VIT_BLOCKS = 2

NUM_PATCHES = (IMAGE_SIZE // PATCH_SIZE) ** 2       # 16
SEQ_LEN = NUM_PATCHES + 1                           # 17 (cls token appended at end)
SEQ_PAD = 24                                        # 17 padded to a multiple of 8
HEAD_DIM = DIM // VIT_HEAD                          # 8
K_DIM = 3 * PATCH_SIZE * PATCH_SIZE                 # 48 (flattened patch features)
LN_EPS = 1e-5
NEG_INF = -1e30
MAX_B_TILE = 8                                      # sequences per grid step (cap)


def _layer_norm(x, g, b):
    mu = jnp.mean(x, axis=-1, keepdims=True)
    var = jnp.mean((x - mu) ** 2, axis=-1, keepdims=True)
    return (x - mu) * lax.rsqrt(var + LN_EPS) * g + b


# --------------------------------------------------------------------------
# Fused kernel: one grid step == B_TILE batch elements, everything in VMEM.
# --------------------------------------------------------------------------
def vit_fused_kernel(
    patches_ref,                      # (M, K_DIM)      f32, M = B_TILE*SEQ_PAD
    pe_w_ref,                         # (K_DIM, DIM)    bf16, folded conv+linear
    tok_bias_ref,                     # (M, DIM)        f32, pe_b + pos + cls folded
    mask_ref,                         # (M, M)          f32, block-diag + key padding
    wqkv_ref,                         # (L, DIM, 3*DIM) bf16, 1/sqrt(Dh) folded in Wq
    wo_ref,                           # (L, DIM, DIM)   bf16
    w1_ref,                           # (L, DIM, FF)    bf16
    w2_ref,                           # (L, FF, DIM)    bf16
    vec_ref,                          # (L, 8, 128)     f32, packed biases/LN params
    out_ref,                          # (M, DIM)        f32
):
    # ---- patch embedding: one bf16 matmul; bias + cls + pos folded in tok_bias --
    x = (
        jnp.dot(
            patches_ref[...].astype(jnp.bfloat16),
            pe_w_ref[...],
            preferred_element_type=jnp.float32,
        )
        + tok_bias_ref[...]
    )                                                        # (M, DIM) f32

    mask = mask_ref[...]                                     # additive attention bias

    for l in range(VIT_BLOCKS):                              # static unroll (2 layers)
        vecs = vec_ref[l]                                    # (8, 128) f32
        bqkv = vecs[0:1, 0:3 * DIM]
        bo = vecs[1:2, 0:DIM]
        ln1g = vecs[2:3, 0:DIM]
        ln1b = vecs[3:4, 0:DIM]
        b1 = vecs[4:5, 0:VIT_FF]
        b2 = vecs[5:6, 0:DIM]
        ln2g = vecs[6:7, 0:DIM]
        ln2b = vecs[7:8, 0:DIM]

        # ---- fused QKV projection: (M,32)@(32,96) ----
        qkv = (
            jnp.dot(x.astype(jnp.bfloat16), wqkv_ref[l],
                    preferred_element_type=jnp.float32)
            + bqkv
        )                                                    # (M, 96) f32
        qkv16 = qkv.astype(jnp.bfloat16)

        # ---- multi-head attention (static 8-lane slices per head) ----
        heads = []
        for h in range(VIT_HEAD):                            # static unroll (4 heads)
            q = qkv16[:, h * HEAD_DIM:(h + 1) * HEAD_DIM]
            k = qkv16[:, DIM + h * HEAD_DIM: DIM + (h + 1) * HEAD_DIM]
            v = qkv16[:, 2 * DIM + h * HEAD_DIM: 2 * DIM + (h + 1) * HEAD_DIM]
            # q @ k^T as an NT dot_general (no materialized transpose); scale is
            # already folded into Wq/bq.
            s = lax.dot_general(
                q, k, (((1,), (1,)), ((), ())), preferred_element_type=jnp.float32
            )                                                # (M, M)
            s = s + mask                                     # block-diag + key padding
            s = s - jnp.max(s, axis=-1, keepdims=True)
            e = jnp.exp(s)
            p = e * pl.reciprocal(jnp.sum(e, axis=-1, keepdims=True), approx=True)
            heads.append(
                jnp.dot(p.astype(jnp.bfloat16), v,
                        preferred_element_type=jnp.float32)  # (M, HEAD_DIM)
            )
        o = jnp.concatenate(heads, axis=-1)                  # (M, DIM)

        # ---- single fused output projection: (M,32)@(32,32) ----
        attn = (
            jnp.dot(o.astype(jnp.bfloat16), wo_ref[l],
                    preferred_element_type=jnp.float32)
            + bo
        )

        # ---- residual + LayerNorm 1 (post-norm) ----
        y = _layer_norm(x + attn, ln1g, ln1b)

        # ---- feed-forward (ReLU) ----
        hdn = jnp.maximum(
            jnp.dot(y.astype(jnp.bfloat16), w1_ref[l],
                    preferred_element_type=jnp.float32) + b1,
            0.0,
        )
        ff = (
            jnp.dot(hdn.astype(jnp.bfloat16), w2_ref[l],
                    preferred_element_type=jnp.float32)
            + b2
        )

        # ---- residual + LayerNorm 2 ----
        x = _layer_norm(y + ff, ln2g, ln2b)

    out_ref[...] = x                                         # single full-slab store


# --------------------------------------------------------------------------
# Host-side weight prep: fold conv+linear+scale, pack slabs, cast to bf16.
# --------------------------------------------------------------------------
def _prepare_weights(params, b_tile):
    scale = 1.0 / math.sqrt(HEAD_DIM)

    # Folded patch embedding (conv + patch_linear).
    pe_w = params["conv_w"] @ params["pl_w"]                       # (K_DIM, DIM)
    pe_b = params["conv_b"] @ params["pl_w"] + params["pl_b"]      # (1, DIM)

    # Token bias slab: rows 0..15 = pe_b + pos[row]; row 16 = cls + pos[16]
    # (the zero-patch row gives a zero matmul, so this installs the cls token
    # without a select); rows 17..23 = 0.
    tok = jnp.zeros((SEQ_PAD, DIM), jnp.float32)
    tok = tok.at[:NUM_PATCHES].set(pe_b + params["pos"][0, :NUM_PATCHES])
    tok = tok.at[NUM_PATCHES].set(params["cls"][0, 0] + params["pos"][0, NUM_PATCHES])
    tok_bias = jnp.tile(tok, (b_tile, 1))                          # (M, DIM)

    # Block-diagonal additive attention mask (also masks padded key positions).
    m_rows = b_tile * SEQ_PAD
    r = jnp.arange(m_rows)
    same_seq = (r[:, None] // SEQ_PAD) == (r[None, :] // SEQ_PAD)
    key_valid = (r[None, :] % SEQ_PAD) < SEQ_LEN
    mask = jnp.where(same_seq & key_valid, 0.0, NEG_INF).astype(jnp.float32)

    def stack(name):
        return jnp.stack([layer[name] for layer in params["layers"]])

    # Fused QKV with the attention scale folded into the q columns.
    wqkv = jnp.concatenate(
        [stack("wq") * scale, stack("wk"), stack("wv")], axis=-1)  # (L, DIM, 3*DIM)
    bqkv = jnp.concatenate(
        [stack("bq") * scale, stack("bk"), stack("bv")], axis=-1)  # (L, 1, 3*DIM)

    wo = stack("wo")                                               # (L, DIM, DIM)
    w1 = stack("w1")                                               # (L, DIM, FF)
    w2 = stack("w2")                                               # (L, FF, DIM)

    # Pack all per-layer vectors (biases + LN params) into one (L, 8, 128) slab.
    vec = jnp.zeros((VIT_BLOCKS, 8, 128), jnp.float32)
    vec = vec.at[:, 0, :3 * DIM].set(bqkv[:, 0, :])
    vec = vec.at[:, 1, :DIM].set(stack("bo")[:, 0, :])
    vec = vec.at[:, 2, :DIM].set(stack("ln1_g")[:, 0, :])
    vec = vec.at[:, 3, :DIM].set(stack("ln1_b")[:, 0, :])
    vec = vec.at[:, 4, :VIT_FF].set(stack("b1")[:, 0, :])
    vec = vec.at[:, 5, :DIM].set(stack("b2")[:, 0, :])
    vec = vec.at[:, 6, :DIM].set(stack("ln2_g")[:, 0, :])
    vec = vec.at[:, 7, :DIM].set(stack("ln2_b")[:, 0, :])

    bf = jnp.bfloat16
    return (
        pe_w.astype(bf), tok_bias, mask,
        wqkv.astype(bf), wo.astype(bf), w1.astype(bf), w2.astype(bf), vec,
    )


def _replicated_spec(arr):
    if arr.ndim == 2:
        return pl.BlockSpec(arr.shape, lambda g: (0, 0))
    return pl.BlockSpec(arr.shape, lambda g: (0, 0, 0))


# --------------------------------------------------------------------------
# Forward pass: one fused pallas_call; only layout glue stays in plain JAX.
# --------------------------------------------------------------------------
def vision_transformer(images, params, b_tile=MAX_B_TILE):
    B = images.shape[0]
    P = PATCH_SIZE
    hp = IMAGE_SIZE // P

    b_tile = max(1, min(b_tile, B))
    grid_b = -(-B // b_tile)                      # ceil(B / b_tile)
    b_pad = grid_b * b_tile
    m_tile = b_tile * SEQ_PAD

    # Patch extraction (layout glue): NCHW -> (B, NP, C_in*P*P), channel-major per
    # patch, matching Conv2d(kernel=stride=P) weight flattening.
    patches = images.reshape(B, 3, hp, P, hp, P)
    patches = jnp.transpose(patches, (0, 2, 4, 1, 3, 5)).reshape(B, NUM_PATCHES, K_DIM)

    # Pad each sequence to SEQ_PAD rows, pad batch to a multiple of b_tile, flatten
    # so B_TILE sequences stack along the sublane axis.
    patches_pad = jnp.zeros((b_pad, SEQ_PAD, K_DIM), jnp.float32)
    patches_pad = patches_pad.at[:B, :NUM_PATCHES].set(patches)
    patches_flat = patches_pad.reshape(b_pad * SEQ_PAD, K_DIM)

    weights = _prepare_weights(params, b_tile)

    in_specs = [pl.BlockSpec((m_tile, K_DIM), lambda g: (g, 0))]
    in_specs += [_replicated_spec(w) for w in weights]

    out = pl.pallas_call(
        vit_fused_kernel,
        grid=(grid_b,),
        in_specs=in_specs,
        out_specs=pl.BlockSpec((m_tile, DIM), lambda g: (g, 0)),
        out_shape=jax.ShapeDtypeStruct((b_pad * SEQ_PAD, DIM), jnp.float32),
        compiler_params=pltpu.CompilerParams(
            dimension_semantics=("parallel",),    # grid steps are independent
        ),
    )(patches_flat, *weights)

    out = out.reshape(b_pad, SEQ_PAD, DIM)
    return out[:B, :SEQ_LEN, :]                   # drop padded rows / padded batch


# --------------------------------------------------------------------------
# Parameter init (deterministic, synthetic) — natural (unfolded) shapes.
# --------------------------------------------------------------------------
def init_params(key):
    keys = jax.random.split(key, 8 + VIT_BLOCKS)
    p = {}
    s = 0.05

    p["conv_w"] = s * jax.random.normal(keys[0], (K_DIM, VIT_OUT_CHANNEL), jnp.float32)
    p["conv_b"] = s * jax.random.normal(keys[1], (1, VIT_OUT_CHANNEL), jnp.float32)
    p["pl_w"] = s * jax.random.normal(keys[2], (VIT_OUT_CHANNEL, DIM), jnp.float32)
    p["pl_b"] = s * jax.random.normal(keys[3], (1, DIM), jnp.float32)
    p["cls"] = jax.random.normal(keys[4], (1, 1, DIM), jnp.float32)
    p["pos"] = jax.random.normal(keys[5], (1, SEQ_LEN, DIM), jnp.float32)

    layers = []
    for i in range(VIT_BLOCKS):
        lk = jax.random.split(keys[8 + i], 12)
        layers.append({
            "wq": s * jax.random.normal(lk[0], (DIM, DIM), jnp.float32),
            "wk": s * jax.random.normal(lk[1], (DIM, DIM), jnp.float32),
            "wv": s * jax.random.normal(lk[2], (DIM, DIM), jnp.float32),
            "bq": s * jax.random.normal(lk[3], (1, DIM), jnp.float32),
            "bk": s * jax.random.normal(lk[4], (1, DIM), jnp.float32),
            "bv": s * jax.random.normal(lk[5], (1, DIM), jnp.float32),
            "wo": s * jax.random.normal(lk[6], (DIM, DIM), jnp.float32),
            "bo": s * jax.random.normal(lk[7], (1, DIM), jnp.float32),
            "ln1_g": jnp.ones((1, DIM), jnp.float32),
            "ln1_b": jnp.zeros((1, DIM), jnp.float32),
            "w1": s * jax.random.normal(lk[8], (DIM, VIT_FF), jnp.float32),
            "b1": s * jax.random.normal(lk[9], (1, VIT_FF), jnp.float32),
            "w2": s * jax.random.normal(lk[10], (VIT_FF, DIM), jnp.float32),
            "b2": s * jax.random.normal(lk[11], (1, DIM), jnp.float32),
            "ln2_g": jnp.ones((1, DIM), jnp.float32),
            "ln2_b": jnp.zeros((1, DIM), jnp.float32),
        })
    p["layers"] = layers
    return p


# --------------------------------------------------------------------------
# Pure-JAX f32 reference (unfolded, unsplit weights, no padding) for validation.
# --------------------------------------------------------------------------
def vit_reference(images, params):
    B = images.shape[0]
    P = PATCH_SIZE
    hp = IMAGE_SIZE // P
    x = images.reshape(B, 3, hp, P, hp, P)
    x = jnp.transpose(x, (0, 2, 4, 1, 3, 5)).reshape(B, NUM_PATCHES, K_DIM)
    x = x @ params["conv_w"] + params["conv_b"]
    x = x @ params["pl_w"] + params["pl_b"]
    cls = jnp.broadcast_to(params["cls"], (B, 1, DIM))
    x = jnp.concatenate([x, cls], axis=1) + params["pos"]
    for layer in params["layers"]:
        q = (x @ layer["wq"] + layer["bq"]).reshape(B, SEQ_LEN, VIT_HEAD, HEAD_DIM)
        k = (x @ layer["wk"] + layer["bk"]).reshape(B, SEQ_LEN, VIT_HEAD, HEAD_DIM)
        v = (x @ layer["wv"] + layer["bv"]).reshape(B, SEQ_LEN, VIT_HEAD, HEAD_DIM)
        s = jnp.einsum("bqhd,bkhd->bhqk", q, k) / math.sqrt(HEAD_DIM)
        p = jax.nn.softmax(s, axis=-1)
        o = jnp.einsum("bhqk,bkhd->bqhd", p, v).reshape(B, SEQ_LEN, DIM)
        attn = o @ layer["wo"] + layer["bo"]
        y = _layer_norm(x + attn, layer["ln1_g"], layer["ln1_b"])
        ff = jnp.maximum(y @ layer["w1"] + layer["b1"], 0.0) @ layer["w2"] + layer["b2"]
        x = _layer_norm(y + ff, layer["ln2_g"], layer["ln2_b"])
    return x


if __name__ == "__main__":
    key = jax.random.PRNGKey(0)
    pkey, xkey = jax.random.split(key)
    params = init_params(pkey)

    images = jax.random.normal(xkey, (2, 3, IMAGE_SIZE, IMAGE_SIZE), jnp.float32)

    fwd = jax.jit(vision_transformer)
    out = jax.block_until_ready(fwd(images, params))

    assert out.shape == (2, SEQ_LEN, DIM), out.shape
    assert bool(jnp.all(jnp.isfinite(out)))

    # bf16 MXU operands + approx reciprocal introduce ~1e-3..1e-2 deviation from
    # the pure-f32 reference; 5e-2 bounds it with margin.
    ref = vit_reference(images, params)
    max_err = float(jnp.max(jnp.abs(out - ref)))
    assert max_err < 5e-2, max_err

    print("KERNEL_OK")
</pallas_src>

<mosaic_0001>
module attributes {stable_mosaic.version = 11 : i64} {
  func.func @vit_fused_kernel(%arg0: i32, %arg1: memref<48x48xf32, #tpu.memory_space<vmem>>, %arg2: memref<48x32xbf16, #tpu.memory_space<vmem>>, %arg3: memref<48x32xf32, #tpu.memory_space<vmem>>, %arg4: memref<48x48xf32, #tpu.memory_space<vmem>>, %arg5: memref<2x32x96xbf16, #tpu.memory_space<vmem>>, %arg6: memref<2x32x32xbf16, #tpu.memory_space<vmem>>, %arg7: memref<2x32x64xbf16, #tpu.memory_space<vmem>>, %arg8: memref<2x64x32xbf16, #tpu.memory_space<vmem>>, %arg9: memref<2x8x128xf32, #tpu.memory_space<vmem>>, %arg10: memref<48x32xf32, #tpu.memory_space<vmem>>) attributes {dimension_semantics = [#tpu.dimension_semantics<parallel>], iteration_bounds = array<i64: 1>, scalar_prefetch = 0 : i64, scratch_operands = 0 : i64, tpu.core_type = #tpu.core_type<tc>, window_params = [{transform_indices = @transform_0, window_bounds = array<i64: 48, 48>}, {pipeline_mode = #tpu.pipeline_mode<synchronous>, transform_indices = @transform_1, window_bounds = array<i64: 48, 32>}, {pipeline_mode = #tpu.pipeline_mode<synchronous>, transform_indices = @transform_2, window_bounds = array<i64: 48, 32>}, {pipeline_mode = #tpu.pipeline_mode<synchronous>, transform_indices = @transform_3, window_bounds = array<i64: 48, 48>}, {pipeline_mode = #tpu.pipeline_mode<synchronous>, transform_indices = @transform_4, window_bounds = array<i64: 2, 32, 96>}, {pipeline_mode = #tpu.pipeline_mode<synchronous>, transform_indices = @transform_5, window_bounds = array<i64: 2, 32, 32>}, {pipeline_mode = #tpu.pipeline_mode<synchronous>, transform_indices = @transform_6, window_bounds = array<i64: 2, 32, 64>}, {pipeline_mode = #tpu.pipeline_mode<synchronous>, transform_indices = @transform_7, window_bounds = array<i64: 2, 64, 32>}, {pipeline_mode = #tpu.pipeline_mode<synchronous>, transform_indices = @transform_8, window_bounds = array<i64: 2, 8, 128>}, {transform_indices = @transform_9, window_bounds = array<i64: 48, 32>}]} {
    %c0 = arith.constant 0 : index
    %c0_0 = arith.constant 0 : index
    %0 = vector.load %arg1[%c0, %c0_0] : memref<48x48xf32, #tpu.memory_space<vmem>>, vector<48x48xf32>
    %1 = arith.truncf %0 : vector<48x48xf32> to vector<48x48xbf16>
    %c0_1 = arith.constant 0 : index
    %c0_2 = arith.constant 0 : index
    %2 = vector.load %arg2[%c0_1, %c0_2] : memref<48x32xbf16, #tpu.memory_space<vmem>>, vector<48x32xbf16>
    %cst = arith.constant dense<0.000000e+00> : vector<48x32xf32>
    %3 = tpu.matmul %1, %2, %cst {dimension_numbers = #tpu.dot_dimension_numbers<[1], [0], [0], [1], [0, 0, 1, 1], [], []>} : vector<48x48xbf16>, vector<48x32xbf16>, vector<48x32xf32> -> vector<48x32xf32>
    %c0_3 = arith.constant 0 : index
    %c0_4 = arith.constant 0 : index
    %4 = vector.load %arg3[%c0_3, %c0_4] : memref<48x32xf32, #tpu.memory_space<vmem>>, vector<48x32xf32>
    %5 = arith.addf %3, %4 : vector<48x32xf32>
    %c0_5 = arith.constant 0 : index
    %c0_6 = arith.constant 0 : index
    %6 = vector.load %arg4[%c0_5, %c0_6] : memref<48x48xf32, #tpu.memory_space<vmem>>, vector<48x48xf32>
    %c0_7 = arith.constant 0 : index
    %c0_8 = arith.constant 0 : index
    %c0_9 = arith.constant 0 : index
    %7 = vector.load %arg9[%c0_7, %c0_8, %c0_9] : memref<2x8x128xf32, #tpu.memory_space<vmem>>, vector<1x8x128xf32>
    %8 = vector.shape_cast %7 : vector<1x8x128xf32> to vector<8x128xf32>
    %9 = vector.extract_strided_slice %8 {offsets = [0, 0], sizes = [1, 96], strides = [1, 1]} : vector<8x128xf32> to vector<1x96xf32>
    %10 = vector.extract_strided_slice %8 {offsets = [1, 0], sizes = [1, 32], strides = [1, 1]} : vector<8x128xf32> to vector<1x32xf32>
    %11 = vector.extract_strided_slice %8 {offsets = [2, 0], sizes = [1, 32], strides = [1, 1]} : vector<8x128xf32> to vector<1x32xf32>
    %12 = vector.extract_strided_slice %8 {offsets = [3, 0], sizes = [1, 32], strides = [1, 1]} : vector<8x128xf32> to vector<1x32xf32>
    %13 = vector.extract_strided_slice %8 {offsets = [4, 0], sizes = [1, 64], strides = [1, 1]} : vector<8x128xf32> to vector<1x64xf32>
    %14 = vector.extract_strided_slice %8 {offsets = [5, 0], sizes = [1, 32], strides = [1, 1]} : vector<8x128xf32> to vector<1x32xf32>
    %15 = vector.extract_strided_slice %8 {offsets = [6, 0], sizes = [1, 32], strides = [1, 1]} : vector<8x128xf32> to vector<1x32xf32>
    %16 = vector.extract_strided_slice %8 {offsets = [7, 0], sizes = [1, 32], strides = [1, 1]} : vector<8x128xf32> to vector<1x32xf32>
    %17 = arith.truncf %5 : vector<48x32xf32> to vector<48x32xbf16>
    %c0_10 = arith.constant 0 : index
    %c0_11 = arith.constant 0 : index
    %c0_12 = arith.constant 0 : index
    %18 = vector.load %arg5[%c0_10, %c0_11, %c0_12] : memref<2x32x96xbf16, #tpu.memory_space<vmem>>, vector<1x32x96xbf16>
    %19 = vector.shape_cast %18 : vector<1x32x96xbf16> to vector<32x96xbf16>
    %cst_13 = arith.constant dense<0.000000e+00> : vector<48x96xf32>
    %20 = tpu.matmul %17, %19, %cst_13 {dimension_numbers = #tpu.dot_dimension_numbers<[1], [0], [0], [1], [0, 0, 1, 1], [], []>} : vector<48x32xbf16>, vector<32x96xbf16>, vector<48x96xf32> -> vector<48x96xf32>
    %21 = vector.broadcast %9 : vector<1x96xf32> to vector<48x96xf32>
    %22 = arith.addf %20, %21 : vector<48x96xf32>
    %23 = arith.truncf %22 : vector<48x96xf32> to vector<48x96xbf16>
    %24 = vector.extract_strided_slice %23 {offsets = [0, 0], sizes = [48, 8], strides = [1, 1]} : vector<48x96xbf16> to vector<48x8xbf16>
    %25 = vector.extract_strided_slice %23 {offsets = [0, 32], sizes = [48, 8], strides = [1, 1]} : vector<48x96xbf16> to vector<48x8xbf16>
    %26 = vector.extract_strided_slice %23 {offsets = [0, 64], sizes = [48, 8], strides = [1, 1]} : vector<48x96xbf16> to vector<48x8xbf16>
    %cst_14 = arith.constant dense<0.000000e+00> : vector<48x48xf32>
    %27 = tpu.matmul %24, %25, %cst_14 {dimension_numbers = #tpu.dot_dimension_numbers<[1], [1], [0], [0], [0, 0, 1, 0], [], []>} : vector<48x8xbf16>, vector<48x8xbf16>, vector<48x48xf32> -> vector<48x48xf32>
    %28 = arith.addf %27, %6 : vector<48x48xf32>
    %cst_15 = arith.constant dense<0xFF800000> : vector<48xf32>
    %29 = vector.multi_reduction <maximumf>, %28, %cst_15 [1] : vector<48x48xf32> to vector<48xf32>
    %30 = vector.shape_cast %29 : vector<48xf32> to vector<48x1xf32>
    %31 = vector.broadcast %30 : vector<48x1xf32> to vector<48x48xf32>
    %32 = arith.subf %28, %31 : vector<48x48xf32>
    %33 = math.exp %32 : vector<48x48xf32>
    %cst_16 = arith.constant dense<0.000000e+00> : vector<48xf32>
    %34 = vector.multi_reduction <add>, %33, %cst_16 [1] : vector<48x48xf32> to vector<48xf32>
    %35 = vector.shape_cast %34 : vector<48xf32> to vector<48x1xf32>
    %36 = tpu.reciprocal %35 {approx = true} : vector<48x1xf32> -> vector<48x1xf32>
    %37 = vector.broadcast %36 : vector<48x1xf32> to vector<48x48xf32>
    %38 = arith.mulf %33, %37 : vector<48x48xf32>
    %39 = arith.truncf %38 : vector<48x48xf32> to vector<48x48xbf16>
    %cst_17 = arith.constant dense<0.000000e+00> : vector<48x8xf32>
    %40 = tpu.matmul %39, %26, %cst_17 {dimension_numbers = #tpu.dot_dimension_numbers<[1], [0], [0], [1], [0, 0, 1, 1], [], []>} : vector<48x48xbf16>, vector<48x8xbf16>, vector<48x8xf32> -> vector<48x8xf32>
    %41 = vector.extract_strided_slice %23 {offsets = [0, 8], sizes = [48, 8], strides = [1, 1]} : vector<48x96xbf16> to vector<48x8xbf16>
    %42 = vector.extract_strided_slice %23 {offsets = [0, 40], sizes = [48, 8], strides = [1, 1]} : vector<48x96xbf16> to vector<48x8xbf16>
    %43 = vector.extract_strided_slice %23 {offsets = [0, 72], sizes = [48, 8], strides = [1, 1]} : vector<48x96xbf16> to vector<48x8xbf16>
    %cst_18 = arith.constant dense<0.000000e+00> : vector<48x48xf32>
    %44 = tpu.matmul %41, %42, %cst_18 {dimension_numbers = #tpu.dot_dimension_numbers<[1], [1], [0], [0], [0, 0, 1, 0], [], []>} : vector<48x8xbf16>, vector<48x8xbf16>, vector<48x48xf32> -> vector<48x48xf32>
    %45 = arith.addf %44, %6 : vector<48x48xf32>
    %cst_19 = arith.constant dense<0xFF800000> : vector<48xf32>
    %46 = vector.multi_reduction <maximumf>, %45, %cst_19 [1] : vector<48x48xf32> to vector<48xf32>
    %47 = vector.shape_cast %46 : vector<48xf32> to vector<48x1xf32>
    %48 = vector.broadcast %47 : vector<48x1xf32> to vector<48x48xf32>
    %49 = arith.subf %45, %48 : vector<48x48xf32>
    %50 = math.exp %49 : vector<48x48xf32>
    %cst_20 = arith.constant dense<0.000000e+00> : vector<48xf32>
    %51 = vector.multi_reduction <add>, %50, %cst_20 [1] : vector<48x48xf32> to vector<48xf32>
    %52 = vector.shape_cast %51 : vector<48xf32> to vector<48x1xf32>
    %53 = tpu.reciprocal %52 {approx = true} : vector<48x1xf32> -> vector<48x1xf32>
    %54 = vector.broadcast %53 : vector<48x1xf32> to vector<48x48xf32>
    %55 = arith.mulf %50, %54 : vector<48x48xf32>
    %56 = arith.truncf %55 : vector<48x48xf32> to vector<48x48xbf16>
    %cst_21 = arith.constant dense<0.000000e+00> : vector<48x8xf32>
    %57 = tpu.matmul %56, %43, %cst_21 {dimension_numbers = #tpu.dot_dimension_numbers<[1], [0], [0], [1], [0, 0, 1, 1], [], []>} : vector<48x48xbf16>, vector<48x8xbf16>, vector<48x8xf32> -> vector<48x8xf32>
    %58 = vector.extract_strided_slice %23 {offsets = [0, 16], sizes = [48, 8], strides = [1, 1]} : vector<48x96xbf16> to vector<48x8xbf16>
    %59 = vector.extract_strided_slice %23 {offsets = [0, 48], sizes = [48, 8], strides = [1, 1]} : vector<48x96xbf16> to vector<48x8xbf16>
    %60 = vector.extract_strided_slice %23 {offsets = [0, 80], sizes = [48, 8], strides = [1, 1]} : vector<48x96xbf16> to vector<48x8xbf16>
    %cst_22 = arith.constant dense<0.000000e+00> : vector<48x48xf32>
    %61 = tpu.matmul %58, %59, %cst_22 {dimension_numbers = #tpu.dot_dimension_numbers<[1], [1], [0], [0], [0, 0, 1, 0], [], []>} : vector<48x8xbf16>, vector<48x8xbf16>, vector<48x48xf32> -> vector<48x48xf32>
    %62 = arith.addf %61, %6 : vector<48x48xf32>
    %cst_23 = arith.constant dense<0xFF800000> : vector<48xf32>
    %63 = vector.multi_reduction <maximumf>, %62, %cst_23 [1] : vector<48x48xf32> to vector<48xf32>
    %64 = vector.shape_cast %63 : vector<48xf32> to vector<48x1xf32>
    %65 = vector.broadcast %64 : vector<48x1xf32> to vector<48x48xf32>
    %66 = arith.subf %62, %65 : vector<48x48xf32>
    %67 = math.exp %66 : vector<48x48xf32>
    %cst_24 = arith.constant dense<0.000000e+00> : vector<48xf32>
    %68 = vector.multi_reduction <add>, %67, %cst_24 [1] : vector<48x48xf32> to vector<48xf32>
    %69 = vector.shape_cast %68 : vector<48xf32> to vector<48x1xf32>
    %70 = tpu.reciprocal %69 {approx = true} : vector<48x1xf32> -> vector<48x1xf32>
    %71 = vector.broadcast %70 : vector<48x1xf32> to vector<48x48xf32>
    %72 = arith.mulf %67, %71 : vector<48x48xf32>
    %73 = arith.truncf %72 : vector<48x48xf32> to vector<48x48xbf16>
    %cst_25 = arith.constant dense<0.000000e+00> : vector<48x8xf32>
    %74 = tpu.matmul %73, %60, %cst_25 {dimension_numbers = #tpu.dot_dimension_numbers<[1], [0], [0], [1], [0, 0, 1, 1], [], []>} : vector<48x48xbf16>, vector<48x8xbf16>, vector<48x8xf32> -> vector<48x8xf32>
    %75 = vector.extract_strided_slice %23 {offsets = [0, 24], sizes = [48, 8], strides = [1, 1]} : vector<48x96xbf16> to vector<48x8xbf16>
    %76 = vector.extract_strided_slice %23 {offsets = [0, 56], sizes = [48, 8], strides = [1, 1]} : vector<48x96xbf16> to vector<48x8xbf16>
    %77 = vector.extract_strided_slice %23 {offsets = [0, 88], sizes = [48, 8], strides = [1, 1]} : vector<48x96xbf16> to vector<48x8xbf16>
    %cst_26 = arith.constant dense<0.000000e+00> : vector<48x48xf32>
    %78 = tpu.matmul %75, %76, %cst_26 {dimension_numbers = #tpu.dot_dimension_numbers<[1], [1], [0], [0], [0, 0, 1, 0], [], []>} : vector<48x8xbf16>, vector<48x8xbf16>, vector<48x48xf32> -> vector<48x48xf32>
    %79 = arith.addf %78, %6 : vector<48x48xf32>
    %cst_27 = arith.constant dense<0xFF800000> : vector<48xf32>
    %80 = vector.multi_reduction <maximumf>, %79, %cst_27 [1] : vector<48x48xf32> to vector<48xf32>
    %81 = vector.shape_cast %80 : vector<48xf32> to vector<48x1xf32>
    %82 = vector.broadcast %81 : vector<48x1xf32> to vector<48x48xf32>
    %83 = arith.subf %79, %82 : vector<48x48xf32>
    %84 = math.exp %83 : vector<48x48xf32>
    %cst_28 = arith.constant dense<0.000000e+00> : vector<48xf32>
    %85 = vector.multi_reduction <add>, %84, %cst_28 [1] : vector<48x48xf32> to vector<48xf32>
    %86 = vector.shape_cast %85 : vector<48xf32> to vector<48x1xf32>
    %87 = tpu.reciprocal %86 {approx = true} : vector<48x1xf32> -> vector<48x1xf32>
    %88 = vector.broadcast %87 : vector<48x1xf32> to vector<48x48xf32>
    %89 = arith.mulf %84, %88 : vector<48x48xf32>
    %90 = arith.truncf %89 : vector<48x48xf32> to vector<48x48xbf16>
    %cst_29 = arith.constant dense<0.000000e+00> : vector<48x8xf32>
    %91 = tpu.matmul %90, %77, %cst_29 {dimension_numbers = #tpu.dot_dimension_numbers<[1], [0], [0], [1], [0, 0, 1, 1], [], []>} : vector<48x48xbf16>, vector<48x8xbf16>, vector<48x8xf32> -> vector<48x8xf32>
    %92 = tpu.concatenate %40, %57, %74, %91 in 1 : vector<48x8xf32>, vector<48x8xf32>, vector<48x8xf32>, vector<48x8xf32> -> vector<48x32xf32>
    %93 = arith.truncf %92 : vector<48x32xf32> to vector<48x32xbf16>
    %c0_30 = arith.constant 0 : index
    %c0_31 = arith.constant 0 : index
    %c0_32 = arith.constant 0 : index
    %94 = vector.load %arg6[%c0_30, %c0_31, %c0_32] : memref<2x32x32xbf16, #tpu.memory_space<vmem>>, vector<1x32x32xbf16>
    %95 = vector.shape_cast %94 : vector<1x32x32xbf16> to vector<32x32xbf16>
    %cst_33 = arith.constant dense<0.000000e+00> : vector<48x32xf32>
    %96 = tpu.matmul %93, %95, %cst_33 {dimension_numbers = #tpu.dot_dimension_numbers<[1], [0], [0], [1], [0, 0, 1, 1], [], []>} : vector<48x32xbf16>, vector<32x32xbf16>, vector<48x32xf32> -> vector<48x32xf32>
    %97 = vector.broadcast %10 : vector<1x32xf32> to vector<48x32xf32>
    %98 = arith.addf %96, %97 : vector<48x32xf32>
    %99 = arith.addf %5, %98 : vector<48x32xf32>
    %cst_34 = arith.constant dense<0.000000e+00> : vector<48xf32>
    %100 = vector.multi_reduction <add>, %99, %cst_34 [1] : vector<48x32xf32> to vector<48xf32>
    %101 = vector.shape_cast %100 : vector<48xf32> to vector<48x1xf32>
    %cst_35 = arith.constant 3.200000e+01 : f32
    %102 = vector.broadcast %cst_35 : f32 to vector<48x1xf32>
    %103 = arith.divf %101, %102 : vector<48x1xf32>
    %104 = vector.broadcast %103 : vector<48x1xf32> to vector<48x32xf32>
    %105 = arith.subf %99, %104 : vector<48x32xf32>
    %106 = arith.mulf %105, %105 : vector<48x32xf32>
    %cst_36 = arith.constant dense<0.000000e+00> : vector<48xf32>
    %107 = vector.multi_reduction <add>, %106, %cst_36 [1] : vector<48x32xf32> to vector<48xf32>
    %108 = vector.shape_cast %107 : vector<48xf32> to vector<48x1xf32>
    %cst_37 = arith.constant 3.200000e+01 : f32
    %109 = vector.broadcast %cst_37 : f32 to vector<48x1xf32>
    %110 = arith.divf %108, %109 : vector<48x1xf32>
    %111 = vector.broadcast %103 : vector<48x1xf32> to vector<48x32xf32>
    %112 = arith.subf %99, %111 : vector<48x32xf32>
    %cst_38 = arith.constant 9.99999974E-6 : f32
    %113 = vector.broadcast %cst_38 : f32 to vector<48x1xf32>
    %114 = arith.addf %110, %113 : vector<48x1xf32>
    %115 = math.rsqrt %114 : vector<48x1xf32>
    %116 = vector.broadcast %115 : vector<48x1xf32> to vector<48x32xf32>
    %117 = arith.mulf %112, %116 : vector<48x32xf32>
    %118 = vector.broadcast %11 : vector<1x32xf32> to vector<48x32xf32>
    %119 = arith.mulf %117, %118 : vector<48x32xf32>
    %120 = vector.broadcast %12 : vector<1x32xf32> to vector<48x32xf32>
    %121 = arith.addf %119, %120 : vector<48x32xf32>
    %122 = arith.truncf %121 : vector<48x32xf32> to vector<48x32xbf16>
    %c0_39 = arith.constant 0 : index
    %c0_40 = arith.constant 0 : index
    %c0_41 = arith.constant 0 : index
    %123 = vector.load %arg7[%c0_39, %c0_40, %c0_41] : memref<2x32x64xbf16, #tpu.memory_space<vmem>>, vector<1x32x64xbf16>
    %124 = vector.shape_cast %123 : vector<1x32x64xbf16> to vector<32x64xbf16>
    %cst_42 = arith.constant dense<0.000000e+00> : vector<48x64xf32>
    %125 = tpu.matmul %122, %124, %cst_42 {dimension_numbers = #tpu.dot_dimension_numbers<[1], [0], [0], [1], [0, 0, 1, 1], [], []>} : vector<48x32xbf16>, vector<32x64xbf16>, vector<48x64xf32> -> vector<48x64xf32>
    %126 = vector.broadcast %13 : vector<1x64xf32> to vector<48x64xf32>
    %127 = arith.addf %125, %126 : vector<48x64xf32>
    %cst_43 = arith.constant 0.000000e+00 : f32
    %128 = vector.broadcast %cst_43 : f32 to vector<48x64xf32>
    %129 = arith.maximumf %127, %128 : vector<48x64xf32>
    %130 = arith.truncf %129 : vector<48x64xf32> to vector<48x64xbf16>
    %c0_44 = arith.constant 0 : index
    %c0_45 = arith.constant 0 : index
    %c0_46 = arith.constant 0 : index
    %131 = vector.load %arg8[%c0_44, %c0_45, %c0_46] : memref<2x64x32xbf16, #tpu.memory_space<vmem>>, vector<1x64x32xbf16>
    %132 = vector.shape_cast %131 : vector<1x64x32xbf16> to vector<64x32xbf16>
    %cst_47 = arith.constant dense<0.000000e+00> : vector<48x32xf32>
    %133 = tpu.matmul %130, %132, %cst_47 {dimension_numbers = #tpu.dot_dimension_numbers<[1], [0], [0], [1], [0, 0, 1, 1], [], []>} : vector<48x64xbf16>, vector<64x32xbf16>, vector<48x32xf32> -> vector<48x32xf32>
    %134 = vector.broadcast %14 : vector<1x32xf32> to vector<48x32xf32>
    %135 = arith.addf %133, %134 : vector<48x32xf32>
    %136 = arith.addf %121, %135 : vector<48x32xf32>
    %cst_48 = arith.constant dense<0.000000e+00> : vector<48xf32>
    %137 = vector.multi_reduction <add>, %136, %cst_48 [1] : vector<48x32xf32> to vector<48xf32>
    %138 = vector.shape_cast %137 : vector<48xf32> to vector<48x1xf32>
    %cst_49 = arith.constant 3.200000e+01 : f32
    %139 = vector.broadcast %cst_49 : f32 to vector<48x1xf32>
    %140 = arith.divf %138, %139 : vector<48x1xf32>
    %141 = vector.broadcast %140 : vector<48x1xf32> to vector<48x32xf32>
    %142 = arith.subf %136, %141 : vector<48x32xf32>
    %143 = arith.mulf %142, %142 : vector<48x32xf32>
    %cst_50 = arith.constant dense<0.000000e+00> : vector<48xf32>
    %144 = vector.multi_reduction <add>, %143, %cst_50 [1] : vector<48x32xf32> to vector<48xf32>
    %145 = vector.shape_cast %144 : vector<48xf32> to vector<48x1xf32>
    %cst_51 = arith.constant 3.200000e+01 : f32
    %146 = vector.broadcast %cst_51 : f32 to vector<48x1xf32>
    %147 = arith.divf %145, %146 : vector<48x1xf32>
    %148 = vector.broadcast %140 : vector<48x1xf32> to vector<48x32xf32>
    %149 = arith.subf %136, %148 : vector<48x32xf32>
    %cst_52 = arith.constant 9.99999974E-6 : f32
    %150 = vector.broadcast %cst_52 : f32 to vector<48x1xf32>
    %151 = arith.addf %147, %150 : vector<48x1xf32>
    %152 = math.rsqrt %151 : vector<48x1xf32>
    %153 = vector.broadcast %152 : vector<48x1xf32> to vector<48x32xf32>
    %154 = arith.mulf %149, %153 : vector<48x32xf32>
    %155 = vector.broadcast %15 : vector<1x32xf32> to vector<48x32xf32>
    %156 = arith.mulf %154, %155 : vector<48x32xf32>
    %157 = vector.broadcast %16 : vector<1x32xf32> to vector<48x32xf32>
    %158 = arith.addf %156, %157 : vector<48x32xf32>
    %c1 = arith.constant 1 : index
    %c0_53 = arith.constant 0 : index
    %c0_54 = arith.constant 0 : index
    %159 = vector.load %arg9[%c1, %c0_53, %c0_54] : memref<2x8x128xf32, #tpu.memory_space<vmem>>, vector<1x8x128xf32>
    %160 = vector.shape_cast %159 : vector<1x8x128xf32> to vector<8x128xf32>
    %161 = vector.extract_strided_slice %160 {offsets = [0, 0], sizes = [1, 96], strides = [1, 1]} : vector<8x128xf32> to vector<1x96xf32>
    %162 = vector.extract_strided_slice %160 {offsets = [1, 0], sizes = [1, 32], strides = [1, 1]} : vector<8x128xf32> to vector<1x32xf32>
    %163 = vector.extract_strided_slice %160 {offsets = [2, 0], sizes = [1, 32], strides = [1, 1]} : vector<8x128xf32> to vector<1x32xf32>
    %164 = vector.extract_strided_slice %160 {offsets = [3, 0], sizes = [1, 32], strides = [1, 1]} : vector<8x128xf32> to vector<1x32xf32>
    %165 = vector.extract_strided_slice %160 {offsets = [4, 0], sizes = [1, 64], strides = [1, 1]} : vector<8x128xf32> to vector<1x64xf32>
    %166 = vector.extract_strided_slice %160 {offsets = [5, 0], sizes = [1, 32], strides = [1, 1]} : vector<8x128xf32> to vector<1x32xf32>
    %167 = vector.extract_strided_slice %160 {offsets = [6, 0], sizes = [1, 32], strides = [1, 1]} : vector<8x128xf32> to vector<1x32xf32>
    %168 = vector.extract_strided_slice %160 {offsets = [7, 0], sizes = [1, 32], strides = [1, 1]} : vector<8x128xf32> to vector<1x32xf32>
    %169 = arith.truncf %158 : vector<48x32xf32> to vector<48x32xbf16>
    %c1_55 = arith.constant 1 : index
    %c0_56 = arith.constant 0 : index
    %c0_57 = arith.constant 0 : index
    %170 = vector.load %arg5[%c1_55, %c0_56, %c0_57] : memref<2x32x96xbf16, #tpu.memory_space<vmem>>, vector<1x32x96xbf16>
    %171 = vector.shape_cast %170 : vector<1x32x96xbf16> to vector<32x96xbf16>
    %cst_58 = arith.constant dense<0.000000e+00> : vector<48x96xf32>
    %172 = tpu.matmul %169, %171, %cst_58 {dimension_numbers = #tpu.dot_dimension_numbers<[1], [0], [0], [1], [0, 0, 1, 1], [], []>} : vector<48x32xbf16>, vector<32x96xbf16>, vector<48x96xf32> -> vector<48x96xf32>
    %173 = vector.broadcast %161 : vector<1x96xf32> to vector<48x96xf32>
    %174 = arith.addf %172, %173 : vector<48x96xf32>
    %175 = arith.truncf %174 : vector<48x96xf32> to vector<48x96xbf16>
    %176 = vector.extract_strided_slice %175 {offsets = [0, 0], sizes = [48, 8], strides = [1, 1]} : vector<48x96xbf16> to vector<48x8xbf16>
    %177 = vector.extract_strided_slice %175 {offsets = [0, 32], sizes = [48, 8], strides = [1, 1]} : vector<48x96xbf16> to vector<48x8xbf16>
    %178 = vector.extract_strided_slice %175 {offsets = [0, 64], sizes = [48, 8], strides = [1, 1]} : vector<48x96xbf16> to vector<48x8xbf16>
    %cst_59 = arith.constant dense<0.000000e+00> : vector<48x48xf32>
    %179 = tpu.matmul %176, %177, %cst_59 {dimension_numbers = #tpu.dot_dimension_numbers<[1], [1], [0], [0], [0, 0, 1, 0], [], []>} : vector<48x8xbf16>, vector<48x8xbf16>, vector<48x48xf32> -> vector<48x48xf32>
    %180 = arith.addf %179, %6 : vector<48x48xf32>
    %cst_60 = arith.constant dense<0xFF800000> : vector<48xf32>
    %181 = vector.multi_reduction <maximumf>, %180, %cst_60 [1] : vector<48x48xf32> to vector<48xf32>
    %182 = vector.shape_cast %181 : vector<48xf32> to vector<48x1xf32>
    %183 = vector.broadcast %182 : vector<48x1xf32> to vector<48x48xf32>
    %184 = arith.subf %180, %183 : vector<48x48xf32>
    %185 = math.exp %184 : vector<48x48xf32>
    %cst_61 = arith.constant dense<0.000000e+00> : vector<48xf32>
    %186 = vector.multi_reduction <add>, %185, %cst_61 [1] : vector<48x48xf32> to vector<48xf32>
    %187 = vector.shape_cast %186 : vector<48xf32> to vector<48x1xf32>
    %188 = tpu.reciprocal %187 {approx = true} : vector<48x1xf32> -> vector<48x1xf32>
    %189 = vector.broadcast %188 : vector<48x1xf32> to vector<48x48xf32>
    %190 = arith.mulf %185, %189 : vector<48x48xf32>
    %191 = arith.truncf %190 : vector<48x48xf32> to vector<48x48xbf16>
    %cst_62 = arith.constant dense<0.000000e+00> : vector<48x8xf32>
    %192 = tpu.matmul %191, %178, %cst_62 {dimension_numbers = #tpu.dot_dimension_numbers<[1], [0], [0], [1], [0, 0, 1, 1], [], []>} : vector<48x48xbf16>, vector<48x8xbf16>, vector<48x8xf32> -> vector<48x8xf32>
    %193 = vector.extract_strided_slice %175 {offsets = [0, 8], sizes = [48, 8], strides = [1, 1]} : vector<48x96xbf16> to vector<48x8xbf16>
    %194 = vector.extract_strided_slice %175 {offsets = [0, 40], sizes = [48, 8], strides = [1, 1]} : vector<48x96xbf16> to vector<48x8xbf16>
    %195 = vector.extract_strided_slice %175 {offsets = [0, 72], sizes = [48, 8], strides = [1, 1]} : vector<48x96xbf16> to vector<48x8xbf16>
    %cst_63 = arith.constant dense<0.000000e+00> : vector<48x48xf32>
    %196 = tpu.matmul %193, %194, %cst_63 {dimension_numbers = #tpu.dot_dimension_numbers<[1], [1], [0], [0], [0, 0, 1, 0], [], []>} : vector<48x8xbf16>, vector<48x8xbf16>, vector<48x48xf32> -> vector<48x48xf32>
    %197 = arith.addf %196, %6 : vector<48x48xf32>
    %cst_64 = arith.constant dense<0xFF800000> : vector<48xf32>
    %198 = vector.multi_reduction <maximumf>, %197, %cst_64 [1] : vector<48x48xf32> to vector<48xf32>
    %199 = vector.shape_cast %198 : vector<48xf32> to vector<48x1xf32>
    %200 = vector.broadcast %199 : vector<48x1xf32> to vector<48x48xf32>
    %201 = arith.subf %197, %200 : vector<48x48xf32>
    %202 = math.exp %201 : vector<48x48xf32>
    %cst_65 = arith.constant dense<0.000000e+00> : vector<48xf32>
    %203 = vector.multi_reduction <add>, %202, %cst_65 [1] : vector<48x48xf32> to vector<48xf32>
    %204 = vector.shape_cast %203 : vector<48xf32> to vector<48x1xf32>
    %205 = tpu.reciprocal %204 {approx = true} : vector<48x1xf32> -> vector<48x1xf32>
    %206 = vector.broadcast %205 : vector<48x1xf32> to vector<48x48xf32>
    %207 = arith.mulf %202, %206 : vector<48x48xf32>
    %208 = arith.truncf %207 : vector<48x48xf32> to vector<48x48xbf16>
    %cst_66 = arith.constant dense<0.000000e+00> : vector<48x8xf32>
    %209 = tpu.matmul %208, %195, %cst_66 {dimension_numbers = #tpu.dot_dimension_numbers<[1], [0], [0], [1], [0, 0, 1, 1], [], []>} : vector<48x48xbf16>, vector<48x8xbf16>, vector<48x8xf32> -> vector<48x8xf32>
    %210 = vector.extract_strided_slice %175 {offsets = [0, 16], sizes = [48, 8], strides = [1, 1]} : vector<48x96xbf16> to vector<48x8xbf16>
    %211 = vector.extract_strided_slice %175 {offsets = [0, 48], sizes = [48, 8], strides = [1, 1]} : vector<48x96xbf16> to vector<48x8xbf16>
    %212 = vector.extract_strided_slice %175 {offsets = [0, 80], sizes = [48, 8], strides = [1, 1]} : vector<48x96xbf16> to vector<48x8xbf16>
    %cst_67 = arith.constant dense<0.000000e+00> : vector<48x48xf32>
    %213 = tpu.matmul %210, %211, %cst_67 {dimension_numbers = #tpu.dot_dimension_numbers<[1], [1], [0], [0], [0, 0, 1, 0], [], []>} : vector<48x8xbf16>, vector<48x8xbf16>, vector<48x48xf32> -> vector<48x48xf32>
    %214 = arith.addf %213, %6 : vector<48x48xf32>
    %cst_68 = arith.constant dense<0xFF800000> : vector<48xf32>
    %215 = vector.multi_reduction <maximumf>, %214, %cst_68 [1] : vector<48x48xf32> to vector<48xf32>
    %216 = vector.shape_cast %215 : vector<48xf32> to vector<48x1xf32>
    %217 = vector.broadcast %216 : vector<48x1xf32> to vector<48x48xf32>
    %218 = arith.subf %214, %217 : vector<48x48xf32>
    %219 = math.exp %218 : vector<48x48xf32>
    %cst_69 = arith.constant dense<0.000000e+00> : vector<48xf32>
    %220 = vector.multi_reduction <add>, %219, %cst_69 [1] : vector<48x48xf32> to vector<48xf32>
    %221 = vector.shape_cast %220 : vector<48xf32> to vector<48x1xf32>
    %222 = tpu.reciprocal %221 {approx = true} : vector<48x1xf32> -> vector<48x1xf32>
    %223 = vector.broadcast %222 : vector<48x1xf32> to vector<48x48xf32>
    %224 = arith.mulf %219, %223 : vector<48x48xf32>
    %225 = arith.truncf %224 : vector<48x48xf32> to vector<48x48xbf16>
    %cst_70 = arith.constant dense<0.000000e+00> : vector<48x8xf32>
    %226 = tpu.matmul %225, %212, %cst_70 {dimension_numbers = #tpu.dot_dimension_numbers<[1], [0], [0], [1], [0, 0, 1, 1], [], []>} : vector<48x48xbf16>, vector<48x8xbf16>, vector<48x8xf32> -> vector<48x8xf32>
    %227 = vector.extract_strided_slice %175 {offsets = [0, 24], sizes = [48, 8], strides = [1, 1]} : vector<48x96xbf16> to vector<48x8xbf16>
    %228 = vector.extract_strided_slice %175 {offsets = [0, 56], sizes = [48, 8], strides = [1, 1]} : vector<48x96xbf16> to vector<48x8xbf16>
    %229 = vector.extract_strided_slice %175 {offsets = [0, 88], sizes = [48, 8], strides = [1, 1]} : vector<48x96xbf16> to vector<48x8xbf16>
    %cst_71 = arith.constant dense<0.000000e+00> : vector<48x48xf32>
    %230 = tpu.matmul %227, %228, %cst_71 {dimension_numbers = #tpu.dot_dimension_numbers<[1], [1], [0], [0], [0, 0, 1, 0], [], []>} : vector<48x8xbf16>, vector<48x8xbf16>, vector<48x48xf32> -> vector<48x48xf32>
    %231 = arith.addf %230, %6 : vector<48x48xf32>
    %cst_72 = arith.constant dense<0xFF800000> : vector<48xf32>
    %232 = vector.multi_reduction <maximumf>, %231, %cst_72 [1] : vector<48x48xf32> to vector<48xf32>
    %233 = vector.shape_cast %232 : vector<48xf32> to vector<48x1xf32>
    %234 = vector.broadcast %233 : vector<48x1xf32> to vector<48x48xf32>
    %235 = arith.subf %231, %234 : vector<48x48xf32>
    %236 = math.exp %235 : vector<48x48xf32>
    %cst_73 = arith.constant dense<0.000000e+00> : vector<48xf32>
    %237 = vector.multi_reduction <add>, %236, %cst_73 [1] : vector<48x48xf32> to vector<48xf32>
    %238 = vector.shape_cast %237 : vector<48xf32> to vector<48x1xf32>
    %239 = tpu.reciprocal %238 {approx = true} : vector<48x1xf32> -> vector<48x1xf32>
    %240 = vector.broadcast %239 : vector<48x1xf32> to vector<48x48xf32>
    %241 = arith.mulf %236, %240 : vector<48x48xf32>
    %242 = arith.truncf %241 : vector<48x48xf32> to vector<48x48xbf16>
    %cst_74 = arith.constant dense<0.000000e+00> : vector<48x8xf32>
    %243 = tpu.matmul %242, %229, %cst_74 {dimension_numbers = #tpu.dot_dimension_numbers<[1], [0], [0], [1], [0, 0, 1, 1], [], []>} : vector<48x48xbf16>, vector<48x8xbf16>, vector<48x8xf32> -> vector<48x8xf32>
    %244 = tpu.concatenate %192, %209, %226, %243 in 1 : vector<48x8xf32>, vector<48x8xf32>, vector<48x8xf32>, vector<48x8xf32> -> vector<48x32xf32>
    %245 = arith.truncf %244 : vector<48x32xf32> to vector<48x32xbf16>
    %c1_75 = arith.constant 1 : index
    %c0_76 = arith.constant 0 : index
    %c0_77 = arith.constant 0 : index
    %246 = vector.load %arg6[%c1_75, %c0_76, %c0_77] : memref<2x32x32xbf16, #tpu.memory_space<vmem>>, vector<1x32x32xbf16>
    %247 = vector.shape_cast %246 : vector<1x32x32xbf16> to vector<32x32xbf16>
    %cst_78 = arith.constant dense<0.000000e+00> : vector<48x32xf32>
    %248 = tpu.matmul %245, %247, %cst_78 {dimension_numbers = #tpu.dot_dimension_numbers<[1], [0], [0], [1], [0, 0, 1, 1], [], []>} : vector<48x32xbf16>, vector<32x32xbf16>, vector<48x32xf32> -> vector<48x32xf32>
    %249 = vector.broadcast %162 : vector<1x32xf32> to vector<48x32xf32>
    %250 = arith.addf %248, %249 : vector<48x32xf32>
    %251 = arith.addf %158, %250 : vector<48x32xf32>
    %cst_79 = arith.constant dense<0.000000e+00> : vector<48xf32>
    %252 = vector.multi_reduction <add>, %251, %cst_79 [1] : vector<48x32xf32> to vector<48xf32>
    %253 = vector.shape_cast %252 : vector<48xf32> to vector<48x1xf32>
    %cst_80 = arith.constant 3.200000e+01 : f32
    %254 = vector.broadcast %cst_80 : f32 to vector<48x1xf32>
    %255 = arith.divf %253, %254 : vector<48x1xf32>
    %256 = vector.broadcast %255 : vector<48x1xf32> to vector<48x32xf32>
    %257 = arith.subf %251, %256 : vector<48x32xf32>
    %258 = arith.mulf %257, %257 : vector<48x32xf32>
    %cst_81 = arith.constant dense<0.000000e+00> : vector<48xf32>
    %259 = vector.multi_reduction <add>, %258, %cst_81 [1] : vector<48x32xf32> to vector<48xf32>
    %260 = vector.shape_cast %259 : vector<48xf32> to vector<48x1xf32>
    %cst_82 = arith.constant 3.200000e+01 : f32
    %261 = vector.broadcast %cst_82 : f32 to vector<48x1xf32>
    %262 = arith.divf %260, %261 : vector<48x1xf32>
    %263 = vector.broadcast %255 : vector<48x1xf32> to vector<48x32xf32>
    %264 = arith.subf %251, %263 : vector<48x32xf32>
    %cst_83 = arith.constant 9.99999974E-6 : f32
    %265 = vector.broadcast %cst_83 : f32 to vector<48x1xf32>
    %266 = arith.addf %262, %265 : vector<48x1xf32>
    %267 = math.rsqrt %266 : vector<48x1xf32>
    %268 = vector.broadcast %267 : vector<48x1xf32> to vector<48x32xf32>
    %269 = arith.mulf %264, %268 : vector<48x32xf32>
    %270 = vector.broadcast %163 : vector<1x32xf32> to vector<48x32xf32>
    %271 = arith.mulf %269, %270 : vector<48x32xf32>
    %272 = vector.broadcast %164 : vector<1x32xf32> to vector<48x32xf32>
    %273 = arith.addf %271, %272 : vector<48x32xf32>
    %274 = arith.truncf %273 : vector<48x32xf32> to vector<48x32xbf16>
    %c1_84 = arith.constant 1 : index
    %c0_85 = arith.constant 0 : index
    %c0_86 = arith.constant 0 : index
    %275 = vector.load %arg7[%c1_84, %c0_85, %c0_86] : memref<2x32x64xbf16, #tpu.memory_space<vmem>>, vector<1x32x64xbf16>
    %276 = vector.shape_cast %275 : vector<1x32x64xbf16> to vector<32x64xbf16>
    %cst_87 = arith.constant dense<0.000000e+00> : vector<48x64xf32>
    %277 = tpu.matmul %274, %276, %cst_87 {dimension_numbers = #tpu.dot_dimension_numbers<[1], [0], [0], [1], [0, 0, 1, 1], [], []>} : vector<48x32xbf16>, vector<32x64xbf16>, vector<48x64xf32> -> vector<48x64xf32>
    %278 = vector.broadcast %165 : vector<1x64xf32> to vector<48x64xf32>
    %279 = arith.addf %277, %278 : vector<48x64xf32>
    %cst_88 = arith.constant 0.000000e+00 : f32
    %280 = vector.broadcast %cst_88 : f32 to vector<48x64xf32>
    %281 = arith.maximumf %279, %280 : vector<48x64xf32>
    %282 = arith.truncf %281 : vector<48x64xf32> to vector<48x64xbf16>
    %c1_89 = arith.constant 1 : index
    %c0_90 = arith.constant 0 : index
    %c0_91 = arith.constant 0 : index
    %283 = vector.load %arg8[%c1_89, %c0_90, %c0_91] : memref<2x64x32xbf16, #tpu.memory_space<vmem>>, vector<1x64x32xbf16>
    %284 = vector.shape_cast %283 : vector<1x64x32xbf16> to vector<64x32xbf16>
    %cst_92 = arith.constant dense<0.000000e+00> : vector<48x32xf32>
    %285 = tpu.matmul %282, %284, %cst_92 {dimension_numbers = #tpu.dot_dimension_numbers<[1], [0], [0], [1], [0, 0, 1, 1], [], []>} : vector<48x64xbf16>, vector<64x32xbf16>, vector<48x32xf32> -> vector<48x32xf32>
    %286 = vector.broadcast %166 : vector<1x32xf32> to vector<48x32xf32>
    %287 = arith.addf %285, %286 : vector<48x32xf32>
    %288 = arith.addf %273, %287 : vector<48x32xf32>
    %cst_93 = arith.constant dense<0.000000e+00> : vector<48xf32>
    %289 = vector.multi_reduction <add>, %288, %cst_93 [1] : vector<48x32xf32> to vector<48xf32>
    %290 = vector.shape_cast %289 : vector<48xf32> to vector<48x1xf32>
    %cst_94 = arith.constant 3.200000e+01 : f32
    %291 = vector.broadcast %cst_94 : f32 to vector<48x1xf32>
    %292 = arith.divf %290, %291 : vector<48x1xf32>
    %293 = vector.broadcast %292 : vector<48x1xf32> to vector<48x32xf32>
    %294 = arith.subf %288, %293 : vector<48x32xf32>
    %295 = arith.mulf %294, %294 : vector<48x32xf32>
    %cst_95 = arith.constant dense<0.000000e+00> : vector<48xf32>
    %296 = vector.multi_reduction <add>, %295, %cst_95 [1] : vector<48x32xf32> to vector<48xf32>
    %297 = vector.shape_cast %296 : vector<48xf32> to vector<48x1xf32>
    %cst_96 = arith.constant 3.200000e+01 : f32
    %298 = vector.broadcast %cst_96 : f32 to vector<48x1xf32>
    %299 = arith.divf %297, %298 : vector<48x1xf32>
    %300 = vector.broadcast %292 : vector<48x1xf32> to vector<48x32xf32>
    %301 = arith.subf %288, %300 : vector<48x32xf32>
    %cst_97 = arith.constant 9.99999974E-6 : f32
    %302 = vector.broadcast %cst_97 : f32 to vector<48x1xf32>
    %303 = arith.addf %299, %302 : vector<48x1xf32>
    %304 = math.rsqrt %303 : vector<48x1xf32>
    %305 = vector.broadcast %304 : vector<48x1xf32> to vector<48x32xf32>
    %306 = arith.mulf %301, %305 : vector<48x32xf32>
    %307 = vector.broadcast %167 : vector<1x32xf32> to vector<48x32xf32>
    %308 = arith.mulf %306, %307 : vector<48x32xf32>
    %309 = vector.broadcast %168 : vector<1x32xf32> to vector<48x32xf32>
    %310 = arith.addf %308, %309 : vector<48x32xf32>
    %c0_98 = arith.constant 0 : index
    %c0_99 = arith.constant 0 : index
    %311 = vector.load %arg10[%c0_98, %c0_99] : memref<48x32xf32, #tpu.memory_space<vmem>>, vector<48x32xf32>
    tpu.vector_store %arg10[%c0_98, %c0_99], %310 {strides = array<i32>} : memref<48x32xf32, #tpu.memory_space<vmem>>, vector<48x32xf32>,
    return
  }
  func.func @transform_0(%arg0: i32) -> (i32, i32) {
    %c0_i32 = arith.constant 0 : i32
    %c0_i32_0 = arith.constant 0 : i32
    return %arg0, %c0_i32 : i32, i32
  }
  func.func @transform_1(%arg0: i32) -> (i32, i32) {
    %c0_i32 = arith.constant 0 : i32
    %c0_i32_0 = arith.constant 0 : i32
    %c0_i32_1 = arith.constant 0 : i32
    return %c0_i32, %c0_i32_0 : i32, i32
  }
  func.func @transform_2(%arg0: i32) -> (i32, i32) {
    %c0_i32 = arith.constant 0 : i32
    %c0_i32_0 = arith.constant 0 : i32
    %c0_i32_1 = arith.constant 0 : i32
    return %c0_i32, %c0_i32_0 : i32, i32
  }
  func.func @transform_3(%arg0: i32) -> (i32, i32) {
    %c0_i32 = arith.constant 0 : i32
    %c0_i32_0 = arith.constant 0 : i32
    %c0_i32_1 = arith.constant 0 : i32
    return %c0_i32, %c0_i32_0 : i32, i32
  }
  func.func @transform_4(%arg0: i32) -> (i32, i32, i32) {
    %c0_i32 = arith.constant 0 : i32
    %c0_i32_0 = arith.constant 0 : i32
    %c0_i32_1 = arith.constant 0 : i32
    %c0_i32_2 = arith.constant 0 : i32
    return %c0_i32, %c0_i32_0, %c0_i32_1 : i32, i32, i32
  }
  func.func @transform_5(%arg0: i32) -> (i32, i32, i32) {
    %c0_i32 = arith.constant 0 : i32
    %c0_i32_0 = arith.constant 0 : i32
    %c0_i32_1 = arith.constant 0 : i32
    %c0_i32_2 = arith.constant 0 : i32
    return %c0_i32, %c0_i32_0, %c0_i32_1 : i32, i32, i32
  }
  func.func @transform_6(%arg0: i32) -> (i32, i32, i32) {
    %c0_i32 = arith.constant 0 : i32
    %c0_i32_0 = arith.constant 0 : i32
    %c0_i32_1 = arith.constant 0 : i32
    %c0_i32_2 = arith.constant 0 : i32
    return %c0_i32, %c0_i32_0, %c0_i32_1 : i32, i32, i32
  }
  func.func @transform_7(%arg0: i32) -> (i32, i32, i32) {
    %c0_i32 = arith.constant 0 : i32
    %c0_i32_0 = arith.constant 0 : i32
    %c0_i32_1 = arith.constant 0 : i32
    %c0_i32_2 = arith.constant 0 : i32
    return %c0_i32, %c0_i32_0, %c0_i32_1 : i32, i32, i32
  }
  func.func @transform_8(%arg0: i32) -> (i32, i32, i32) {
    %c0_i32 = arith.constant 0 : i32
    %c0_i32_0 = arith.constant 0 : i32
    %c0_i32_1 = arith.constant 0 : i32
    %c0_i32_2 = arith.constant 0 : i32
    return %c0_i32, %c0_i32_0, %c0_i32_1 : i32, i32, i32
  }
  func.func @transform_9(%arg0: i32) -> (i32, i32) {
    %c0_i32 = arith.constant 0 : i32
    %c0_i32_0 = arith.constant 0 : i32
    return %arg0, %c0_i32 : i32, i32
  }
}

</mosaic_0001>

<llo_original>
// kernel: vision_transformer.1
$region0: #{vision_transformer.1}
  #allocation0 [shape = 'u32[]', space=smem, size = 0x4, offset = 0x4, fixed_abs, tag = 'smem constant byte address 0x4 - core index']
  #allocation1 [shape = 'u32[144,128]{1,0:T(1,128)}', space=vmem, size = 0x12000, scoped, tag = 'internal scratch']
  %s0 = inlined_call_operand.vmem [shape: f32[48,48], index: 0, kind: input, shape index: {}]
  %s1 = inlined_call_operand.vmem [shape: bf16[48,32], index: 1, kind: input, shape index: {}]
  %s2 = inlined_call_operand.vmem [shape: f32[48,32], index: 2, kind: input, shape index: {}]
  %s3 = inlined_call_operand.vmem [shape: f32[48,48], index: 3, kind: input, shape index: {}]
  %s4 = inlined_call_operand.vmem [shape: bf16[2,32,96], index: 4, kind: input, shape index: {}]
  %s5 = inlined_call_operand.vmem [shape: bf16[2,32,32], index: 5, kind: input, shape index: {}]
  %s6 = inlined_call_operand.vmem [shape: bf16[2,32,64], index: 6, kind: input, shape index: {}]
  %s7 = inlined_call_operand.vmem [shape: bf16[2,64,32], index: 7, kind: input, shape index: {}]
  %s8 = inlined_call_operand.vmem [shape: f32[2,8,128], index: 8, kind: input, shape index: {}]
  %s9 = inlined_call_operand.vmem [shape: f32[48,32], index: 9, kind: output, shape index: {}]
  %s10 = sld [smem:[#allocation0]]
  $region46: #{vision_transformer.1} parent=0
    _
  %s12 = ssub.s32 1, %s10
  %s13 = scalar_select 0, %s12, %s10
  // Predicated region
  $region2: #{vision_transformer.1} parent=0 // pred_check
    _
  $region3: #{vision_transformer.1} parent=0 // pred_check_branch
    %15 = sbr.rel (0) target = $region5
  $region4: #{vision_transformer.1} parent=0 // pred_region
    _
  $region5: #{vision_transformer.1} parent=0 // pred_fallthru
    _
  // Predicated region
  $region6: #{vision_transformer.1} parent=0 // pred_check
    _
  $region7: #{vision_transformer.1} parent=0 // pred_check_branch
    %17 = sbr.rel (0) target = $region9
  $region8: #{vision_transformer.1} parent=0 // pred_region
    _
  $region9: #{vision_transformer.1} parent=0 // pred_fallthru
    _
  // Predicated region
  $region10: #{vision_transformer.1} parent=0 // pred_check
    _
  $region11: #{vision_transformer.1} parent=0 // pred_check_branch
    %19 = sbr.rel (0) target = $region13
  $region12: #{vision_transformer.1} parent=0 // pred_region
    _
  $region13: #{vision_transformer.1} parent=0 // pred_fallthru
    _
  // Predicated region
  $region14: #{vision_transformer.1} parent=0 // pred_check
    _
  $region15: #{vision_transformer.1} parent=0 // pred_check_branch
    %21 = sbr.rel (0) target = $region17
  $region16: #{vision_transformer.1} parent=0 // pred_region
    _
  $region17: #{vision_transformer.1} parent=0 // pred_fallthru
    _
  // Predicated region
  $region18: #{vision_transformer.1} parent=0 // pred_check
    _
  $region19: #{vision_transformer.1} parent=0 // pred_check_branch
    %23 = sbr.rel (0) target = $region21
  $region20: #{vision_transformer.1} parent=0 // pred_region
    _
  $region21: #{vision_transformer.1} parent=0 // pred_fallthru
    _
  // Predicated region
  $region22: #{vision_transformer.1} parent=0 // pred_check
    _
  $region23: #{vision_transformer.1} parent=0 // pred_check_branch
    %25 = sbr.rel (0) target = $region25
  $region24: #{vision_transformer.1} parent=0 // pred_region
    _
  $region25: #{vision_transformer.1} parent=0 // pred_fallthru
    _
  // Predicated region
  $region26: #{vision_transformer.1} parent=0 // pred_check
    _
  $region27: #{vision_transformer.1} parent=0 // pred_check_branch
    %27 = sbr.rel (0) target = $region29
  $region28: #{vision_transformer.1} parent=0 // pred_region
    _
  $region29: #{vision_transformer.1} parent=0 // pred_fallthru
    _
  // Predicated region
  $region30: #{vision_transformer.1} parent=0 // pred_check
    _
  $region31: #{vision_transformer.1} parent=0 // pred_check_branch
    %29 = sbr.rel (0) target = $region33
  $region32: #{vision_transformer.1} parent=0 // pred_region
    _
  $region33: #{vision_transformer.1} parent=0 // pred_fallthru
    _
  // Predicated region
  $region34: #{vision_transformer.1} parent=0 // pred_check
    _
  $region35: #{vision_transformer.1} parent=0 // pred_check_branch
    %31 = sbr.rel (0) target = $region37
  $region36: #{vision_transformer.1} parent=0 // pred_region
    _
  $region37: #{vision_transformer.1} parent=0 // pred_fallthru
    _
  %v33 = vld [vmem:[%s0] sm:$0xff]
  %v34 = vld [vmem:[%s0 + $0x8] sm:$0xff]
  %v35 = vld [vmem:[%s0 + $0x10] sm:$0xff]
  %v36 = vld [vmem:[%s0 + $0x18] sm:$0xff]
  %v37 = vld [vmem:[%s0 + $0x20] sm:$0xff]
  %v38 = vld [vmem:[%s0 + $0x28] sm:$0xff]
  %v39 = vpack.c.bf16 %v34, %v33
  %v40 = vpack.c.bf16 %v36, %v35
  %v41 = vpack.c.bf16 %v38, %v37
  %v42 = vld [vmem:[%s1] sm:$0xf]
  %v43 = vld [vmem:[%s1 + $0x4] sm:$0xf]
  %v44 = vld [vmem:[%s1 + $0x8] sm:$0xf]
  %v45 = vld [vmem:[%s1 + $0xc] sm:$0xf]
  %v46 = vld [vmem:[%s1 + $0x10] sm:$0xf]
  %v47 = vld [vmem:[%s1 + $0x14] sm:$0xf]
  %v48 = vld [vmem:[%s2] sm:$0xff]
  %v49 = vld [vmem:[%s2 + $0x8] sm:$0xff]
  %v50 = vld [vmem:[%s2 + $0x10] sm:$0xff]
  %v51 = vld [vmem:[%s2 + $0x18] sm:$0xff]
  %v52 = vld [vmem:[%s2 + $0x20] sm:$0xff]
  %v53 = vld [vmem:[%s2 + $0x28] sm:$0xff]
  %v60 = vunpack.c.l.b16 %v42
  %v61 = vunpack.c.l.b16 %v43
  %v62 = vunpack.c.l.b16 %v44
  %v63 = vunpack.c.l.b16 %v45
  %v64 = vunpack.c.l.b16 %v46
  %v65 = vunpack.c.l.b16 %v47
  %v66 = vpack.c.b16 %v61, %v60
  %v67 = vpack.c.b16 %v63, %v62
  %v68 = vpack.c.b16 %v65, %v64
  %vm72 = vcmask 392192
  %v74 = vsel %vm72, %v39, 0
  %v77 = vsel %vm72, %v40, 0
  %v80 = vsel %vm72, %v41, 0
  %82 = vmatprep.subr.bf16.mxu0 0
  %83 = vmatpush1.bf16.msra.mxu0 %v66
  %84 = vmatprep.subr.bf16.mxu0 0
  %85 = vmatpush1.bf16.msra.mxu0 %v67
  %86 = vmatprep.subr.bf16.mxu0 0
  %87 = vmatpush1.bf16.msra.mxu0 %v68
  %88 = vmatprep.subr.bf16.mxu0 0
  %89 = vmatpush1.bf16.msra.mxu0 0
  %90 = vmatprep.subr.bf16.mxu0 0
  %91 = vmatpush1.bf16.msra.mxu0 0
  %92 = vmatprep.subr.bf16.mxu0 0
  %93 = vmatpush1.bf16.msra.mxu0 0
  %94 = vmatprep.subr.bf16.mxu0 0
  %95 = vmatpush1.bf16.msra.mxu0 0
  %96 = vmatprep.subr.bf16.mxu0 0
  %97 = vmatpush1.bf16.msra.mxu0 0
  %98 = vmatprep.subr.bf16.mxu0 0
  %99 = vmatpush1.bf16.msra.mxu0 0
  %100 = vmatprep.subr.bf16.mxu0 0
  %101 = vmatpush1.bf16.msra.mxu0 0
  %102 = vmatprep.subr.bf16.mxu0 0
  %103 = vmatpush1.bf16.msra.mxu0 0
  %104 = vmatprep.subr.bf16.mxu0 0
  %105 = vmatpush1.bf16.msra.mxu0 0
  %106 = vmatprep.subr.bf16.mxu0 0
  %107 = vmatpush1.bf16.msra.mxu0 0
  %108 = vmatprep.subr.bf16.mxu0 0
  %109 = vmatpush1.bf16.msra.mxu0 0
  %110 = vmatprep.subr.bf16.mxu0 0
  %111 = vmatpush1.bf16.msra.mxu0 0
  %112 = vmatprep.subr.bf16.mxu0 0
  %113 = vmatpush1.bf16.msra.mxu0 0
  %114 = vmatprep.mubr.bf16.mxu0 0
  %115 = vmatmul.mubr.bf16.gmra.mrb[0].mxu0 %v74
  %v116 = vpop.f32.mrb[0].mxu0
  %v117 = vadd.f32 %v48, %v116
  %v118 = vpop.f32.mrb[0].mxu0
  %v119 = vpop.f32.mrb[0].mxu0
  %v120 = vadd.f32 %v49, %v119
  %v121 = vpop.f32.mrb[0].mxu0
  %122 = vmatprep.mubr.bf16.mxu0 0
  %123 = vmatmul.mubr.bf16.gmra.mrb[0].mxu0 %v77
  %v124 = vpop.f32.mrb[0].mxu0
  %v125 = vadd.f32 %v50, %v124
  %v126 = vpop.f32.mrb[0].mxu0
  %v127 = vpop.f32.mrb[0].mxu0
  %v128 = vadd.f32 %v51, %v127
  %v129 = vpop.f32.mrb[0].mxu0
  %130 = vmatprep.mubr.bf16.mxu0 0
  %131 = vmatmul.mubr.bf16.gmra.mrb[0].mxu0 %v80
  %v132 = vpop.f32.mrb[0].mxu0
  %v133 = vadd.f32 %v52, %v132
  %v134 = vpop.f32.mrb[0].mxu0
  %v135 = vpop.f32.mrb[0].mxu0
  %v136 = vadd.f32 %v53, %v135
  %v137 = vpop.f32.mrb[0].mxu0
  %138 = vdwg.mxu0
  %v139 = vld [vmem:[%s3] sm:$0xff]
  %v140 = vld [vmem:[%s3 + $0x8] sm:$0xff]
  %v141 = vld [vmem:[%s3 + $0x10] sm:$0xff]
  %v142 = vld [vmem:[%s3 + $0x18] sm:$0xff]
  %v143 = vld [vmem:[%s3 + $0x20] sm:$0xff]
  %v144 = vld [vmem:[%s3 + $0x28] sm:$0xff]
  %v145 = vld [vmem:[%s8] sm:$0xff]
  %v146 = vpack.c.bf16 %v120, %v117
  %v147 = vpack.c.bf16 %v128, %v125
  %v148 = vpack.c.bf16 %v136, %v133
  %v149 = vld [vmem:[%s4] sm:$0xf]
  %v150 = vld [vmem:[%s4 + $0x4] sm:$0xf]
  %v151 = vld [vmem:[%s4 + $0x8] sm:$0xf]
  %v152 = vld [vmem:[%s4 + $0xc] sm:$0xf]
  %v153 = vlaneseq
  %v154 = vshrl.u32 %v153, 7
  %v155 = vsub.s32 0, %v154
  %v156 = vrot.slane %v145, %v155
  %v161 = vunpack.c.l.b16 %v149
  %v162 = vunpack.c.l.b16 %v150
  %v163 = vunpack.c.l.b16 %v151
  %v164 = vunpack.c.l.b16 %v152
  %v165 = vpack.c.b16 %v162, %v161
  %v166 = vpack.c.b16 %v164, %v163
  %vm169 = vcmask 261120
  %v171 = vsel %vm169, %v146, 0
  %v174 = vsel %vm169, %v147, 0
  %v177 = vsel %vm169, %v148, 0
  %179 = vmatprep.subr.bf16.mxu0 0
  %180 = vmatpush1.bf16.msra.mxu0 %v165
  %181 = vmatprep.subr.bf16.mxu0 0
  %182 = vmatpush1.bf16.msra.mxu0 %v166
  %183 = vmatprep.subr.bf16.mxu0 0
  %184 = vmatpush1.bf16.msra.mxu0 0
  %185 = vmatprep.subr.bf16.mxu0 0
  %186 = vmatpush1.bf16.msra.mxu0 0
  %187 = vmatprep.subr.bf16.mxu0 0
  %188 = vmatpush1.bf16.msra.mxu0 0
  %189 = vmatprep.subr.bf16.mxu0 0
  %190 = vmatpush1.bf16.msra.mxu0 0
  %191 = vmatprep.subr.bf16.mxu0 0
  %192 = vmatpush1.bf16.msra.mxu0 0
  %193 = vmatprep.subr.bf16.mxu0 0
  %194 = vmatpush1.bf16.msra.mxu0 0
  %195 = vmatprep.subr.bf16.mxu0 0
  %196 = vmatpush1.bf16.msra.mxu0 0
  %197 = vmatprep.subr.bf16.mxu0 0
  %198 = vmatpush1.bf16.msra.mxu0 0
  %199 = vmatprep.subr.bf16.mxu0 0
  %200 = vmatpush1.bf16.msra.mxu0 0
  %201 = vmatprep.subr.bf16.mxu0 0
  %202 = vmatpush1.bf16.msra.mxu0 0
  %203 = vmatprep.subr.bf16.mxu0 0
  %204 = vmatpush1.bf16.msra.mxu0 0
  %205 = vmatprep.subr.bf16.mxu0 0
  %206 = vmatpush1.bf16.msra.mxu0 0
  %207 = vmatprep.subr.bf16.mxu0 0
  %208 = vmatpush1.bf16.msra.mxu0 0
  %209 = vmatprep.subr.bf16.mxu0 0
  %210 = vmatpush1.bf16.msra.mxu0 0
  %211 = vmatprep.mubr.bf16.mxu0 0
  %212 = vmatmul.mubr.bf16.gmra.mrb[0].mxu0 %v171
  %v213 = vpop.f32.mrb[0].mxu0
  %v214 = vadd.f32 %v156, %v213
  %v215 = vpop.f32.mrb[0].mxu0
  %v216 = vpop.f32.mrb[0].mxu0
  %v217 = vadd.f32 %v156, %v216
  %v218 = vpop.f32.mrb[0].mxu0
  %219 = vmatprep.mubr.bf16.mxu0 0
  %220 = vmatmul.mubr.bf16.gmra.mrb[0].mxu0 %v174
  %v221 = vpop.f32.mrb[0].mxu0
  %v222 = vadd.f32 %v156, %v221
  %v223 = vpop.f32.mrb[0].mxu0
  %v224 = vpop.f32.mrb[0].mxu0
  %v225 = vadd.f32 %v156, %v224
  %v226 = vpop.f32.mrb[0].mxu0
  %227 = vmatprep.mubr.bf16.mxu0 0
  %228 = vmatmul.mubr.bf16.gmra.mrb[0].mxu0 %v177
  %v229 = vpop.f32.mrb[0].mxu0
  %v230 = vadd.f32 %v156, %v229
  %v231 = vpop.f32.mrb[0].mxu0
  %v232 = vpop.f32.mrb[0].mxu0
  %v233 = vadd.f32 %v156, %v232
  %v234 = vpop.f32.mrb[0].mxu0
  %235 = vdwg.mxu0
  %v236 = vpack.c.bf16 %v217, %v214
  %v237 = vpack.c.bf16 %v225, %v222
  %v238 = vpack.c.bf16 %v233, %v230
  %242 = vrot.lane.b32.xlu0 %v236, 96
  %v243 = vpop.permute.xlu0 %242
  %244 = vrot.lane.b32.xlu0 %v237, 96
  %v245 = vpop.permute.xlu0 %244
  %246 = vrot.lane.b32.xlu0 %v238, 96
  %v247 = vpop.permute.xlu0 %246
  %vm248 = vcmask 64512
  %v250 = vsel %vm248, %v236, 0
  %v253 = vsel %vm248, %v237, 0
  %v256 = vsel %vm248, %v238, 0
  %v259 = vsel %vm248, %v243, 0
  %v262 = vsel %vm248, %v245, 0
  %v265 = vsel %vm248, %v247, 0
  %267 = vmatprep.subr.bf16.mxu0 0
  %268 = vmatpush1.bf16.xpose.msra.mxu0 %v259
  %269 = vmatprep.subr.bf16.mxu0 0
  %270 = vmatpush1.bf16.xpose.msra.mxu0 %v262
  %271 = vmatprep.subr.bf16.mxu0 0
  %272 = vmatpush1.bf16.xpose.msra.mxu0 %v265
  %273 = vmatprep.subr.bf16.mxu0 0
  %274 = vmatpush1.bf16.xpose.msra.mxu0 0
  %275 = vmatprep.subr.bf16.mxu0 0
  %276 = vmatpush1.bf16.xpose.msra.mxu0 0
  %277 = vmatprep.subr.bf16.mxu0 0
  %278 = vmatpush1.bf16.xpose.msra.mxu0 0
  %279 = vmatprep.subr.bf16.mxu0 0
  %280 = vmatpush1.bf16.xpose.msra.mxu0 0
  %281 = vmatprep.subr.bf16.mxu0 0
  %282 = vmatpush1.bf16.xpose.msra.mxu0 0
  %283 = vmatprep.subr.bf16.mxu0 0
  %284 = vmatpush1.bf16.xpose.msra.mxu0 0
  %285 = vmatprep.subr.bf16.mxu0 0
  %286 = vmatpush1.bf16.xpose.msra.mxu0 0
  %287 = vmatprep.subr.bf16.mxu0 0
  %288 = vmatpush1.bf16.xpose.msra.mxu0 0
  %289 = vmatprep.subr.bf16.mxu0 0
  %290 = vmatpush1.bf16.xpose.msra.mxu0 0
  %291 = vmatprep.subr.bf16.mxu0 0
  %292 = vmatpush1.bf16.xpose.msra.mxu0 0
  %293 = vmatprep.subr.bf16.mxu0 0
  %294 = vmatpush1.bf16.xpose.msra.mxu0 0
  %295 = vmatprep.subr.bf16.mxu0 0
  %296 = vmatpush1.bf16.xpose.msra.mxu0 0
  %297 = vmatprep.subr.bf16.mxu0 0
  %298 = vmatpush1.bf16.xpose.msra.mxu0 0
  %299 = vmatprep.mubr.bf16.mxu0 0
  %300 = vmatmul.mubr.bf16.gmra.mrb[0].mxu0 %v250
  %v301 = vpop.f32.mrb[0].mxu0
  %v302 = vadd.f32 %v139, %v301
  %v303 = vpop.f32.mrb[0].mxu0
  %v304 = vpop.f32.mrb[0].mxu0
  %v305 = vadd.f32 %v140, %v304
  %v306 = vpop.f32.mrb[0].mxu0
  %307 = vmatprep.mubr.bf16.mxu0 0
  %308 = vmatmul.mubr.bf16.gmra.mrb[0].mxu0 %v253
  %v309 = vpop.f32.mrb[0].mxu0
  %v310 = vadd.f32 %v141, %v309
  %v311 = vpop.f32.mrb[0].mxu0
  %v312 = vpop.f32.mrb[0].mxu0
  %v313 = vadd.f32 %v142, %v312
  %v314 = vpop.f32.mrb[0].mxu0
  %315 = vmatprep.mubr.bf16.mxu0 0
  %316 = vmatmul.mubr.bf16.gmra.mrb[0].mxu0 %v256
  %v317 = vpop.f32.mrb[0].mxu0
  %v318 = vadd.f32 %v143, %v317
  %v319 = vpop.f32.mrb[0].mxu0
  %v320 = vpop.f32.mrb[0].mxu0
  %v321 = vadd.f32 %v144, %v320
  %v322 = vpop.f32.mrb[0].mxu0
  %323 = vdwg.mxu0
  %v324 = vsel %vm72, %v302, -inf
  %325 = vmax.xlane.f32.xlu0 %v324
  %v326 = vpop.xlane.xlu0 %325
  %v327 = vsel %vm72, %v305, -inf
  %328 = vmax.xlane.f32.xlu0 %v327
  %v329 = vpop.xlane.xlu0 %328
  %v330 = vsel %vm72, %v310, -inf
  %331 = vmax.xlane.f32.xlu0 %v330
  %v332 = vpop.xlane.xlu0 %331
  %v333 = vsel %vm72, %v313, -inf
  %334 = vmax.xlane.f32.xlu0 %v333
  %v335 = vpop.xlane.xlu0 %334
  %v336 = vsel %vm72, %v318, -inf
  %337 = vmax.xlane.f32.xlu0 %v336
  %v338 = vpop.xlane.xlu0 %337
  %v339 = vsel %vm72, %v321, -inf
  %340 = vmax.xlane.f32.xlu0 %v339
  %v341 = vpop.xlane.xlu0 %340
  %v342 = vsub.f32 %v302, %v326
  %v343 = vsub.f32 %v305, %v329
  %v344 = vsub.f32 %v310, %v332
  %v345 = vsub.f32 %v313, %v335
  %v346 = vsub.f32 %v318, %v338
  %v347 = vsub.f32 %v321, %v341
  %v348 = vmul.f32 %v342, 1.442695
  %v349 = vpow.pop %v348
  %v350 = vmul.f32 %v343, 1.442695
  %v351 = vpow.pop %v350
  %v352 = vmul.f32 %v344, 1.442695
  %v353 = vpow.pop %v352
  %v354 = vmul.f32 %v345, 1.442695
  %v355 = vpow.pop %v354
  %v356 = vmul.f32 %v346, 1.442695
  %v357 = vpow.pop %v356
  %v358 = vmul.f32 %v347, 1.442695
  %v359 = vpow.pop %v358
  %v360 = vsel %vm72, %v349, 0.0
  %361 = vadd.xlane.f32.xlu0 %v360
  %v362 = vpop.xlane.xlu0 %361
  %v363 = vsel %vm72, %v351, 0.0
  %364 = vadd.xlane.f32.xlu0 %v363
  %v365 = vpop.xlane.xlu0 %364
  %v366 = vsel %vm72, %v353, 0.0
  %367 = vadd.xlane.f32.xlu0 %v366
  %v368 = vpop.xlane.xlu0 %367
  %v369 = vsel %vm72, %v355, 0.0
  %370 = vadd.xlane.f32.xlu0 %v369
  %v371 = vpop.xlane.xlu0 %370
  %v372 = vsel %vm72, %v357, 0.0
  %373 = vadd.xlane.f32.xlu0 %v372
  %v374 = vpop.xlane.xlu0 %373
  %v375 = vsel %vm72, %v359, 0.0
  %376 = vadd.xlane.f32.xlu0 %v375
  %v377 = vpop.xlane.xlu0 %376
  %v378 = vrcp.pop %v362
  %v379 = vrcp.pop %v365
  %v380 = vrcp.pop %v368
  %v381 = vrcp.pop %v371
  %v382 = vrcp.pop %v374
  %v383 = vrcp.pop %v377
  %v384 = vmul.f32 %v349, %v378
  %v385 = vmul.f32 %v351, %v379
  %v386 = vmul.f32 %v353, %v380
  %v387 = vmul.f32 %v355, %v381
  %v388 = vmul.f32 %v357, %v382
  %v389 = vmul.f32 %v359, %v383
  %v390 = vpack.c.bf16 %v385, %v384
  %v391 = vpack.c.bf16 %v387, %v386
  %v392 = vpack.c.bf16 %v389, %v388
  %393 = vrot.lane.b32.xlu0 %v236, 64
  %v394 = vpop.permute.xlu0 %393
  %395 = vrot.lane.b32.xlu0 %v237, 64
  %v396 = vpop.permute.xlu0 %395
  %397 = vrot.lane.b32.xlu0 %v238, 64
  %v398 = vpop.permute.xlu0 %397
  %v403 = vsel %vm72, %v390, 0
  %v406 = vsel %vm72, %v391, 0
  %v409 = vsel %vm72, %v392, 0
  %411 = vmatprep.subr.bf16.mxu0 0
  %412 = vmatpush1.bf16.msra.mxu0 %v394
  %413 = vmatprep.subr.bf16.mxu0 0
  %414 = vmatpush1.bf16.msra.mxu0 %v396
  %415 = vmatprep.subr.bf16.mxu0 0
  %416 = vmatpush1.bf16.msra.mxu0 %v398
  %417 = vmatprep.subr.bf16.mxu0 0
  %418 = vmatpush1.bf16.msra.mxu0 0
  %419 = vmatprep.subr.bf16.mxu0 0
  %420 = vmatpush1.bf16.msra.mxu0 0
  %421 = vmatprep.subr.bf16.mxu0 0
  %422 = vmatpush1.bf16.msra.mxu0 0
  %423 = vmatprep.subr.bf16.mxu0 0
  %424 = vmatpush1.bf16.msra.mxu0 0
  %425 = vmatprep.subr.bf16.mxu0 0
  %426 = vmatpush1.bf16.msra.mxu0 0
  %427 = vmatprep.subr.bf16.mxu0 0
  %428 = vmatpush1.bf16.msra.mxu0 0
  %429 = vmatprep.subr.bf16.mxu0 0
  %430 = vmatpush1.bf16.msra.mxu0 0
  %431 = vmatprep.subr.bf16.mxu0 0
  %432 = vmatpush1.bf16.msra.mxu0 0
  %433 = vmatprep.subr.bf16.mxu0 0
  %434 = vmatpush1.bf16.msra.mxu0 0
  %435 = vmatprep.subr.bf16.mxu0 0
  %436 = vmatpush1.bf16.msra.mxu0 0
  %437 = vmatprep.subr.bf16.mxu0 0
  %438 = vmatpush1.bf16.msra.mxu0 0
  %439 = vmatprep.subr.bf16.mxu0 0
  %440 = vmatpush1.bf16.msra.mxu0 0
  %441 = vmatprep.subr.bf16.mxu0 0
  %442 = vmatpush1.bf16.msra.mxu0 0
  %443 = vmatprep.mubr.bf16.mxu0 0
  %444 = vmatmul.mubr.bf16.gmra.mrb[0].mxu0 %v403
  %v445 = vpop.f32.mrb[0].mxu0
  %v446 = vadd.f32 0.0, %v445
  %v447 = vpop.f32.mrb[0].mxu0
  %v448 = vpop.f32.mrb[0].mxu0
  %v449 = vadd.f32 0.0, %v448
  %v450 = vpop.f32.mrb[0].mxu0
  %451 = vmatprep.mubr.bf16.mxu0 0
  %452 = vmatmul.mubr.bf16.gmra.mrb[0].mxu0 %v406
  %v453 = vpop.f32.mrb[0].mxu0
  %v454 = vadd.f32 0.0, %v453
  %v455 = vpop.f32.mrb[0].mxu0
  %v456 = vpop.f32.mrb[0].mxu0
  %v457 = vadd.f32 0.0, %v456
  %v458 = vpop.f32.mrb[0].mxu0
  %459 = vmatprep.mubr.bf16.mxu0 0
  %460 = vmatmul.mubr.bf16.gmra.mrb[0].mxu0 %v409
  %v461 = vpop.f32.mrb[0].mxu0
  %v462 = vadd.f32 0.0, %v461
  %v463 = vpop.f32.mrb[0].mxu0
  %v464 = vpop.f32.mrb[0].mxu0
  %v465 = vadd.f32 0.0, %v464
  %v466 = vpop.f32.mrb[0].mxu0
  %467 = vdwg.mxu0
  %468 = vrot.lane.b32.xlu0 %v236, 120
  %v469 = vpop.permute.xlu0 %468
  %470 = vrot.lane.b32.xlu0 %v237, 120
  %v471 = vpop.permute.xlu0 %470
  %472 = vrot.lane.b32.xlu0 %v238, 120
  %v473 = vpop.permute.xlu0 %472
  %474 = vrot.lane.b32.xlu0 %v236, 88
  %v475 = vpop.permute.xlu0 %474
  %476 = vrot.lane.b32.xlu0 %v237, 88
  %v477 = vpop.permute.xlu0 %476
  %478 = vrot.lane.b32.xlu0 %v238, 88
  %v479 = vpop.permute.xlu0 %478
  %v481 = vsel %vm248, %v469, 0
  %v484 = vsel %vm248, %v471, 0
  %v487 = vsel %vm248, %v473, 0
  %v490 = vsel %vm248, %v475, 0
  %v493 = vsel %vm248, %v477, 0
  %v496 = vsel %vm248, %v479, 0
  %498 = vmatprep.subr.bf16.mxu0 0
  %499 = vmatpush1.bf16.xpose.msra.mxu0 %v490
  %500 = vmatprep.subr.bf16.mxu0 0
  %501 = vmatpush1.bf16.xpose.msra.mxu0 %v493
  %502 = vmatprep.subr.bf16.mxu0 0
  %503 = vmatpush1.bf16.xpose.msra.mxu0 %v496
  %504 = vmatprep.subr.bf16.mxu0 0
  %505 = vmatpush1.bf16.xpose.msra.mxu0 0
  %506 = vmatprep.subr.bf16.mxu0 0
  %507 = vmatpush1.bf16.xpose.msra.mxu0 0
  %508 = vmatprep.subr.bf16.mxu0 0
  %509 = vmatpush1.bf16.xpose.msra.mxu0 0
  %510 = vmatprep.subr.bf16.mxu0 0
  %511 = vmatpush1.bf16.xpose.msra.mxu0 0
  %512 = vmatprep.subr.bf16.mxu0 0
  %513 = vmatpush1.bf16.xpose.msra.mxu0 0
  %514 = vmatprep.subr.bf16.mxu0 0
  %515 = vmatpush1.bf16.xpose.msra.mxu0 0
  %516 = vmatprep.subr.bf16.mxu0 0
  %517 = vmatpush1.bf16.xpose.msra.mxu0 0
  %518 = vmatprep.subr.bf16.mxu0 0
  %519 = vmatpush1.bf16.xpose.msra.mxu0 0
  %520 = vmatprep.subr.bf16.mxu0 0
  %521 = vmatpush1.bf16.xpose.msra.mxu0 0
  %522 = vmatprep.subr.bf16.mxu0 0
  %523 = vmatpush1.bf16.xpose.msra.mxu0 0
  %524 = vmatprep.subr.bf16.mxu0 0
  %525 = vmatpush1.bf16.xpose.msra.mxu0 0
  %526 = vmatprep.subr.bf16.mxu0 0
  %527 = vmatpush1.bf16.xpose.msra.mxu0 0
  %528 = vmatprep.subr.bf16.mxu0 0
  %529 = vmatpush1.bf16.xpose.msra.mxu0 0
  %530 = vmatprep.mubr.bf16.mxu0 0
  %531 = vmatmul.mubr.bf16.gmra.mrb[0].mxu0 %v481
  %v532 = vpop.f32.mrb[0].mxu0
  %v533 = vadd.f32 %v139, %v532
  %v534 = vpop.f32.mrb[0].mxu0
  %v535 = vpop.f32.mrb[0].mxu0
  %v536 = vadd.f32 %v140, %v535
  %v537 = vpop.f32.mrb[0].mxu0
  %538 = vmatprep.mubr.bf16.mxu0 0
  %539 = vmatmul.mubr.bf16.gmra.mrb[0].mxu0 %v484
  %v540 = vpop.f32.mrb[0].mxu0
  %v541 = vadd.f32 %v141, %v540
  %v542 = vpop.f32.mrb[0].mxu0
  %v543 = vpop.f32.mrb[0].mxu0
  %v544 = vadd.f32 %v142, %v543
  %v545 = vpop.f32.mrb[0].mxu0
  %546 = vmatprep.mubr.bf16.mxu0 0
  %547 = vmatmul.mubr.bf16.gmra.mrb[0].mxu0 %v487
  %v548 = vpop.f32.mrb[0].mxu0
  %v549 = vadd.f32 %v143, %v548
  %v550 = vpop.f32.mrb[0].mxu0
  %v551 = vpop.f32.mrb[0].mxu0
  %v552 = vadd.f32 %v144, %v551
  %v553 = vpop.f32.mrb[0].mxu0
  %554 = vdwg.mxu0
  %v555 = vsel %vm72, %v533, -inf
  %556 = vmax.xlane.f32.xlu0 %v555
  %v557 = vpop.xlane.xlu0 %556
  %v558 = vsel %vm72, %v536, -inf
  %559 = vmax.xlane.f32.xlu0 %v558
  %v560 = vpop.xlane.xlu0 %559
  %v561 = vsel %vm72, %v541, -inf
  %562 = vmax.xlane.f32.xlu0 %v561
  %v563 = vpop.xlane.xlu0 %562
  %v564 = vsel %vm72, %v544, -inf
  %565 = vmax.xlane.f32.xlu0 %v564
  %v566 = vpop.xlane.xlu0 %565
  %v567 = vsel %vm72, %v549, -inf
  %568 = vmax.xlane.f32.xlu0 %v567
  %v569 = vpop.xlane.xlu0 %568
  %v570 = vsel %vm72, %v552, -inf
  %571 = vmax.xlane.f32.xlu0 %v570
  %v572 = vpop.xlane.xlu0 %571
  %v573 = vsub.f32 %v533, %v557
  %v574 = vsub.f32 %v536, %v560
  %v575 = vsub.f32 %v541, %v563
  %v576 = vsub.f32 %v544, %v566
  %v577 = vsub.f32 %v549, %v569
  %v578 = vsub.f32 %v552, %v572
  %v579 = vmul.f32 %v573, 1.442695
  %v580 = vpow.pop %v579
  %v581 = vmul.f32 %v574, 1.442695
  %v582 = vpow.pop %v581
  %v583 = vmul.f32 %v575, 1.442695
  %v584 = vpow.pop %v583
  %v585 = vmul.f32 %v576, 1.442695
  %v586 = vpow.pop %v585
  %v587 = vmul.f32 %v577, 1.442695
  %v588 = vpow.pop %v587
  %v589 = vmul.f32 %v578, 1.442695
  %v590 = vpow.pop %v589
  %v591 = vsel %vm72, %v580, 0.0
  %592 = vadd.xlane.f32.xlu0 %v591
  %v593 = vpop.xlane.xlu0 %592
  %v594 = vsel %vm72, %v582, 0.0
  %595 = vadd.xlane.f32.xlu0 %v594
  %v596 = vpop.xlane.xlu0 %595
  %v597 = vsel %vm72, %v584, 0.0
  %598 = vadd.xlane.f32.xlu0 %v597
  %v599 = vpop.xlane.xlu0 %598
  %v600 = vsel %vm72, %v586, 0.0
  %601 = vadd.xlane.f32.xlu0 %v600
  %v602 = vpop.xlane.xlu0 %601
  %v603 = vsel %vm72, %v588, 0.0
  %604 = vadd.xlane.f32.xlu0 %v603
  %v605 = vpop.xlane.xlu0 %604
  %v606 = vsel %vm72, %v590, 0.0
  %607 = vadd.xlane.f32.xlu0 %v606
  %v608 = vpop.xlane.xlu0 %607
  %v609 = vrcp.pop %v593
  %v610 = vrcp.pop %v596
  %v611 = vrcp.pop %v599
  %v612 = vrcp.pop %v602
  %v613 = vrcp.pop %v605
  %v614 = vrcp.pop %v608
  %v615 = vmul.f32 %v580, %v609
  %v616 = vmul.f32 %v582, %v610
  %v617 = vmul.f32 %v584, %v611
  %v618 = vmul.f32 %v586, %v612
  %v619 = vmul.f32 %v588, %v613
  %v620 = vmul.f32 %v590, %v614
  %v621 = vpack.c.bf16 %v616, %v615
  %v622 = vpack.c.bf16 %v618, %v617
  %v623 = vpack.c.bf16 %v620, %v619
  %624 = vrot.lane.b32.xlu0 %v236, 56
  %v625 = vpop.permute.xlu0 %624
  %626 = vrot.lane.b32.xlu0 %v237, 56
  %v627 = vpop.permute.xlu0 %626
  %628 = vrot.lane.b32.xlu0 %v238, 56
  %v629 = vpop.permute.xlu0 %628
  %v634 = vsel %vm72, %v621, 0
  %v637 = vsel %vm72, %v622, 0
  %v640 = vsel %vm72, %v623, 0
  %642 = vmatprep.subr.bf16.mxu0 0
  %643 = vmatpush1.bf16.msra.mxu0 %v625
  %644 = vmatprep.subr.bf16.mxu0 0
  %645 = vmatpush1.bf16.msra.mxu0 %v627
  %646 = vmatprep.subr.bf16.mxu0 0
  %647 = vmatpush1.bf16.msra.mxu0 %v629
  %648 = vmatprep.subr.bf16.mxu0 0
  %649 = vmatpush1.bf16.msra.mxu0 0
  %650 = vmatprep.subr.bf16.mxu0 0
  %651 = vmatpush1.bf16.msra.mxu0 0
  %652 = vmatprep.subr.bf16.mxu0 0
  %653 = vmatpush1.bf16.msra.mxu0 0
  %654 = vmatprep.subr.bf16.mxu0 0
  %655 = vmatpush1.bf16.msra.mxu0 0
  %656 = vmatprep.subr.bf16.mxu0 0
  %657 = vmatpush1.bf16.msra.mxu0 0
  %658 = vmatprep.subr.bf16.mxu0 0
  %659 = vmatpush1.bf16.msra.mxu0 0
  %660 = vmatprep.subr.bf16.mxu0 0
  %661 = vmatpush1.bf16.msra.mxu0 0
  %662 = vmatprep.subr.bf16.mxu0 0
  %663 = vmatpush1.bf16.msra.mxu0 0
  %664 = vmatprep.subr.bf16.mxu0 0
  %665 = vmatpush1.bf16.msra.mxu0 0
  %666 = vmatprep.subr.bf16.mxu0 0
  %667 = vmatpush1.bf16.msra.mxu0 0
  %668 = vmatprep.subr.bf16.mxu0 0
  %669 = vmatpush1.bf16.msra.mxu0 0
  %670 = vmatprep.subr.bf16.mxu0 0
  %671 = vmatpush1.bf16.msra.mxu0 0
  %672 = vmatprep.subr.bf16.mxu0 0
  %673 = vmatpush1.bf16.msra.mxu0 0
  %674 = vmatprep.mubr.bf16.mxu0 0
  %675 = vmatmul.mubr.bf16.gmra.mrb[0].mxu0 %v634
  %v676 = vpop.f32.mrb[0].mxu0
  %v677 = vadd.f32 0.0, %v676
  %v678 = vpop.f32.mrb[0].mxu0
  %v679 = vpop.f32.mrb[0].mxu0
  %v680 = vadd.f32 0.0, %v679
  %v681 = vpop.f32.mrb[0].mxu0
  %682 = vmatprep.mubr.bf16.mxu0 0
  %683 = vmatmul.mubr.bf16.gmra.mrb[0].mxu0 %v637
  %v684 = vpop.f32.mrb[0].mxu0
  %v685 = vadd.f32 0.0, %v684
  %v686 = vpop.f32.mrb[0].mxu0
  %v687 = vpop.f32.mrb[0].mxu0
  %v688 = vadd.f32 0.0, %v687
  %v689 = vpop.f32.mrb[0].mxu0
  %690 = vmatprep.mubr.bf16.mxu0 0
  %691 = vmatmul.mubr.bf16.gmra.mrb[0].mxu0 %v640
  %v692 = vpop.f32.mrb[0].mxu0
  %v693 = vadd.f32 0.0, %v692
  %v694 = vpop.f32.mrb[0].mxu0
  %v695 = vpop.f32.mrb[0].mxu0
  %v696 = vadd.f32 0.0, %v695
  %v697 = vpop.f32.mrb[0].mxu0
  %698 = vdwg.mxu0
  %699 = vrot.lane.b32.xlu0 %v236, 112
  %v700 = vpop.permute.xlu0 %699
  %701 = vrot.lane.b32.xlu0 %v237, 112
  %v702 = vpop.permute.xlu0 %701
  %703 = vrot.lane.b32.xlu0 %v238, 112
  %v704 = vpop.permute.xlu0 %703
  %705 = vrot.lane.b32.xlu0 %v236, 80
  %v706 = vpop.permute.xlu0 %705
  %707 = vrot.lane.b32.xlu0 %v237, 80
  %v708 = vpop.permute.xlu0 %707
  %709 = vrot.lane.b32.xlu0 %v238, 80
  %v710 = vpop.permute.xlu0 %709
  %v712 = vsel %vm248, %v700, 0
  %v715 = vsel %vm248, %v702, 0
  %v718 = vsel %vm248, %v704, 0
  %v721 = vsel %vm248, %v706, 0
  %v724 = vsel %vm248, %v708, 0
  %v727 = vsel %vm248, %v710, 0
  %729 = vmatprep.subr.bf16.mxu0 0
  %730 = vmatpush1.bf16.xpose.msra.mxu0 %v721
  %731 = vmatprep.subr.bf16.mxu0 0
  %732 = vmatpush1.bf16.xpose.msra.mxu0 %v724
  %733 = vmatprep.subr.bf16.mxu0 0
  %734 = vmatpush1.bf16.xpose.msra.mxu0 %v727
  %735 = vmatprep.subr.bf16.mxu0 0
  %736 = vmatpush1.bf16.xpose.msra.mxu0 0
  %737 = vmatprep.subr.bf16.mxu0 0
  %738 = vmatpush1.bf16.xpose.msra.mxu0 0
  %739 = vmatprep.subr.bf16.mxu0 0
  %740 = vmatpush1.bf16.xpose.msra.mxu0 0
  %741 = vmatprep.subr.bf16.mxu0 0
  %742 = vmatpush1.bf16.xpose.msra.mxu0 0
  %743 = vmatprep.subr.bf16.mxu0 0
  %744 = vmatpush1.bf16.xpose.msra.mxu0 0
  %745 = vmatprep.subr.bf16.mxu0 0
  %746 = vmatpush1.bf16.xpose.msra.mxu0 0
  %747 = vmatprep.subr.bf16.mxu0 0
  %748 = vmatpush1.bf16.xpose.msra.mxu0 0
  %749 = vmatprep.subr.bf16.mxu0 0
  %750 = vmatpush1.bf16.xpose.msra.mxu0 0
  %751 = vmatprep.subr.bf16.mxu0 0
  %752 = vmatpush1.bf16.xpose.msra.mxu0 0
  %753 = vmatprep.subr.bf16.mxu0 0
  %754 = vmatpush1.bf16.xpose.msra.mxu0 0
  %755 = vmatprep.subr.bf16.mxu0 0
  %756 = vmatpush1.bf16.xpose.msra.mxu0 0
  %757 = vmatprep.subr.bf16.mxu0 0
  %758 = vmatpush1.bf16.xpose.msra.mxu0 0
  %759 = vmatprep.subr.bf16.mxu0 0
  %760 = vmatpush1.bf16.xpose.msra.mxu0 0
  %761 = vmatprep.mubr.bf16.mxu0 0
  %762 = vmatmul.mubr.bf16.gmra.mrb[0].mxu0 %v712
  %v763 = vpop.f32.mrb[0].mxu0
  %v764 = vadd.f32 %v139, %v763
  %v765 = vpop.f32.mrb[0].mxu0
  %v766 = vpop.f32.mrb[0].mxu0
  %v767 = vadd.f32 %v140, %v766
  %v768 = vpop.f32.mrb[0].mxu0
  %769 = vmatprep.mubr.bf16.mxu0 0
  %770 = vmatmul.mubr.bf16.gmra.mrb[0].mxu0 %v715
  %v771 = vpop.f32.mrb[0].mxu0
  %v772 = vadd.f32 %v141, %v771
  %v773 = vpop.f32.mrb[0].mxu0
  %v774 = vpop.f32.mrb[0].mxu0
  %v775 = vadd.f32 %v142, %v774
  %v776 = vpop.f32.mrb[0].mxu0
  %777 = vmatprep.mubr.bf16.mxu0 0
  %778 = vmatmul.mubr.bf16.gmra.mrb[0].mxu0 %v718
  %v779 = vpop.f32.mrb[0].mxu0
  %v780 = vadd.f32 %v143, %v779
  %v781 = vpop.f32.mrb[0].mxu0
  %v782 = vpop.f32.mrb[0].mxu0
  %v783 = vadd.f32 %v144, %v782
  %v784 = vpop.f32.mrb[0].mxu0
  %785 = vdwg.mxu0
  %v786 = vsel %vm72, %v764, -inf
  %787 = vmax.xlane.f32.xlu0 %v786
  %v788 = vpop.xlane.xlu0 %787
  %v789 = vsel %vm72, %v767, -inf
  %790 = vmax.xlane.f32.xlu0 %v789
  %v791 = vpop.xlane.xlu0 %790
  %v792 = vsel %vm72, %v772, -inf
  %793 = vmax.xlane.f32.xlu0 %v792
  %v794 = vpop.xlane.xlu0 %793
  %v795 = vsel %vm72, %v775, -inf
  %796 = vmax.xlane.f32.xlu0 %v795
  %v797 = vpop.xlane.xlu0 %796
  %v798 = vsel %vm72, %v780, -inf
  %799 = vmax.xlane.f32.xlu0 %v798
  %v800 = vpop.xlane.xlu0 %799
  %v801 = vsel %vm72, %v783, -inf
  %802 = vmax.xlane.f32.xlu0 %v801
  %v803 = vpop.xlane.xlu0 %802
  %v804 = vsub.f32 %v764, %v788
  %v805 = vsub.f32 %v767, %v791
  %v806 = vsub.f32 %v772, %v794
  %v807 = vsub.f32 %v775, %v797
  %v808 = vsub.f32 %v780, %v800
  %v809 = vsub.f32 %v783, %v803
  %v810 = vmul.f32 %v804, 1.442695
  %v811 = vpow.pop %v810
  %v812 = vmul.f32 %v805, 1.442695
  %v813 = vpow.pop %v812
  %v814 = vmul.f32 %v806, 1.442695
  %v815 = vpow.pop %v814
  %v816 = vmul.f32 %v807, 1.442695
  %v817 = vpow.pop %v816
  %v818 = vmul.f32 %v808, 1.442695
  %v819 = vpow.pop %v818
  %v820 = vmul.f32 %v809, 1.442695
  %v821 = vpow.pop %v820
  %v822 = vsel %vm72, %v811, 0.0
  %823 = vadd.xlane.f32.xlu0 %v822
  %v824 = vpop.xlane.xlu0 %823
  %v825 = vsel %vm72, %v813, 0.0
  %826 = vadd.xlane.f32.xlu0 %v825
  %v827 = vpop.xlane.xlu0 %826
  %v828 = vsel %vm72, %v815, 0.0
  %829 = vadd.xlane.f32.xlu0 %v828
  %v830 = vpop.xlane.xlu0 %829
  %v831 = vsel %vm72, %v817, 0.0
  %832 = vadd.xlane.f32.xlu0 %v831
  %v833 = vpop.xlane.xlu0 %832
  %v834 = vsel %vm72, %v819, 0.0
  %835 = vadd.xlane.f32.xlu0 %v834
  %v836 = vpop.xlane.xlu0 %835
  %v837 = vsel %vm72, %v821, 0.0
  %838 = vadd.xlane.f32.xlu0 %v837
  %v839 = vpop.xlane.xlu0 %838
  %v840 = vrcp.pop %v824
  %v841 = vrcp.pop %v827
  %v842 = vrcp.pop %v830
  %v843 = vrcp.pop %v833
  %v844 = vrcp.pop %v836
  %v845 = vrcp.pop %v839
  %v846 = vmul.f32 %v811, %v840
  %v847 = vmul.f32 %v813, %v841
  %v848 = vmul.f32 %v815, %v842
  %v849 = vmul.f32 %v817, %v843
  %v850 = vmul.f32 %v819, %v844
  %v851 = vmul.f32 %v821, %v845
  %v852 = vpack.c.bf16 %v847, %v846
  %v853 = vpack.c.bf16 %v849, %v848
  %v854 = vpack.c.bf16 %v851, %v850
  %855 = vrot.lane.b32.xlu0 %v236, 48
  %v856 = vpop.permute.xlu0 %855
  %857 = vrot.lane.b32.xlu0 %v237, 48
  %v858 = vpop.permute.xlu0 %857
  %859 = vrot.lane.b32.xlu0 %v238, 48
  %v860 = vpop.permute.xlu0 %859
  %v865 = vsel %vm72, %v852, 0
  %v868 = vsel %vm72, %v853, 0
  %v871 = vsel %vm72, %v854, 0
  %873 = vmatprep.subr.bf16.mxu0 0
  %874 = vmatpush1.bf16.msra.mxu0 %v856
  %875 = vmatprep.subr.bf16.mxu0 0
  %876 = vmatpush1.bf16.msra.mxu0 %v858
  %877 = vmatprep.subr.bf16.mxu0 0
  %878 = vmatpush1.bf16.msra.mxu0 %v860
  %879 = vmatprep.subr.bf16.mxu0 0
  %880 = vmatpush1.bf16.msra.mxu0 0
  %881 = vmatprep.subr.bf16.mxu0 0
  %882 = vmatpush1.bf16.msra.mxu0 0
  %883 = vmatprep.subr.bf16.mxu0 0
  %884 = vmatpush1.bf16.msra.mxu0 0
  %885 = vmatprep.subr.bf16.mxu0 0
  %886 = vmatpush1.bf16.msra.mxu0 0
  %887 = vmatprep.subr.bf16.mxu0 0
  %888 = vmatpush1.bf16.msra.mxu0 0
  %889 = vmatprep.subr.bf16.mxu0 0
  %890 = vmatpush1.bf16.msra.mxu0 0
  %891 = vmatprep.subr.bf16.mxu0 0
  %892 = vmatpush1.bf16.msra.mxu0 0
  %893 = vmatprep.subr.bf16.mxu0 0
  %894 = vmatpush1.bf16.msra.mxu0 0
  %895 = vmatprep.subr.bf16.mxu0 0
  %896 = vmatpush1.bf16.msra.mxu0 0
  %897 = vmatprep.subr.bf16.mxu0 0
  %898 = vmatpush1.bf16.msra.mxu0 0
  %899 = vmatprep.subr.bf16.mxu0 0
  %900 = vmatpush1.bf16.msra.mxu0 0
  %901 = vmatprep.subr.bf16.mxu0 0
  %902 = vmatpush1.bf16.msra.mxu0 0
  %903 = vmatprep.subr.bf16.mxu0 0
  %904 = vmatpush1.bf16.msra.mxu0 0
  %905 = vmatprep.mubr.bf16.mxu0 0
  %906 = vmatmul.mubr.bf16.gmra.mrb[0].mxu0 %v865
  %v907 = vpop.f32.mrb[0].mxu0
  %v908 = vadd.f32 0.0, %v907
  %v909 = vpop.f32.mrb[0].mxu0
  %v910 = vpop.f32.mrb[0].mxu0
  %v911 = vadd.f32 0.0, %v910
  %v912 = vpop.f32.mrb[0].mxu0
  %913 = vmatprep.mubr.bf16.mxu0 0
  %914 = vmatmul.mubr.bf16.gmra.mrb[0].mxu0 %v868
  %v915 = vpop.f32.mrb[0].mxu0
  %v916 = vadd.f32 0.0, %v915
  %v917 = vpop.f32.mrb[0].mxu0
  %v918 = vpop.f32.mrb[0].mxu0
  %v919 = vadd.f32 0.0, %v918
  %v920 = vpop.f32.mrb[0].mxu0
  %921 = vmatprep.mubr.bf16.mxu0 0
  %922 = vmatmul.mubr.bf16.gmra.mrb[0].mxu0 %v871
  %v923 = vpop.f32.mrb[0].mxu0
  %v924 = vadd.f32 0.0, %v923
  %v925 = vpop.f32.mrb[0].mxu0
  %v926 = vpop.f32.mrb[0].mxu0
  %v927 = vadd.f32 0.0, %v926
  %v928 = vpop.f32.mrb[0].mxu0
  %929 = vdwg.mxu0
  %930 = vrot.lane.b32.xlu0 %v236, 104
  %v931 = vpop.permute.xlu0 %930
  %932 = vrot.lane.b32.xlu0 %v237, 104
  %v933 = vpop.permute.xlu0 %932
  %934 = vrot.lane.b32.xlu0 %v238, 104
  %v935 = vpop.permute.xlu0 %934
  %936 = vrot.lane.b32.xlu0 %v236, 72
  %v937 = vpop.permute.xlu0 %936
  %938 = vrot.lane.b32.xlu0 %v237, 72
  %v939 = vpop.permute.xlu0 %938
  %940 = vrot.lane.b32.xlu0 %v238, 72
  %v941 = vpop.permute.xlu0 %940
  %v943 = vsel %vm248, %v931, 0
  %v946 = vsel %vm248, %v933, 0
  %v949 = vsel %vm248, %v935, 0
  %v952 = vsel %vm248, %v937, 0
  %v955 = vsel %vm248, %v939, 0
  %v958 = vsel %vm248, %v941, 0
  %960 = vmatprep.subr.bf16.mxu0 0
  %961 = vmatpush1.bf16.xpose.msra.mxu0 %v952
  %962 = vmatprep.subr.bf16.mxu0 0
  %963 = vmatpush1.bf16.xpose.msra.mxu0 %v955
  %964 = vmatprep.subr.bf16.mxu0 0
  %965 = vmatpush1.bf16.xpose.msra.mxu0 %v958
  %966 = vmatprep.subr.bf16.mxu0 0
  %967 = vmatpush1.bf16.xpose.msra.mxu0 0
  %968 = vmatprep.subr.bf16.mxu0 0
  %969 = vmatpush1.bf16.xpose.msra.mxu0 0
  %970 = vmatprep.subr.bf16.mxu0 0
  %971 = vmatpush1.bf16.xpose.msra.mxu0 0
  %972 = vmatprep.subr.bf16.mxu0 0
  %973 = vmatpush1.bf16.xpose.msra.mxu0 0
  %974 = vmatprep.subr.bf16.mxu0 0
  %975 = vmatpush1.bf16.xpose.msra.mxu0 0
  %976 = vmatprep.subr.bf16.mxu0 0
  %977 = vmatpush1.bf16.xpose.msra.mxu0 0
  %978 = vmatprep.subr.bf16.mxu0 0
  %979 = vmatpush1.bf16.xpose.msra.mxu0 0
  %980 = vmatprep.subr.bf16.mxu0 0
  %981 = vmatpush1.bf16.xpose.msra.mxu0 0
  %982 = vmatprep.subr.bf16.mxu0 0
  %983 = vmatpush1.bf16.xpose.msra.mxu0 0
  %984 = vmatprep.subr.bf16.mxu0 0
  %985 = vmatpush1.bf16.xpose.msra.mxu0 0
  %986 = vmatprep.subr.bf16.mxu0 0
  %987 = vmatpush1.bf16.xpose.msra.mxu0 0
  %988 = vmatprep.subr.bf16.mxu0 0
  %989 = vmatpush1.bf16.xpose.msra.mxu0 0
  %990 = vmatprep.subr.bf16.mxu0 0
  %991 = vmatpush1.bf16.xpose.msra.mxu0 0
  %992 = vmatprep.mubr.bf16.mxu0 0
  %993 = vmatmul.mubr.bf16.gmra.mrb[0].mxu0 %v943
  %v994 = vpop.f32.mrb[0].mxu0
  %v995 = vadd.f32 %v139, %v994
  %v996 = vpop.f32.mrb[0].mxu0
  %v997 = vpop.f32.mrb[0].mxu0
  %v998 = vadd.f32 %v140, %v997
  %v999 = vpop.f32.mrb[0].mxu0
  %1000 = vmatprep.mubr.bf16.mxu0 0
  %1001 = vmatmul.mubr.bf16.gmra.mrb[0].mxu0 %v946
  %v1002 = vpop.f32.mrb[0].mxu0
  %v1003 = vadd.f32 %v141, %v1002
  %v1004 = vpop.f32.mrb[0].mxu0
  %v1005 = vpop.f32.mrb[0].mxu0
  %v1006 = vadd.f32 %v142, %v1005
  %v1007 = vpop.f32.mrb[0].mxu0
  %1008 = vmatprep.mubr.bf16.mxu0 0
  %1009 = vmatmul.mubr.bf16.gmra.mrb[0].mxu0 %v949
  %v1010 = vpop.f32.mrb[0].mxu0
  %v1011 = vadd.f32 %v143, %v1010
  %v1012 = vpop.f32.mrb[0].mxu0
  %v1013 = vpop.f32.mrb[0].mxu0
  %v1014 = vadd.f32 %v144, %v1013
  %v1015 = vpop.f32.mrb[0].mxu0
  %1016 = vdwg.mxu0
  %v1017 = vsel %vm72, %v995, -inf
  %1018 = vmax.xlane.f32.xlu0 %v1017
  %v1019 = vpop.xlane.xlu0 %1018
  %v1020 = vsel %vm72, %v998, -inf
  %1021 = vmax.xlane.f32.xlu0 %v1020
  %v1022 = vpop.xlane.xlu0 %1021
  %v1023 = vsel %vm72, %v1003, -inf
  %1024 = vmax.xlane.f32.xlu0 %v1023
  %v1025 = vpop.xlane.xlu0 %1024
  %v1026 = vsel %vm72, %v1006, -inf
  %1027 = vmax.xlane.f32.xlu0 %v1026
  %v1028 = vpop.xlane.xlu0 %1027
  %v1029 = vsel %vm72, %v1011, -inf
  %1030 = vmax.xlane.f32.xlu0 %v1029
  %v1031 = vpop.xlane.xlu0 %1030
  %v1032 = vsel %vm72, %v1014, -inf
  %1033 = vmax.xlane.f32.xlu0 %v1032
  %v1034 = vpop.xlane.xlu0 %1033
  %v1035 = vsub.f32 %v995, %v1019
  %v1036 = vsub.f32 %v998, %v1022
  %v1037 = vsub.f32 %v1003, %v1025
  %v1038 = vsub.f32 %v1006, %v1028
  %v1039 = vsub.f32 %v1011, %v1031
  %v1040 = vsub.f32 %v1014, %v1034
  %v1041 = vmul.f32 %v1035, 1.442695
  %v1042 = vpow.pop %v1041
  %v1043 = vmul.f32 %v1036, 1.442695
  %v1044 = vpow.pop %v1043
  %v1045 = vmul.f32 %v1037, 1.442695
  %v1046 = vpow.pop %v1045
  %v1047 = vmul.f32 %v1038, 1.442695
  %v1048 = vpow.pop %v1047
  %v1049 = vmul.f32 %v1039, 1.442695
  %v1050 = vpow.pop %v1049
  %v1051 = vmul.f32 %v1040, 1.442695
  %v1052 = vpow.pop %v1051
  %v1053 = vsel %vm72, %v1042, 0.0
  %1054 = vadd.xlane.f32.xlu0 %v1053
  %v1055 = vpop.xlane.xlu0 %1054
  %v1056 = vsel %vm72, %v1044, 0.0
  %1057 = vadd.xlane.f32.xlu0 %v1056
  %v1058 = vpop.xlane.xlu0 %1057
  %v1059 = vsel %vm72, %v1046, 0.0
  %1060 = vadd.xlane.f32.xlu0 %v1059
  %v1061 = vpop.xlane.xlu0 %1060
  %v1062 = vsel %vm72, %v1048, 0.0
  %1063 = vadd.xlane.f32.xlu0 %v1062
  %v1064 = vpop.xlane.xlu0 %1063
  %v1065 = vsel %vm72, %v1050, 0.0
  %1066 = vadd.xlane.f32.xlu0 %v1065
  %v1067 = vpop.xlane.xlu0 %1066
  %v1068 = vsel %vm72, %v1052, 0.0
  %1069 = vadd.xlane.f32.xlu0 %v1068
  %v1070 = vpop.xlane.xlu0 %1069
  %v1071 = vrcp.pop %v1055
  %v1072 = vrcp.pop %v1058
  %v1073 = vrcp.pop %v1061
  %v1074 = vrcp.pop %v1064
  %v1075 = vrcp.pop %v1067
  %v1076 = vrcp.pop %v1070
  %v1077 = vmul.f32 %v1042, %v1071
  %v1078 = vmul.f32 %v1044, %v1072
  %v1079 = vmul.f32 %v1046, %v1073
  %v1080 = vmul.f32 %v1048, %v1074
  %v1081 = vmul.f32 %v1050, %v1075
  %v1082 = vmul.f32 %v1052, %v1076
  %v1083 = vpack.c.bf16 %v1078, %v1077
  %v1084 = vpack.c.bf16 %v1080, %v1079
  %v1085 = vpack.c.bf16 %v1082, %v1081
  %1086 = vrot.lane.b32.xlu0 %v236, 40
  %v1087 = vpop.permute.xlu0 %1086
  %1088 = vrot.lane.b32.xlu0 %v237, 40
  %v1089 = vpop.permute.xlu0 %1088
  %1090 = vrot.lane.b32.xlu0 %v238, 40
  %v1091 = vpop.permute.xlu0 %1090
  %v1096 = vsel %vm72, %v1083, 0
  %v1099 = vsel %vm72, %v1084, 0
  %v1102 = vsel %vm72, %v1085, 0
  %1104 = vmatprep.subr.bf16.mxu0 0
  %1105 = vmatpush1.bf16.msra.mxu0 %v1087
  %1106 = vmatprep.subr.bf16.mxu0 0
  %1107 = vmatpush1.bf16.msra.mxu0 %v1089
  %1108 = vmatprep.subr.bf16.mxu0 0
  %1109 = vmatpush1.bf16.msra.mxu0 %v1091
  %1110 = vmatprep.subr.bf16.mxu0 0
  %1111 = vmatpush1.bf16.msra.mxu0 0
  %1112 = vmatprep.subr.bf16.mxu0 0
  %1113 = vmatpush1.bf16.msra.mxu0 0
  %1114 = vmatprep.subr.bf16.mxu0 0
  %1115 = vmatpush1.bf16.msra.mxu0 0
  %1116 = vmatprep.subr.bf16.mxu0 0
  %1117 = vmatpush1.bf16.msra.mxu0 0
  %1118 = vmatprep.subr.bf16.mxu0 0
  %1119 = vmatpush1.bf16.msra.mxu0 0
  %1120 = vmatprep.subr.bf16.mxu0 0
  %1121 = vmatpush1.bf16.msra.mxu0 0
  %1122 = vmatprep.subr.bf16.mxu0 0
  %1123 = vmatpush1.bf16.msra.mxu0 0
  %1124 = vmatprep.subr.bf16.mxu0 0
  %1125 = vmatpush1.bf16.msra.mxu0 0
  %1126 = vmatprep.subr.bf16.mxu0 0
  %1127 = vmatpush1.bf16.msra.mxu0 0
  %1128 = vmatprep.subr.bf16.mxu0 0
  %1129 = vmatpush1.bf16.msra.mxu0 0
  %1130 = vmatprep.subr.bf16.mxu0 0
  %1131 = vmatpush1.bf16.msra.mxu0 0
  %1132 = vmatprep.subr.bf16.mxu0 0
  %1133 = vmatpush1.bf16.msra.mxu0 0
  %1134 = vmatprep.subr.bf16.mxu0 0
  %1135 = vmatpush1.bf16.msra.mxu0 0
  %1136 = vmatprep.mubr.bf16.mxu0 0
  %1137 = vmatmul.mubr.bf16.gmra.mrb[0].mxu0 %v1096
  %v1138 = vpop.f32.mrb[0].mxu0
  %v1139 = vadd.f32 0.0, %v1138
  %v1140 = vpop.f32.mrb[0].mxu0
  %v1141 = vpop.f32.mrb[0].mxu0
  %v1142 = vadd.f32 0.0, %v1141
  %v1143 = vpop.f32.mrb[0].mxu0
  %1144 = vmatprep.mubr.bf16.mxu0 0
  %1145 = vmatmul.mubr.bf16.gmra.mrb[0].mxu0 %v1099
  %v1146 = vpop.f32.mrb[0].mxu0
  %v1147 = vadd.f32 0.0, %v1146
  %v1148 = vpop.f32.mrb[0].mxu0
  %v1149 = vpop.f32.mrb[0].mxu0
  %v1150 = vadd.f32 0.0, %v1149
  %v1151 = vpop.f32.mrb[0].mxu0
  %1152 = vmatprep.mubr.bf16.mxu0 0
  %1153 = vmatmul.mubr.bf16.gmra.mrb[0].mxu0 %v1102
  %v1154 = vpop.f32.mrb[0].mxu0
  %v1155 = vadd.f32 0.0, %v1154
  %v1156 = vpop.f32.mrb[0].mxu0
  %v1157 = vpop.f32.mrb[0].mxu0
  %v1158 = vadd.f32 0.0, %v1157
  %v1159 = vpop.f32.mrb[0].mxu0
  %1160 = vdwg.mxu0
  %1167 = vrot.lane.b32.xlu0 %v677, 8
  %v1168 = vpop.permute.xlu0 %1167
  %1169 = vrot.lane.b32.xlu0 %v680, 8
  %v1170 = vpop.permute.xlu0 %1169
  %1171 = vrot.lane.b32.xlu0 %v685, 8
  %v1172 = vpop.permute.xlu0 %1171
  %1173 = vrot.lane.b32.xlu0 %v688, 8
  %v1174 = vpop.permute.xlu0 %1173
  %1175 = vrot.lane.b32.xlu0 %v693, 8
  %v1176 = vpop.permute.xlu0 %1175
  %1177 = vrot.lane.b32.xlu0 %v696, 8
  %v1178 = vpop.permute.xlu0 %1177
  %1191 = vrot.lane.b32.xlu0 %v908, 16
  %v1192 = vpop.permute.xlu0 %1191
  %1193 = vrot.lane.b32.xlu0 %v911, 16
  %v1194 = vpop.permute.xlu0 %1193
  %1195 = vrot.lane.b32.xlu0 %v916, 16
  %v1196 = vpop.permute.xlu0 %1195
  %1197 = vrot.lane.b32.xlu0 %v919, 16
  %v1198 = vpop.permute.xlu0 %1197
  %1199 = vrot.lane.b32.xlu0 %v924, 16
  %v1200 = vpop.permute.xlu0 %1199
  %1201 = vrot.lane.b32.xlu0 %v927, 16
  %v1202 = vpop.permute.xlu0 %1201
  %1215 = vrot.lane.b32.xlu0 %v1139, 24
  %v1216 = vpop.permute.xlu0 %1215
  %1217 = vrot.lane.b32.xlu0 %v1142, 24
  %v1218 = vpop.permute.xlu0 %1217
  %1219 = vrot.lane.b32.xlu0 %v1147, 24
  %v1220 = vpop.permute.xlu0 %1219
  %1221 = vrot.lane.b32.xlu0 %v1150, 24
  %v1222 = vpop.permute.xlu0 %1221
  %1223 = vrot.lane.b32.xlu0 %v1155, 24
  %v1224 = vpop.permute.xlu0 %1223
  %1225 = vrot.lane.b32.xlu0 %v1158, 24
  %v1226 = vpop.permute.xlu0 %1225
  %v1233 = vsel %vm248, %v446, %v1168
  %v1234 = vsel %vm248, %v449, %v1170
  %v1235 = vsel %vm248, %v454, %v1172
  %v1236 = vsel %vm248, %v457, %v1174
  %v1237 = vsel %vm248, %v462, %v1176
  %v1238 = vsel %vm248, %v465, %v1178
  %vm1239 = vcmask 130048
  %v1240 = vsel %vm1239, %v1233, %v1192
  %v1241 = vsel %vm1239, %v1234, %v1194
  %v1242 = vsel %vm1239, %v1235, %v1196
  %v1243 = vsel %vm1239, %v1236, %v1198
  %v1244 = vsel %vm1239, %v1237, %v1200
  %v1245 = vsel %vm1239, %v1238, %v1202
  %vm1246 = vcmask 195584
  %v1247 = vsel %vm1246, %v1240, %v1216
  %v1248 = vsel %vm1246, %v1241, %v1218
  %v1249 = vsel %vm1246, %v1242, %v1220
  %v1250 = vsel %vm1246, %v1243, %v1222
  %v1251 = vsel %vm1246, %v1244, %v1224
  %v1252 = vsel %vm1246, %v1245, %v1226
  %v1253 = vpack.c.bf16 %v1248, %v1247
  %v1254 = vpack.c.bf16 %v1250, %v1249
  %v1255 = vpack.c.bf16 %v1252, %v1251
  %v1256 = vld [vmem:[%s5] sm:$0xf]
  %v1257 = vld [vmem:[%s5 + $0x4] sm:$0xf]
  %v1258 = vld [vmem:[%s5 + $0x8] sm:$0xf]
  %v1259 = vld [vmem:[%s5 + $0xc] sm:$0xf]
  %v1260 = vlaneseq
  %v1261 = vshrl.u32 %v1260, 7
  %v1262 = vsub.s32 1, %v1261
  %v1263 = vrot.slane %v145, %v1262
  %v1268 = vunpack.c.l.b16 %v1256
  %v1269 = vunpack.c.l.b16 %v1257
  %v1270 = vunpack.c.l.b16 %v1258
  %v1271 = vunpack.c.l.b16 %v1259
  %v1272 = vpack.c.b16 %v1269, %v1268
  %v1273 = vpack.c.b16 %v1271, %v1270
  %v1277 = vsel %vm169, %v1253, 0
  %v1280 = vsel %vm169, %v1254, 0
  %v1283 = vsel %vm169, %v1255, 0
  %1285 = vmatprep.subr.bf16.mxu0 0
  %1286 = vmatpush1.bf16.msra.mxu0 %v1272
  %1287 = vmatprep.subr.bf16.mxu0 0
  %1288 = vmatpush1.bf16.msra.mxu0 %v1273
  %1289 = vmatprep.subr.bf16.mxu0 0
  %1290 = vmatpush1.bf16.msra.mxu0 0
  %1291 = vmatprep.subr.bf16.mxu0 0
  %1292 = vmatpush1.bf16.msra.mxu0 0
  %1293 = vmatprep.subr.bf16.mxu0 0
  %1294 = vmatpush1.bf16.msra.mxu0 0
  %1295 = vmatprep.subr.bf16.mxu0 0
  %1296 = vmatpush1.bf16.msra.mxu0 0
  %1297 = vmatprep.subr.bf16.mxu0 0
  %1298 = vmatpush1.bf16.msra.mxu0 0
  %1299 = vmatprep.subr.bf16.mxu0 0
  %1300 = vmatpush1.bf16.msra.mxu0 0
  %1301 = vmatprep.subr.bf16.mxu0 0
  %1302 = vmatpush1.bf16.msra.mxu0 0
  %1303 = vmatprep.subr.bf16.mxu0 0
  %1304 = vmatpush1.bf16.msra.mxu0 0
  %1305 = vmatprep.subr.bf16.mxu0 0
  %1306 = vmatpush1.bf16.msra.mxu0 0
  %1307 = vmatprep.subr.bf16.mxu0 0
  %1308 = vmatpush1.bf16.msra.mxu0 0
  %1309 = vmatprep.subr.bf16.mxu0 0
  %1310 = vmatpush1.bf16.msra.mxu0 0
  %1311 = vmatprep.subr.bf16.mxu0 0
  %1312 = vmatpush1.bf16.msra.mxu0 0
  %1313 = vmatprep.subr.bf16.mxu0 0
  %1314 = vmatpush1.bf16.msra.mxu0 0
  %1315 = vmatprep.subr.bf16.mxu0 0
  %1316 = vmatpush1.bf16.msra.mxu0 0
  %1317 = vmatprep.mubr.bf16.mxu0 0
  %1318 = vmatmul.mubr.bf16.gmra.mrb[0].mxu0 %v1277
  %v1319 = vpop.f32.mrb[0].mxu0
  %v1320 = vadd.f32 %v1263, %v1319
  %v1321 = vpop.f32.mrb[0].mxu0
  %v1322 = vpop.f32.mrb[0].mxu0
  %v1323 = vadd.f32 %v1263, %v1322
  %v1324 = vpop.f32.mrb[0].mxu0
  %1325 = vmatprep.mubr.bf16.mxu0 0
  %1326 = vmatmul.mubr.bf16.gmra.mrb[0].mxu0 %v1280
  %v1327 = vpop.f32.mrb[0].mxu0
  %v1328 = vadd.f32 %v1263, %v1327
  %v1329 = vpop.f32.mrb[0].mxu0
  %v1330 = vpop.f32.mrb[0].mxu0
  %v1331 = vadd.f32 %v1263, %v1330
  %v1332 = vpop.f32.mrb[0].mxu0
  %1333 = vmatprep.mubr.bf16.mxu0 0
  %1334 = vmatmul.mubr.bf16.gmra.mrb[0].mxu0 %v1283
  %v1335 = vpop.f32.mrb[0].mxu0
  %v1336 = vadd.f32 %v1263, %v1335
  %v1337 = vpop.f32.mrb[0].mxu0
  %v1338 = vpop.f32.mrb[0].mxu0
  %v1339 = vadd.f32 %v1263, %v1338
  %v1340 = vpop.f32.mrb[0].mxu0
  %1341 = vdwg.mxu0
  %v1342 = vadd.f32 %v117, %v1320
  %v1343 = vadd.f32 %v120, %v1323
  %v1344 = vadd.f32 %v125, %v1328
  %v1345 = vadd.f32 %v128, %v1331
  %v1346 = vadd.f32 %v133, %v1336
  %v1347 = vadd.f32 %v136, %v1339
  %v1348 = vsel %vm169, %v1342, 0.0
  %1349 = vadd.xlane.f32.xlu0 %v1348
  %v1350 = vpop.xlane.xlu0 %1349
  %v1351 = vsel %vm169, %v1343, 0.0
  %1352 = vadd.xlane.f32.xlu0 %v1351
  %v1353 = vpop.xlane.xlu0 %1352
  %v1354 = vsel %vm169, %v1344, 0.0
  %1355 = vadd.xlane.f32.xlu0 %v1354
  %v1356 = vpop.xlane.xlu0 %1355
  %v1357 = vsel %vm169, %v1345, 0.0
  %1358 = vadd.xlane.f32.xlu0 %v1357
  %v1359 = vpop.xlane.xlu0 %1358
  %v1360 = vsel %vm169, %v1346, 0.0
  %1361 = vadd.xlane.f32.xlu0 %v1360
  %v1362 = vpop.xlane.xlu0 %1361
  %v1363 = vsel %vm169, %v1347, 0.0
  %1364 = vadd.xlane.f32.xlu0 %v1363
  %v1365 = vpop.xlane.xlu0 %1364
  %v1366 = vrcp.pop 32.0
  %v1367 = vmul.f32 %v1350, %v1366
  %v1368 = vmul.f32 %v1353, %v1366
  %v1369 = vmul.f32 %v1356, %v1366
  %v1370 = vmul.f32 %v1359, %v1366
  %v1371 = vmul.f32 %v1362, %v1366
  %v1372 = vmul.f32 %v1365, %v1366
  %v1373 = vsub.f32 %v1342, %v1367
  %v1374 = vsub.f32 %v1343, %v1368
  %v1375 = vsub.f32 %v1344, %v1369
  %v1376 = vsub.f32 %v1345, %v1370
  %v1377 = vsub.f32 %v1346, %v1371
  %v1378 = vsub.f32 %v1347, %v1372
  %v1379 = vmul.f32 %v1373, %v1373
  %v1380 = vmul.f32 %v1374, %v1374
  %v1381 = vmul.f32 %v1375, %v1375
  %v1382 = vmul.f32 %v1376, %v1376
  %v1383 = vmul.f32 %v1377, %v1377
  %v1384 = vmul.f32 %v1378, %v1378
  %v1385 = vsel %vm169, %v1379, 0.0
  %1386 = vadd.xlane.f32.xlu0 %v1385
  %v1387 = vpop.xlane.xlu0 %1386
  %v1388 = vsel %vm169, %v1380, 0.0
  %1389 = vadd.xlane.f32.xlu0 %v1388
  %v1390 = vpop.xlane.xlu0 %1389
  %v1391 = vsel %vm169, %v1381, 0.0
  %1392 = vadd.xlane.f32.xlu0 %v1391
  %v1393 = vpop.xlane.xlu0 %1392
  %v1394 = vsel %vm169, %v1382, 0.0
  %1395 = vadd.xlane.f32.xlu0 %v1394
  %v1396 = vpop.xlane.xlu0 %1395
  %v1397 = vsel %vm169, %v1383, 0.0
  %1398 = vadd.xlane.f32.xlu0 %v1397
  %v1399 = vpop.xlane.xlu0 %1398
  %v1400 = vsel %vm169, %v1384, 0.0
  %1401 = vadd.xlane.f32.xlu0 %v1400
  %v1402 = vpop.xlane.xlu0 %1401
  %v1403 = vmul.f32 %v1387, %v1366
  %v1404 = vmul.f32 %v1390, %v1366
  %v1405 = vmul.f32 %v1393, %v1366
  %v1406 = vmul.f32 %v1396, %v1366
  %v1407 = vmul.f32 %v1399, %v1366
  %v1408 = vmul.f32 %v1402, %v1366
  %v1409 = vadd.f32 %v1403, 1e-05
  %v1410 = vadd.f32 %v1404, 1e-05
  %v1411 = vadd.f32 %v1405, 1e-05
  %v1412 = vadd.f32 %v1406, 1e-05
  %v1413 = vadd.f32 %v1407, 1e-05
  %v1414 = vadd.f32 %v1408, 1e-05
  %v1415 = vrsqrt.pop %v1409
  %v1416 = vrsqrt.pop %v1410
  %v1417 = vrsqrt.pop %v1411
  %v1418 = vrsqrt.pop %v1412
  %v1419 = vrsqrt.pop %v1413
  %v1420 = vrsqrt.pop %v1414
  %v1421 = vmul.f32 %v1373, %v1415
  %v1422 = vmul.f32 %v1374, %v1416
  %v1423 = vmul.f32 %v1375, %v1417
  %v1424 = vmul.f32 %v1376, %v1418
  %v1425 = vmul.f32 %v1377, %v1419
  %v1426 = vmul.f32 %v1378, %v1420
  %v1427 = vlaneseq
  %v1428 = vshrl.u32 %v1427, 7
  %v1429 = vsub.s32 2, %v1428
  %v1430 = vrot.slane %v145, %v1429
  %v1431 = vmul.f32 %v1421, %v1430
  %v1432 = vmul.f32 %v1422, %v1430
  %v1433 = vmul.f32 %v1423, %v1430
  %v1434 = vmul.f32 %v1424, %v1430
  %v1435 = vmul.f32 %v1425, %v1430
  %v1436 = vmul.f32 %v1426, %v1430
  %v1437 = vlaneseq
  %v1438 = vshrl.u32 %v1437, 7
  %v1439 = vsub.s32 3, %v1438
  %v1440 = vrot.slane %v145, %v1439
  %v1441 = vadd.f32 %v1431, %v1440
  %v1442 = vadd.f32 %v1432, %v1440
  %v1443 = vadd.f32 %v1433, %v1440
  %v1444 = vadd.f32 %v1434, %v1440
  %v1445 = vadd.f32 %v1435, %v1440
  %v1446 = vadd.f32 %v1436, %v1440
  %v1447 = vpack.c.bf16 %v1442, %v1441
  %v1448 = vpack.c.bf16 %v1444, %v1443
  %v1449 = vpack.c.bf16 %v1446, %v1445
  %v1450 = vld [vmem:[%s6] sm:$0xf]
  %v1451 = vld [vmem:[%s6 + $0x4] sm:$0xf]
  %v1452 = vld [vmem:[%s6 + $0x8] sm:$0xf]
  %v1453 = vld [vmem:[%s6 + $0xc] sm:$0xf]
  %v1454 = vlaneseq
  %v1455 = vshrl.u32 %v1454, 7
  %v1456 = vsub.s32 4, %v1455
  %v1457 = vrot.slane %v145, %v1456
  %v1462 = vunpack.c.l.b16 %v1450
  %v1463 = vunpack.c.l.b16 %v1451
  %v1464 = vunpack.c.l.b16 %v1452
  %v1465 = vunpack.c.l.b16 %v1453
  %v1466 = vpack.c.b16 %v1463, %v1462
  %v1467 = vpack.c.b16 %v1465, %v1464
  %v1471 = vsel %vm169, %v1447, 0
  %v1474 = vsel %vm169, %v1448, 0
  %v1477 = vsel %vm169, %v1449, 0
  %1479 = vmatprep.subr.bf16.mxu0 0
  %1480 = vmatpush1.bf16.msra.mxu0 %v1466
  %1481 = vmatprep.subr.bf16.mxu0 0
  %1482 = vmatpush1.bf16.msra.mxu0 %v1467
  %1483 = vmatprep.subr.bf16.mxu0 0
  %1484 = vmatpush1.bf16.msra.mxu0 0
  %1485 = vmatprep.subr.bf16.mxu0 0
  %1486 = vmatpush1.bf16.msra.mxu0 0
  %1487 = vmatprep.subr.bf16.mxu0 0
  %1488 = vmatpush1.bf16.msra.mxu0 0
  %1489 = vmatprep.subr.bf16.mxu0 0
  %1490 = vmatpush1.bf16.msra.mxu0 0
  %1491 = vmatprep.subr.bf16.mxu0 0
  %1492 = vmatpush1.bf16.msra.mxu0 0
  %1493 = vmatprep.subr.bf16.mxu0 0
  %1494 = vmatpush1.bf16.msra.mxu0 0
  %1495 = vmatprep.subr.bf16.mxu0 0
  %1496 = vmatpush1.bf16.msra.mxu0 0
  %1497 = vmatprep.subr.bf16.mxu0 0
  %1498 = vmatpush1.bf16.msra.mxu0 0
  %1499 = vmatprep.subr.bf16.mxu0 0
  %1500 = vmatpush1.bf16.msra.mxu0 0
  %1501 = vmatprep.subr.bf16.mxu0 0
  %1502 = vmatpush1.bf16.msra.mxu0 0
  %1503 = vmatprep.subr.bf16.mxu0 0
  %1504 = vmatpush1.bf16.msra.mxu0 0
  %1505 = vmatprep.subr.bf16.mxu0 0
  %1506 = vmatpush1.bf16.msra.mxu0 0
  %1507 = vmatprep.subr.bf16.mxu0 0
  %1508 = vmatpush1.bf16.msra.mxu0 0
  %1509 = vmatprep.subr.bf16.mxu0 0
  %1510 = vmatpush1.bf16.msra.mxu0 0
  %1511 = vmatprep.mubr.bf16.mxu0 0
  %1512 = vmatmul.mubr.bf16.gmra.mrb[0].mxu0 %v1471
  %v1513 = vpop.f32.mrb[0].mxu0
  %v1514 = vadd.f32 %v1457, %v1513
  %v1515 = vpop.f32.mrb[0].mxu0
  %v1516 = vpop.f32.mrb[0].mxu0
  %v1517 = vadd.f32 %v1457, %v1516
  %v1518 = vpop.f32.mrb[0].mxu0
  %1519 = vmatprep.mubr.bf16.mxu0 0
  %1520 = vmatmul.mubr.bf16.gmra.mrb[0].mxu0 %v1474
  %v1521 = vpop.f32.mrb[0].mxu0
  %v1522 = vadd.f32 %v1457, %v1521
  %v1523 = vpop.f32.mrb[0].mxu0
  %v1524 = vpop.f32.mrb[0].mxu0
  %v1525 = vadd.f32 %v1457, %v1524
  %v1526 = vpop.f32.mrb[0].mxu0
  %1527 = vmatprep.mubr.bf16.mxu0 0
  %1528 = vmatmul.mubr.bf16.gmra.mrb[0].mxu0 %v1477
  %v1529 = vpop.f32.mrb[0].mxu0
  %v1530 = vadd.f32 %v1457, %v1529
  %v1531 = vpop.f32.mrb[0].mxu0
  %v1532 = vpop.f32.mrb[0].mxu0
  %v1533 = vadd.f32 %v1457, %v1532
  %v1534 = vpop.f32.mrb[0].mxu0
  %1535 = vdwg.mxu0
  %v1536 = vmax.f32 %v1514, 0.0
  %v1537 = vmax.f32 %v1517, 0.0
  %v1538 = vmax.f32 %v1522, 0.0
  %v1539 = vmax.f32 %v1525, 0.0
  %v1540 = vmax.f32 %v1530, 0.0
  %v1541 = vmax.f32 %v1533, 0.0
  %v1542 = vpack.c.bf16 %v1537, %v1536
  %v1543 = vpack.c.bf16 %v1539, %v1538
  %v1544 = vpack.c.bf16 %v1541, %v1540
  %v1545 = vld [vmem:[%s7] sm:$0xf]
  %v1546 = vld [vmem:[%s7 + $0x4] sm:$0xf]
  %v1547 = vld [vmem:[%s7 + $0x8] sm:$0xf]
  %v1548 = vld [vmem:[%s7 + $0xc] sm:$0xf]
  %v1549 = vld [vmem:[%s7 + $0x10] sm:$0xf]
  %v1550 = vld [vmem:[%s7 + $0x14] sm:$0xf]
  %v1551 = vld [vmem:[%s7 + $0x18] sm:$0xf]
  %v1552 = vld [vmem:[%s7 + $0x1c] sm:$0xf]
  %v1553 = vlaneseq
  %v1554 = vshrl.u32 %v1553, 7
  %v1555 = vsub.s32 5, %v1554
  %v1556 = vrot.slane %v145, %v1555
  %v1565 = vunpack.c.l.b16 %v1545
  %v1566 = vunpack.c.l.b16 %v1546
  %v1567 = vunpack.c.l.b16 %v1547
  %v1568 = vunpack.c.l.b16 %v1548
  %v1569 = vunpack.c.l.b16 %v1549
  %v1570 = vunpack.c.l.b16 %v1550
  %v1571 = vunpack.c.l.b16 %v1551
  %v1572 = vunpack.c.l.b16 %v1552
  %v1573 = vpack.c.b16 %v1566, %v1565
  %v1574 = vpack.c.b16 %v1568, %v1567
  %v1575 = vpack.c.b16 %v1570, %v1569
  %v1576 = vpack.c.b16 %v1572, %v1571
  %vm1581 = vcmask 523264
  %v1583 = vsel %vm1581, %v1542, 0
  %v1586 = vsel %vm1581, %v1543, 0
  %v1589 = vsel %vm1581, %v1544, 0
  %1591 = vmatprep.subr.bf16.mxu0 0
  %1592 = vmatpush1.bf16.msra.mxu0 %v1573
  %1593 = vmatprep.subr.bf16.mxu0 0
  %1594 = vmatpush1.bf16.msra.mxu0 %v1574
  %1595 = vmatprep.subr.bf16.mxu0 0
  %1596 = vmatpush1.bf16.msra.mxu0 %v1575
  %1597 = vmatprep.subr.bf16.mxu0 0
  %1598 = vmatpush1.bf16.msra.mxu0 %v1576
  %1599 = vmatprep.subr.bf16.mxu0 0
  %1600 = vmatpush1.bf16.msra.mxu0 0
  %1601 = vmatprep.subr.bf16.mxu0 0
  %1602 = vmatpush1.bf16.msra.mxu0 0
  %1603 = vmatprep.subr.bf16.mxu0 0
  %1604 = vmatpush1.bf16.msra.mxu0 0
  %1605 = vmatprep.subr.bf16.mxu0 0
  %1606 = vmatpush1.bf16.msra.mxu0 0
  %1607 = vmatprep.subr.bf16.mxu0 0
  %1608 = vmatpush1.bf16.msra.mxu0 0
  %1609 = vmatprep.subr.bf16.mxu0 0
  %1610 = vmatpush1.bf16.msra.mxu0 0
  %1611 = vmatprep.subr.bf16.mxu0 0
  %1612 = vmatpush1.bf16.msra.mxu0 0
  %1613 = vmatprep.subr.bf16.mxu0 0
  %1614 = vmatpush1.bf16.msra.mxu0 0
  %1615 = vmatprep.subr.bf16.mxu0 0
  %1616 = vmatpush1.bf16.msra.mxu0 0
  %1617 = vmatprep.subr.bf16.mxu0 0
  %1618 = vmatpush1.bf16.msra.mxu0 0
  %1619 = vmatprep.subr.bf16.mxu0 0
  %1620 = vmatpush1.bf16.msra.mxu0 0
  %1621 = vmatprep.subr.bf16.mxu0 0
  %1622 = vmatpush1.bf16.msra.mxu0 0
  %1623 = vmatprep.mubr.bf16.mxu0 0
  %1624 = vmatmul.mubr.bf16.gmra.mrb[0].mxu0 %v1583
  %v1625 = vpop.f32.mrb[0].mxu0
  %v1626 = vadd.f32 %v1556, %v1625
  %v1627 = vpop.f32.mrb[0].mxu0
  %v1628 = vpop.f32.mrb[0].mxu0
  %v1629 = vadd.f32 %v1556, %v1628
  %v1630 = vpop.f32.mrb[0].mxu0
  %1631 = vmatprep.mubr.bf16.mxu0 0
  %1632 = vmatmul.mubr.bf16.gmra.mrb[0].mxu0 %v1586
  %v1633 = vpop.f32.mrb[0].mxu0
  %v1634 = vadd.f32 %v1556, %v1633
  %v1635 = vpop.f32.mrb[0].mxu0
  %v1636 = vpop.f32.mrb[0].mxu0
  %v1637 = vadd.f32 %v1556, %v1636
  %v1638 = vpop.f32.mrb[0].mxu0
  %1639 = vmatprep.mubr.bf16.mxu0 0
  %1640 = vmatmul.mubr.bf16.gmra.mrb[0].mxu0 %v1589
  %v1641 = vpop.f32.mrb[0].mxu0
  %v1642 = vadd.f32 %v1556, %v1641
  %v1643 = vpop.f32.mrb[0].mxu0
  %v1644 = vpop.f32.mrb[0].mxu0
  %v1645 = vadd.f32 %v1556, %v1644
  %v1646 = vpop.f32.mrb[0].mxu0
  %1647 = vdwg.mxu0
  %v1648 = vadd.f32 %v1441, %v1626
  %v1649 = vadd.f32 %v1442, %v1629
  %v1650 = vadd.f32 %v1443, %v1634
  %v1651 = vadd.f32 %v1444, %v1637
  %v1652 = vadd.f32 %v1445, %v1642
  %v1653 = vadd.f32 %v1446, %v1645
  %v1654 = vsel %vm169, %v1648, 0.0
  %1655 = vadd.xlane.f32.xlu0 %v1654
  %v1656 = vpop.xlane.xlu0 %1655
  %v1657 = vsel %vm169, %v1649, 0.0
  %1658 = vadd.xlane.f32.xlu0 %v1657
  %v1659 = vpop.xlane.xlu0 %1658
  %v1660 = vsel %vm169, %v1650, 0.0
  %1661 = vadd.xlane.f32.xlu0 %v1660
  %v1662 = vpop.xlane.xlu0 %1661
  %v1663 = vsel %vm169, %v1651, 0.0
  %1664 = vadd.xlane.f32.xlu0 %v1663
  %v1665 = vpop.xlane.xlu0 %1664
  %v1666 = vsel %vm169, %v1652, 0.0
  %1667 = vadd.xlane.f32.xlu0 %v1666
  %v1668 = vpop.xlane.xlu0 %1667
  %v1669 = vsel %vm169, %v1653, 0.0
  %1670 = vadd.xlane.f32.xlu0 %v1669
  %v1671 = vpop.xlane.xlu0 %1670
  %v1672 = vmul.f32 %v1656, %v1366
  %v1673 = vmul.f32 %v1659, %v1366
  %v1674 = vmul.f32 %v1662, %v1366
  %v1675 = vmul.f32 %v1665, %v1366
  %v1676 = vmul.f32 %v1668, %v1366
  %v1677 = vmul.f32 %v1671, %v1366
  %v1678 = vsub.f32 %v1648, %v1672
  %v1679 = vsub.f32 %v1649, %v1673
  %v1680 = vsub.f32 %v1650, %v1674
  %v1681 = vsub.f32 %v1651, %v1675
  %v1682 = vsub.f32 %v1652, %v1676
  %v1683 = vsub.f32 %v1653, %v1677
  %v1684 = vmul.f32 %v1678, %v1678
  %v1685 = vmul.f32 %v1679, %v1679
  %v1686 = vmul.f32 %v1680, %v1680
  %v1687 = vmul.f32 %v1681, %v1681
  %v1688 = vmul.f32 %v1682, %v1682
  %v1689 = vmul.f32 %v1683, %v1683
  %v1690 = vsel %vm169, %v1684, 0.0
  %1691 = vadd.xlane.f32.xlu0 %v1690
  %v1692 = vpop.xlane.xlu0 %1691
  %v1693 = vsel %vm169, %v1685, 0.0
  %1694 = vadd.xlane.f32.xlu0 %v1693
  %v1695 = vpop.xlane.xlu0 %1694
  %v1696 = vsel %vm169, %v1686, 0.0
  %1697 = vadd.xlane.f32.xlu0 %v1696
  %v1698 = vpop.xlane.xlu0 %1697
  %v1699 = vsel %vm169, %v1687, 0.0
  %1700 = vadd.xlane.f32.xlu0 %v1699
  %v1701 = vpop.xlane.xlu0 %1700
  %v1702 = vsel %vm169, %v1688, 0.0
  %1703 = vadd.xlane.f32.xlu0 %v1702
  %v1704 = vpop.xlane.xlu0 %1703
  %v1705 = vsel %vm169, %v1689, 0.0
  %1706 = vadd.xlane.f32.xlu0 %v1705
  %v1707 = vpop.xlane.xlu0 %1706
  %v1708 = vmul.f32 %v1692, %v1366
  %v1709 = vmul.f32 %v1695, %v1366
  %v1710 = vmul.f32 %v1698, %v1366
  %v1711 = vmul.f32 %v1701, %v1366
  %v1712 = vmul.f32 %v1704, %v1366
  %v1713 = vmul.f32 %v1707, %v1366
  %v1714 = vadd.f32 %v1708, 1e-05
  %v1715 = vadd.f32 %v1709, 1e-05
  %v1716 = vadd.f32 %v1710, 1e-05
  %v1717 = vadd.f32 %v1711, 1e-05
  %v1718 = vadd.f32 %v1712, 1e-05
  %v1719 = vadd.f32 %v1713, 1e-05
  %v1720 = vrsqrt.pop %v1714
  %v1721 = vrsqrt.pop %v1715
  %v1722 = vrsqrt.pop %v1716
  %v1723 = vrsqrt.pop %v1717
  %v1724 = vrsqrt.pop %v1718
  %v1725 = vrsqrt.pop %v1719
  %v1726 = vmul.f32 %v1678, %v1720
  %v1727 = vmul.f32 %v1679, %v1721
  %v1728 = vmul.f32 %v1680, %v1722
  %v1729 = vmul.f32 %v1681, %v1723
  %v1730 = vmul.f32 %v1682, %v1724
  %v1731 = vmul.f32 %v1683, %v1725
  %v1732 = vlaneseq
  %v1733 = vshrl.u32 %v1732, 7
  %v1734 = vsub.s32 6, %v1733
  %v1735 = vrot.slane %v145, %v1734
  %v1736 = vmul.f32 %v1726, %v1735
  %v1737 = vmul.f32 %v1727, %v1735
  %v1738 = vmul.f32 %v1728, %v1735
  %v1739 = vmul.f32 %v1729, %v1735
  %v1740 = vmul.f32 %v1730, %v1735
  %v1741 = vmul.f32 %v1731, %v1735
  %v1742 = vlaneseq
  %v1743 = vshrl.u32 %v1742, 7
  %v1744 = vsub.s32 7, %v1743
  %v1745 = vrot.slane %v145, %v1744
  %v1746 = vadd.f32 %v1736, %v1745
  %v1747 = vadd.f32 %v1737, %v1745
  %v1748 = vadd.f32 %v1738, %v1745
  %v1749 = vadd.f32 %v1739, %v1745
  %v1750 = vadd.f32 %v1740, %v1745
  %v1751 = vadd.f32 %v1741, %v1745
  %s1752 = scalar_lea.vmem %s8, 8
  %v1753 = vld [vmem:[%s1752] sm:$0xff]
  %v1754 = vpack.c.bf16 %v1747, %v1746
  %v1755 = vpack.c.bf16 %v1749, %v1748
  %v1756 = vpack.c.bf16 %v1751, %v1750
  %s1757 = scalar_lea.vmem %s4, 16
  %v1758 = vld [vmem:[%s1757] sm:$0xf]
  %v1759 = vld [vmem:[%s1757 + $0x4] sm:$0xf]
  %v1760 = vld [vmem:[%s1757 + $0x8] sm:$0xf]
  %v1761 = vld [vmem:[%s1757 + $0xc] sm:$0xf]
  %v1762 = vlaneseq
  %v1763 = vshrl.u32 %v1762, 7
  %v1764 = vsub.s32 0, %v1763
  %v1765 = vrot.slane %v1753, %v1764
  %v1770 = vunpack.c.l.b16 %v1758
  %v1771 = vunpack.c.l.b16 %v1759
  %v1772 = vunpack.c.l.b16 %v1760
  %v1773 = vunpack.c.l.b16 %v1761
  %v1774 = vpack.c.b16 %v1771, %v1770
  %v1775 = vpack.c.b16 %v1773, %v1772
  %v1779 = vsel %vm169, %v1754, 0
  %v1782 = vsel %vm169, %v1755, 0
  %v1785 = vsel %vm169, %v1756, 0
  %1787 = vmatprep.subr.bf16.mxu0 0
  %1788 = vmatpush1.bf16.msra.mxu0 %v1774
  %1789 = vmatprep.subr.bf16.mxu0 0
  %1790 = vmatpush1.bf16.msra.mxu0 %v1775
  %1791 = vmatprep.subr.bf16.mxu0 0
  %1792 = vmatpush1.bf16.msra.mxu0 0
  %1793 = vmatprep.subr.bf16.mxu0 0
  %1794 = vmatpush1.bf16.msra.mxu0 0
  %1795 = vmatprep.subr.bf16.mxu0 0
  %1796 = vmatpush1.bf16.msra.mxu0 0
  %1797 = vmatprep.subr.bf16.mxu0 0
  %1798 = vmatpush1.bf16.msra.mxu0 0
  %1799 = vmatprep.subr.bf16.mxu0 0
  %1800 = vmatpush1.bf16.msra.mxu0 0
  %1801 = vmatprep.subr.bf16.mxu0 0
  %1802 = vmatpush1.bf16.msra.mxu0 0
  %1803 = vmatprep.subr.bf16.mxu0 0
  %1804 = vmatpush1.bf16.msra.mxu0 0
  %1805 = vmatprep.subr.bf16.mxu0 0
  %1806 = vmatpush1.bf16.msra.mxu0 0
  %1807 = vmatprep.subr.bf16.mxu0 0
  %1808 = vmatpush1.bf16.msra.mxu0 0
  %1809 = vmatprep.subr.bf16.mxu0 0
  %1810 = vmatpush1.bf16.msra.mxu0 0
  %1811 = vmatprep.subr.bf16.mxu0 0
  %1812 = vmatpush1.bf16.msra.mxu0 0
  %1813 = vmatprep.subr.bf16.mxu0 0
  %1814 = vmatpush1.bf16.msra.mxu0 0
  %1815 = vmatprep.subr.bf16.mxu0 0
  %1816 = vmatpush1.bf16.msra.mxu0 0
  %1817 = vmatprep.subr.bf16.mxu0 0
  %1818 = vmatpush1.bf16.msra.mxu0 0
  %1819 = vmatprep.mubr.bf16.mxu0 0
  %1820 = vmatmul.mubr.bf16.gmra.mrb[0].mxu0 %v1779
  %v1821 = vpop.f32.mrb[0].mxu0
  %v1822 = vadd.f32 %v1765, %v1821
  %v1823 = vpop.f32.mrb[0].mxu0
  %v1824 = vpop.f32.mrb[0].mxu0
  %v1825 = vadd.f32 %v1765, %v1824
  %v1826 = vpop.f32.mrb[0].mxu0
  %1827 = vmatprep.mubr.bf16.mxu0 0
  %1828 = vmatmul.mubr.bf16.gmra.mrb[0].mxu0 %v1782
  %v1829 = vpop.f32.mrb[0].mxu0
  %v1830 = vadd.f32 %v1765, %v1829
  %v1831 = vpop.f32.mrb[0].mxu0
  %v1832 = vpop.f32.mrb[0].mxu0
  %v1833 = vadd.f32 %v1765, %v1832
  %v1834 = vpop.f32.mrb[0].mxu0
  %1835 = vmatprep.mubr.bf16.mxu0 0
  %1836 = vmatmul.mubr.bf16.gmra.mrb[0].mxu0 %v1785
  %v1837 = vpop.f32.mrb[0].mxu0
  %v1838 = vadd.f32 %v1765, %v1837
  %v1839 = vpop.f32.mrb[0].mxu0
  %v1840 = vpop.f32.mrb[0].mxu0
  %v1841 = vadd.f32 %v1765, %v1840
  %v1842 = vpop.f32.mrb[0].mxu0
  %1843 = vdwg.mxu0
  %v1844 = vpack.c.bf16 %v1825, %v1822
  %v1845 = vpack.c.bf16 %v1833, %v1830
  %v1846 = vpack.c.bf16 %v1841, %v1838
  %1850 = vrot.lane.b32.xlu0 %v1844, 96
  %v1851 = vpop.permute.xlu0 %1850
  %1852 = vrot.lane.b32.xlu0 %v1845, 96
  %v1853 = vpop.permute.xlu0 %1852
  %1854 = vrot.lane.b32.xlu0 %v1846, 96
  %v1855 = vpop.permute.xlu0 %1854
  %v1857 = vsel %vm248, %v1844, 0
  %v1860 = vsel %vm248, %v1845, 0
  %v1863 = vsel %vm248, %v1846, 0
  %v1866 = vsel %vm248, %v1851, 0
  %v1869 = vsel %vm248, %v1853, 0
  %v1872 = vsel %vm248, %v1855, 0
  %1874 = vmatprep.subr.bf16.mxu0 0
  %1875 = vmatpush1.bf16.xpose.msra.mxu0 %v1866
  %1876 = vmatprep.subr.bf16.mxu0 0
  %1877 = vmatpush1.bf16.xpose.msra.mxu0 %v1869
  %1878 = vmatprep.subr.bf16.mxu0 0
  %1879 = vmatpush1.bf16.xpose.msra.mxu0 %v1872
  %1880 = vmatprep.subr.bf16.mxu0 0
  %1881 = vmatpush1.bf16.xpose.msra.mxu0 0
  %1882 = vmatprep.subr.bf16.mxu0 0
  %1883 = vmatpush1.bf16.xpose.msra.mxu0 0
  %1884 = vmatprep.subr.bf16.mxu0 0
  %1885 = vmatpush1.bf16.xpose.msra.mxu0 0
  %1886 = vmatprep.subr.bf16.mxu0 0
  %1887 = vmatpush1.bf16.xpose.msra.mxu0 0
  %1888 = vmatprep.subr.bf16.mxu0 0
  %1889 = vmatpush1.bf16.xpose.msra.mxu0 0
  %1890 = vmatprep.subr.bf16.mxu0 0
  %1891 = vmatpush1.bf16.xpose.msra.mxu0 0
  %1892 = vmatprep.subr.bf16.mxu0 0
  %1893 = vmatpush1.bf16.xpose.msra.mxu0 0
  %1894 = vmatprep.subr.bf16.mxu0 0
  %1895 = vmatpush1.bf16.xpose.msra.mxu0 0
  %1896 = vmatprep.subr.bf16.mxu0 0
  %1897 = vmatpush1.bf16.xpose.msra.mxu0 0
  %1898 = vmatprep.subr.bf16.mxu0 0
  %1899 = vmatpush1.bf16.xpose.msra.mxu0 0
  %1900 = vmatprep.subr.bf16.mxu0 0
  %1901 = vmatpush1.bf16.xpose.msra.mxu0 0
  %1902 = vmatprep.subr.bf16.mxu0 0
  %1903 = vmatpush1.bf16.xpose.msra.mxu0 0
  %1904 = vmatprep.subr.bf16.mxu0 0
  %1905 = vmatpush1.bf16.xpose.msra.mxu0 0
  %1906 = vmatprep.mubr.bf16.mxu0 0
  %1907 = vmatmul.mubr.bf16.gmra.mrb[0].mxu0 %v1857
  %v1908 = vpop.f32.mrb[0].mxu0
  %v1909 = vadd.f32 %v139, %v1908
  %v1910 = vpop.f32.mrb[0].mxu0
  %v1911 = vpop.f32.mrb[0].mxu0
  %v1912 = vadd.f32 %v140, %v1911
  %v1913 = vpop.f32.mrb[0].mxu0
  %1914 = vmatprep.mubr.bf16.mxu0 0
  %1915 = vmatmul.mubr.bf16.gmra.mrb[0].mxu0 %v1860
  %v1916 = vpop.f32.mrb[0].mxu0
  %v1917 = vadd.f32 %v141, %v1916
  %v1918 = vpop.f32.mrb[0].mxu0
  %v1919 = vpop.f32.mrb[0].mxu0
  %v1920 = vadd.f32 %v142, %v1919
  %v1921 = vpop.f32.mrb[0].mxu0
  %1922 = vmatprep.mubr.bf16.mxu0 0
  %1923 = vmatmul.mubr.bf16.gmra.mrb[0].mxu0 %v1863
  %v1924 = vpop.f32.mrb[0].mxu0
  %v1925 = vadd.f32 %v143, %v1924
  %v1926 = vpop.f32.mrb[0].mxu0
  %v1927 = vpop.f32.mrb[0].mxu0
  %v1928 = vadd.f32 %v144, %v1927
  %v1929 = vpop.f32.mrb[0].mxu0
  %1930 = vdwg.mxu0
  %v1931 = vsel %vm72, %v1909, -inf
  %1932 = vmax.xlane.f32.xlu0 %v1931
  %v1933 = vpop.xlane.xlu0 %1932
  %v1934 = vsel %vm72, %v1912, -inf
  %1935 = vmax.xlane.f32.xlu0 %v1934
  %v1936 = vpop.xlane.xlu0 %1935
  %v1937 = vsel %vm72, %v1917, -inf
  %1938 = vmax.xlane.f32.xlu0 %v1937
  %v1939 = vpop.xlane.xlu0 %1938
  %v1940 = vsel %vm72, %v1920, -inf
  %1941 = vmax.xlane.f32.xlu0 %v1940
  %v1942 = vpop.xlane.xlu0 %1941
  %v1943 = vsel %vm72, %v1925, -inf
  %1944 = vmax.xlane.f32.xlu0 %v1943
  %v1945 = vpop.xlane.xlu0 %1944
  %v1946 = vsel %vm72, %v1928, -inf
  %1947 = vmax.xlane.f32.xlu0 %v1946
  %v1948 = vpop.xlane.xlu0 %1947
  %v1949 = vsub.f32 %v1909, %v1933
  %v1950 = vsub.f32 %v1912, %v1936
  %v1951 = vsub.f32 %v1917, %v1939
  %v1952 = vsub.f32 %v1920, %v1942
  %v1953 = vsub.f32 %v1925, %v1945
  %v1954 = vsub.f32 %v1928, %v1948
  %v1955 = vmul.f32 %v1949, 1.442695
  %v1956 = vpow.pop %v1955
  %v1957 = vmul.f32 %v1950, 1.442695
  %v1958 = vpow.pop %v1957
  %v1959 = vmul.f32 %v1951, 1.442695
  %v1960 = vpow.pop %v1959
  %v1961 = vmul.f32 %v1952, 1.442695
  %v1962 = vpow.pop %v1961
  %v1963 = vmul.f32 %v1953, 1.442695
  %v1964 = vpow.pop %v1963
  %v1965 = vmul.f32 %v1954, 1.442695
  %v1966 = vpow.pop %v1965
  %v1967 = vsel %vm72, %v1956, 0.0
  %1968 = vadd.xlane.f32.xlu0 %v1967
  %v1969 = vpop.xlane.xlu0 %1968
  %v1970 = vsel %vm72, %v1958, 0.0
  %1971 = vadd.xlane.f32.xlu0 %v1970
  %v1972 = vpop.xlane.xlu0 %1971
  %v1973 = vsel %vm72, %v1960, 0.0
  %1974 = vadd.xlane.f32.xlu0 %v1973
  %v1975 = vpop.xlane.xlu0 %1974
  %v1976 = vsel %vm72, %v1962, 0.0
  %1977 = vadd.xlane.f32.xlu0 %v1976
  %v1978 = vpop.xlane.xlu0 %1977
  %v1979 = vsel %vm72, %v1964, 0.0
  %1980 = vadd.xlane.f32.xlu0 %v1979
  %v1981 = vpop.xlane.xlu0 %1980
  %v1982 = vsel %vm72, %v1966, 0.0
  %1983 = vadd.xlane.f32.xlu0 %v1982
  %v1984 = vpop.xlane.xlu0 %1983
  %v1985 = vrcp.pop %v1969
  %v1986 = vrcp.pop %v1972
  %v1987 = vrcp.pop %v1975
  %v1988 = vrcp.pop %v1978
  %v1989 = vrcp.pop %v1981
  %v1990 = vrcp.pop %v1984
  %v1991 = vmul.f32 %v1956, %v1985
  %v1992 = vmul.f32 %v1958, %v1986
  %v1993 = vmul.f32 %v1960, %v1987
  %v1994 = vmul.f32 %v1962, %v1988
  %v1995 = vmul.f32 %v1964, %v1989
  %v1996 = vmul.f32 %v1966, %v1990
  %v1997 = vpack.c.bf16 %v1992, %v1991
  %v1998 = vpack.c.bf16 %v1994, %v1993
  %v1999 = vpack.c.bf16 %v1996, %v1995
  %2000 = vrot.lane.b32.xlu0 %v1844, 64
  %v2001 = vpop.permute.xlu0 %2000
  %2002 = vrot.lane.b32.xlu0 %v1845, 64
  %v2003 = vpop.permute.xlu0 %2002
  %2004 = vrot.lane.b32.xlu0 %v1846, 64
  %v2005 = vpop.permute.xlu0 %2004
  %v2010 = vsel %vm72, %v1997, 0
  %v2013 = vsel %vm72, %v1998, 0
  %v2016 = vsel %vm72, %v1999, 0
  %2018 = vmatprep.subr.bf16.mxu0 0
  %2019 = vmatpush1.bf16.msra.mxu0 %v2001
  %2020 = vmatprep.subr.bf16.mxu0 0
  %2021 = vmatpush1.bf16.msra.mxu0 %v2003
  %2022 = vmatprep.subr.bf16.mxu0 0
  %2023 = vmatpush1.bf16.msra.mxu0 %v2005
  %2024 = vmatprep.subr.bf16.mxu0 0
  %2025 = vmatpush1.bf16.msra.mxu0 0
  %2026 = vmatprep.subr.bf16.mxu0 0
  %2027 = vmatpush1.bf16.msra.mxu0 0
  %2028 = vmatprep.subr.bf16.mxu0 0
  %2029 = vmatpush1.bf16.msra.mxu0 0
  %2030 = vmatprep.subr.bf16.mxu0 0
  %2031 = vmatpush1.bf16.msra.mxu0 0
  %2032 = vmatprep.subr.bf16.mxu0 0
  %2033 = vmatpush1.bf16.msra.mxu0 0
  %2034 = vmatprep.subr.bf16.mxu0 0
  %2035 = vmatpush1.bf16.msra.mxu0 0
  %2036 = vmatprep.subr.bf16.mxu0 0
  %2037 = vmatpush1.bf16.msra.mxu0 0
  %2038 = vmatprep.subr.bf16.mxu0 0
  %2039 = vmatpush1.bf16.msra.mxu0 0
  %2040 = vmatprep.subr.bf16.mxu0 0
  %2041 = vmatpush1.bf16.msra.mxu0 0
  %2042 = vmatprep.subr.bf16.mxu0 0
  %2043 = vmatpush1.bf16.msra.mxu0 0
  %2044 = vmatprep.subr.bf16.mxu0 0
  %2045 = vmatpush1.bf16.msra.mxu0 0
  %2046 = vmatprep.subr.bf16.mxu0 0
  %2047 = vmatpush1.bf16.msra.mxu0 0
  %2048 = vmatprep.subr.bf16.mxu0 0
  %2049 = vmatpush1.bf16.msra.mxu0 0
  %2050 = vmatprep.mubr.bf16.mxu0 0
  %2051 = vmatmul.mubr.bf16.gmra.mrb[0].mxu0 %v2010
  %v2052 = vpop.f32.mrb[0].mxu0
  %v2053 = vadd.f32 0.0, %v2052
  %v2054 = vpop.f32.mrb[0].mxu0
  %v2055 = vpop.f32.mrb[0].mxu0
  %v2056 = vadd.f32 0.0, %v2055
  %v2057 = vpop.f32.mrb[0].mxu0
  %2058 = vmatprep.mubr.bf16.mxu0 0
  %2059 = vmatmul.mubr.bf16.gmra.mrb[0].mxu0 %v2013
  %v2060 = vpop.f32.mrb[0].mxu0
  %v2061 = vadd.f32 0.0, %v2060
  %v2062 = vpop.f32.mrb[0].mxu0
  %v2063 = vpop.f32.mrb[0].mxu0
  %v2064 = vadd.f32 0.0, %v2063
  %v2065 = vpop.f32.mrb[0].mxu0
  %2066 = vmatprep.mubr.bf16.mxu0 0
  %2067 = vmatmul.mubr.bf16.gmra.mrb[0].mxu0 %v2016
  %v2068 = vpop.f32.mrb[0].mxu0
  %v2069 = vadd.f32 0.0, %v2068
  %v2070 = vpop.f32.mrb[0].mxu0
  %v2071 = vpop.f32.mrb[0].mxu0
  %v2072 = vadd.f32 0.0, %v2071
  %v2073 = vpop.f32.mrb[0].mxu0
  %2074 = vdwg.mxu0
  %2075 = vrot.lane.b32.xlu0 %v1844, 120
  %v2076 = vpop.permute.xlu0 %2075
  %2077 = vrot.lane.b32.xlu0 %v1845, 120
  %v2078 = vpop.permute.xlu0 %2077
  %2079 = vrot.lane.b32.xlu0 %v1846, 120
  %v2080 = vpop.permute.xlu0 %2079
  %2081 = vrot.lane.b32.xlu0 %v1844, 88
  %v2082 = vpop.permute.xlu0 %2081
  %2083 = vrot.lane.b32.xlu0 %v1845, 88
  %v2084 = vpop.permute.xlu0 %2083
  %2085 = vrot.lane.b32.xlu0 %v1846, 88
  %v2086 = vpop.permute.xlu0 %2085
  %v2088 = vsel %vm248, %v2076, 0
  %v2091 = vsel %vm248, %v2078, 0
  %v2094 = vsel %vm248, %v2080, 0
  %v2097 = vsel %vm248, %v2082, 0
  %v2100 = vsel %vm248, %v2084, 0
  %v2103 = vsel %vm248, %v2086, 0
  %2105 = vmatprep.subr.bf16.mxu0 0
  %2106 = vmatpush1.bf16.xpose.msra.mxu0 %v2097
  %2107 = vmatprep.subr.bf16.mxu0 0
  %2108 = vmatpush1.bf16.xpose.msra.mxu0 %v2100
  %2109 = vmatprep.subr.bf16.mxu0 0
  %2110 = vmatpush1.bf16.xpose.msra.mxu0 %v2103
  %2111 = vmatprep.subr.bf16.mxu0 0
  %2112 = vmatpush1.bf16.xpose.msra.mxu0 0
  %2113 = vmatprep.subr.bf16.mxu0 0
  %2114 = vmatpush1.bf16.xpose.msra.mxu0 0
  %2115 = vmatprep.subr.bf16.mxu0 0
  %2116 = vmatpush1.bf16.xpose.msra.mxu0 0
  %2117 = vmatprep.subr.bf16.mxu0 0
  %2118 = vmatpush1.bf16.xpose.msra.mxu0 0
  %2119 = vmatprep.subr.bf16.mxu0 0
  %2120 = vmatpush1.bf16.xpose.msra.mxu0 0
  %2121 = vmatprep.subr.bf16.mxu0 0
  %2122 = vmatpush1.bf16.xpose.msra.mxu0 0
  %2123 = vmatprep.subr.bf16.mxu0 0
  %2124 = vmatpush1.bf16.xpose.msra.mxu0 0
  %2125 = vmatprep.subr.bf16.mxu0 0
  %2126 = vmatpush1.bf16.xpose.msra.mxu0 0
  %2127 = vmatprep.subr.bf16.mxu0 0
  %2128 = vmatpush1.bf16.xpose.msra.mxu0 0
  %2129 = vmatprep.subr.bf16.mxu0 0
  %2130 = vmatpush1.bf16.xpose.msra.mxu0 0
  %2131 = vmatprep.subr.bf16.mxu0 0
  %2132 = vmatpush1.bf16.xpose.msra.mxu0 0
  %2133 = vmatprep.subr.bf16.mxu0 0
  %2134 = vmatpush1.bf16.xpose.msra.mxu0 0
  %2135 = vmatprep.subr.bf16.mxu0 0
  %2136 = vmatpush1.bf16.xpose.msra.mxu0 0
  %2137 = vmatprep.mubr.bf16.mxu0 0
  %2138 = vmatmul.mubr.bf16.gmra.mrb[0].mxu0 %v2088
  %v2139 = vpop.f32.mrb[0].mxu0
  %v2140 = vadd.f32 %v139, %v2139
  %v2141 = vpop.f32.mrb[0].mxu0
  %v2142 = vpop.f32.mrb[0].mxu0
  %v2143 = vadd.f32 %v140, %v2142
  %v2144 = vpop.f32.mrb[0].mxu0
  %2145 = vmatprep.mubr.bf16.mxu0 0
  %2146 = vmatmul.mubr.bf16.gmra.mrb[0].mxu0 %v2091
  %v2147 = vpop.f32.mrb[0].mxu0
  %v2148 = vadd.f32 %v141, %v2147
  %v2149 = vpop.f32.mrb[0].mxu0
  %v2150 = vpop.f32.mrb[0].mxu0
  %v2151 = vadd.f32 %v142, %v2150
  %v2152 = vpop.f32.mrb[0].mxu0
  %2153 = vmatprep.mubr.bf16.mxu0 0
  %2154 = vmatmul.mubr.bf16.gmra.mrb[0].mxu0 %v2094
  %v2155 = vpop.f32.mrb[0].mxu0
  %v2156 = vadd.f32 %v143, %v2155
  %v2157 = vpop.f32.mrb[0].mxu0
  %v2158 = vpop.f32.mrb[0].mxu0
  %v2159 = vadd.f32 %v144, %v2158
  %v2160 = vpop.f32.mrb[0].mxu0
  %2161 = vdwg.mxu0
  %v2162 = vsel %vm72, %v2140, -inf
  %2163 = vmax.xlane.f32.xlu0 %v2162
  %v2164 = vpop.xlane.xlu0 %2163
  %v2165 = vsel %vm72, %v2143, -inf
  %2166 = vmax.xlane.f32.xlu0 %v2165
  %v2167 = vpop.xlane.xlu0 %2166
  %v2168 = vsel %vm72, %v2148, -inf
  %2169 = vmax.xlane.f32.xlu0 %v2168
  %v2170 = vpop.xlane.xlu0 %2169
  %v2171 = vsel %vm72, %v2151, -inf
  %2172 = vmax.xlane.f32.xlu0 %v2171
  %v2173 = vpop.xlane.xlu0 %2172
  %v2174 = vsel %vm72, %v2156, -inf
  %2175 = vmax.xlane.f32.xlu0 %v2174
  %v2176 = vpop.xlane.xlu0 %2175
  %v2177 = vsel %vm72, %v2159, -inf
  %2178 = vmax.xlane.f32.xlu0 %v2177
  %v2179 = vpop.xlane.xlu0 %2178
  %v2180 = vsub.f32 %v2140, %v2164
  %v2181 = vsub.f32 %v2143, %v2167
  %v2182 = vsub.f32 %v2148, %v2170
  %v2183 = vsub.f32 %v2151, %v2173
  %v2184 = vsub.f32 %v2156, %v2176
  %v2185 = vsub.f32 %v2159, %v2179
  %v2186 = vmul.f32 %v2180, 1.442695
  %v2187 = vpow.pop %v2186
  %v2188 = vmul.f32 %v2181, 1.442695
  %v2189 = vpow.pop %v2188
  %v2190 = vmul.f32 %v2182, 1.442695
  %v2191 = vpow.pop %v2190
  %v2192 = vmul.f32 %v2183, 1.442695
  %v2193 = vpow.pop %v2192
  %v2194 = vmul.f32 %v2184, 1.442695
  %v2195 = vpow.pop %v2194
  %v2196 = vmul.f32 %v2185, 1.442695
  %v2197 = vpow.pop %v2196
  %v2198 = vsel %vm72, %v2187, 0.0
  %2199 = vadd.xlane.f32.xlu0 %v2198
  %v2200 = vpop.xlane.xlu0 %2199
  %v2201 = vsel %vm72, %v2189, 0.0
  %2202 = vadd.xlane.f32.xlu0 %v2201
  %v2203 = vpop.xlane.xlu0 %2202
  %v2204 = vsel %vm72, %v2191, 0.0
  %2205 = vadd.xlane.f32.xlu0 %v2204
  %v2206 = vpop.xlane.xlu0 %2205
  %v2207 = vsel %vm72, %v2193, 0.0
  %2208 = vadd.xlane.f32.xlu0 %v2207
  %v2209 = vpop.xlane.xlu0 %2208
  %v2210 = vsel %vm72, %v2195, 0.0
  %2211 = vadd.xlane.f32.xlu0 %v2210
  %v2212 = vpop.xlane.xlu0 %2211
  %v2213 = vsel %vm72, %v2197, 0.0
  %2214 = vadd.xlane.f32.xlu0 %v2213
  %v2215 = vpop.xlane.xlu0 %2214
  %v2216 = vrcp.pop %v2200
  %v2217 = vrcp.pop %v2203
  %v2218 = vrcp.pop %v2206
  %v2219 = vrcp.pop %v2209
  %v2220 = vrcp.pop %v2212
  %v2221 = vrcp.pop %v2215
  %v2222 = vmul.f32 %v2187, %v2216
  %v2223 = vmul.f32 %v2189, %v2217
  %v2224 = vmul.f32 %v2191, %v2218
  %v2225 = vmul.f32 %v2193, %v2219
  %v2226 = vmul.f32 %v2195, %v2220
  %v2227 = vmul.f32 %v2197, %v2221
  %v2228 = vpack.c.bf16 %v2223, %v2222
  %v2229 = vpack.c.bf16 %v2225, %v2224
  %v2230 = vpack.c.bf16 %v2227, %v2226
  %2231 = vrot.lane.b32.xlu0 %v1844, 56
  %v2232 = vpop.permute.xlu0 %2231
  %2233 = vrot.lane.b32.xlu0 %v1845, 56
  %v2234 = vpop.permute.xlu0 %2233
  %2235 = vrot.lane.b32.xlu0 %v1846, 56
  %v2236 = vpop.permute.xlu0 %2235
  %v2241 = vsel %vm72, %v2228, 0
  %v2244 = vsel %vm72, %v2229, 0
  %v2247 = vsel %vm72, %v2230, 0
  %2249 = vmatprep.subr.bf16.mxu0 0
  %2250 = vmatpush1.bf16.msra.mxu0 %v2232
  %2251 = vmatprep.subr.bf16.mxu0 0
  %2252 = vmatpush1.bf16.msra.mxu0 %v2234
  %2253 = vmatprep.subr.bf16.mxu0 0
  %2254 = vmatpush1.bf16.msra.mxu0 %v2236
  %2255 = vmatprep.subr.bf16.mxu0 0
  %2256 = vmatpush1.bf16.msra.mxu0 0
  %2257 = vmatprep.subr.bf16.mxu0 0
  %2258 = vmatpush1.bf16.msra.mxu0 0
  %2259 = vmatprep.subr.bf16.mxu0 0
  %2260 = vmatpush1.bf16.msra.mxu0 0
  %2261 = vmatprep.subr.bf16.mxu0 0
  %2262 = vmatpush1.bf16.msra.mxu0 0
  %2263 = vmatprep.subr.bf16.mxu0 0
  %2264 = vmatpush1.bf16.msra.mxu0 0
  %2265 = vmatprep.subr.bf16.mxu0 0
  %2266 = vmatpush1.bf16.msra.mxu0 0
  %2267 = vmatprep.subr.bf16.mxu0 0
  %2268 = vmatpush1.bf16.msra.mxu0 0
  %2269 = vmatprep.subr.bf16.mxu0 0
  %2270 = vmatpush1.bf16.msra.mxu0 0
  %2271 = vmatprep.subr.bf16.mxu0 0
  %2272 = vmatpush1.bf16.msra.mxu0 0
  %2273 = vmatprep.subr.bf16.mxu0 0
  %2274 = vmatpush1.bf16.msra.mxu0 0
  %2275 = vmatprep.subr.bf16.mxu0 0
  %2276 = vmatpush1.bf16.msra.mxu0 0
  %2277 = vmatprep.subr.bf16.mxu0 0
  %2278 = vmatpush1.bf16.msra.mxu0 0
  %2279 = vmatprep.subr.bf16.mxu0 0
  %2280 = vmatpush1.bf16.msra.mxu0 0
  %2281 = vmatprep.mubr.bf16.mxu0 0
  %2282 = vmatmul.mubr.bf16.gmra.mrb[0].mxu0 %v2241
  %v2283 = vpop.f32.mrb[0].mxu0
  %v2284 = vadd.f32 0.0, %v2283
  %v2285 = vpop.f32.mrb[0].mxu0
  %v2286 = vpop.f32.mrb[0].mxu0
  %v2287 = vadd.f32 0.0, %v2286
  %v2288 = vpop.f32.mrb[0].mxu0
  %2289 = vmatprep.mubr.bf16.mxu0 0
  %2290 = vmatmul.mubr.bf16.gmra.mrb[0].mxu0 %v2244
  %v2291 = vpop.f32.mrb[0].mxu0
  %v2292 = vadd.f32 0.0, %v2291
  %v2293 = vpop.f32.mrb[0].mxu0
  %v2294 = vpop.f32.mrb[0].mxu0
  %v2295 = vadd.f32 0.0, %v2294
  %v2296 = vpop.f32.mrb[0].mxu0
  %2297 = vmatprep.mubr.bf16.mxu0 0
  %2298 = vmatmul.mubr.bf16.gmra.mrb[0].mxu0 %v2247
  %v2299 = vpop.f32.mrb[0].mxu0
  %v2300 = vadd.f32 0.0, %v2299
  %v2301 = vpop.f32.mrb[0].mxu0
  %v2302 = vpop.f32.mrb[0].mxu0
  %v2303 = vadd.f32 0.0, %v2302
  %v2304 = vpop.f32.mrb[0].mxu0
  %2305 = vdwg.mxu0
  %2306 = vrot.lane.b32.xlu0 %v1844, 112
  %v2307 = vpop.permute.xlu0 %2306
  %2308 = vrot.lane.b32.xlu0 %v1845, 112
  %v2309 = vpop.permute.xlu0 %2308
  %2310 = vrot.lane.b32.xlu0 %v1846, 112
  %v2311 = vpop.permute.xlu0 %2310
  %2312 = vrot.lane.b32.xlu0 %v1844, 80
  %v2313 = vpop.permute.xlu0 %2312
  %2314 = vrot.lane.b32.xlu0 %v1845, 80
  %v2315 = vpop.permute.xlu0 %2314
  %2316 = vrot.lane.b32.xlu0 %v1846, 80
  %v2317 = vpop.permute.xlu0 %2316
  %v2319 = vsel %vm248, %v2307, 0
  %v2322 = vsel %vm248, %v2309, 0
  %v2325 = vsel %vm248, %v2311, 0
  %v2328 = vsel %vm248, %v2313, 0
  %v2331 = vsel %vm248, %v2315, 0
  %v2334 = vsel %vm248, %v2317, 0
  %2336 = vmatprep.subr.bf16.mxu0 0
  %2337 = vmatpush1.bf16.xpose.msra.mxu0 %v2328
  %2338 = vmatprep.subr.bf16.mxu0 0
  %2339 = vmatpush1.bf16.xpose.msra.mxu0 %v2331
  %2340 = vmatprep.subr.bf16.mxu0 0
  %2341 = vmatpush1.bf16.xpose.msra.mxu0 %v2334
  %2342 = vmatprep.subr.bf16.mxu0 0
  %2343 = vmatpush1.bf16.xpose.msra.mxu0 0
  %2344 = vmatprep.subr.bf16.mxu0 0
  %2345 = vmatpush1.bf16.xpose.msra.mxu0 0
  %2346 = vmatprep.subr.bf16.mxu0 0
  %2347 = vmatpush1.bf16.xpose.msra.mxu0 0
  %2348 = vmatprep.subr.bf16.mxu0 0
  %2349 = vmatpush1.bf16.xpose.msra.mxu0 0
  %2350 = vmatprep.subr.bf16.mxu0 0
  %2351 = vmatpush1.bf16.xpose.msra.mxu0 0
  %2352 = vmatprep.subr.bf16.mxu0 0
  %2353 = vmatpush1.bf16.xpose.msra.mxu0 0
  %2354 = vmatprep.subr.bf16.mxu0 0
  %2355 = vmatpush1.bf16.xpose.msra.mxu0 0
  %2356 = vmatprep.subr.bf16.mxu0 0
  %2357 = vmatpush1.bf16.xpose.msra.mxu0 0
  %2358 = vmatprep.subr.bf16.mxu0 0
  %2359 = vmatpush1.bf16.xpose.msra.mxu0 0
  %2360 = vmatprep.subr.bf16.mxu0 0
  %2361 = vmatpush1.bf16.xpose.msra.mxu0 0
  %2362 = vmatprep.subr.bf16.mxu0 0
  %2363 = vmatpush1.bf16.xpose.msra.mxu0 0
  %2364 = vmatprep.subr.bf16.mxu0 0
  %2365 = vmatpush1.bf16.xpose.msra.mxu0 0
  %2366 = vmatprep.subr.bf16.mxu0 0
  %2367 = vmatpush1.bf16.xpose.msra.mxu0 0
  %2368 = vmatprep.mubr.bf16.mxu0 0
  %2369 = vmatmul.mubr.bf16.gmra.mrb[0].mxu0 %v2319
  %v2370 = vpop.f32.mrb[0].mxu0
  %v2371 = vadd.f32 %v139, %v2370
  %v2372 = vpop.f32.mrb[0].mxu0
  %v2373 = vpop.f32.mrb[0].mxu0
  %v2374 = vadd.f32 %v140, %v2373
  %v2375 = vpop.f32.mrb[0].mxu0
  %2376 = vmatprep.mubr.bf16.mxu0 0
  %2377 = vmatmul.mubr.bf16.gmra.mrb[0].mxu0 %v2322
  %v2378 = vpop.f32.mrb[0].mxu0
  %v2379 = vadd.f32 %v141, %v2378
  %v2380 = vpop.f32.mrb[0].mxu0
  %v2381 = vpop.f32.mrb[0].mxu0
  %v2382 = vadd.f32 %v142, %v2381
  %v2383 = vpop.f32.mrb[0].mxu0
  %2384 = vmatprep.mubr.bf16.mxu0 0
  %2385 = vmatmul.mubr.bf16.gmra.mrb[0].mxu0 %v2325
  %v2386 = vpop.f32.mrb[0].mxu0
  %v2387 = vadd.f32 %v143, %v2386
  %v2388 = vpop.f32.mrb[0].mxu0
  %v2389 = vpop.f32.mrb[0].mxu0
  %v2390 = vadd.f32 %v144, %v2389
  %v2391 = vpop.f32.mrb[0].mxu0
  %2392 = vdwg.mxu0
  %v2393 = vsel %vm72, %v2371, -inf
  %2394 = vmax.xlane.f32.xlu0 %v2393
  %v2395 = vpop.xlane.xlu0 %2394
  %v2396 = vsel %vm72, %v2374, -inf
  %2397 = vmax.xlane.f32.xlu0 %v2396
  %v2398 = vpop.xlane.xlu0 %2397
  %v2399 = vsel %vm72, %v2379, -inf
  %2400 = vmax.xlane.f32.xlu0 %v2399
  %v2401 = vpop.xlane.xlu0 %2400
  %v2402 = vsel %vm72, %v2382, -inf
  %2403 = vmax.xlane.f32.xlu0 %v2402
  %v2404 = vpop.xlane.xlu0 %2403
  %v2405 = vsel %vm72, %v2387, -inf
  %2406 = vmax.xlane.f32.xlu0 %v2405
  %v2407 = vpop.xlane.xlu0 %2406
  %v2408 = vsel %vm72, %v2390, -inf
  %2409 = vmax.xlane.f32.xlu0 %v2408
  %v2410 = vpop.xlane.xlu0 %2409
  %v2411 = vsub.f32 %v2371, %v2395
  %v2412 = vsub.f32 %v2374, %v2398
  %v2413 = vsub.f32 %v2379, %v2401
  %v2414 = vsub.f32 %v2382, %v2404
  %v2415 = vsub.f32 %v2387, %v2407
  %v2416 = vsub.f32 %v2390, %v2410
  %v2417 = vmul.f32 %v2411, 1.442695
  %v2418 = vpow.pop %v2417
  %v2419 = vmul.f32 %v2412, 1.442695
  %v2420 = vpow.pop %v2419
  %v2421 = vmul.f32 %v2413, 1.442695
  %v2422 = vpow.pop %v2421
  %v2423 = vmul.f32 %v2414, 1.442695
  %v2424 = vpow.pop %v2423
  %v2425 = vmul.f32 %v2415, 1.442695
  %v2426 = vpow.pop %v2425
  %v2427 = vmul.f32 %v2416, 1.442695
  %v2428 = vpow.pop %v2427
  %v2429 = vsel %vm72, %v2418, 0.0
  %2430 = vadd.xlane.f32.xlu0 %v2429
  %v2431 = vpop.xlane.xlu0 %2430
  %v2432 = vsel %vm72, %v2420, 0.0
  %2433 = vadd.xlane.f32.xlu0 %v2432
  %v2434 = vpop.xlane.xlu0 %2433
  %v2435 = vsel %vm72, %v2422, 0.0
  %2436 = vadd.xlane.f32.xlu0 %v2435
  %v2437 = vpop.xlane.xlu0 %2436
  %v2438 = vsel %vm72, %v2424, 0.0
  %2439 = vadd.xlane.f32.xlu0 %v2438
  %v2440 = vpop.xlane.xlu0 %2439
  %v2441 = vsel %vm72, %v2426, 0.0
  %2442 = vadd.xlane.f32.xlu0 %v2441
  %v2443 = vpop.xlane.xlu0 %2442
  %v2444 = vsel %vm72, %v2428, 0.0
  %2445 = vadd.xlane.f32.xlu0 %v2444
  %v2446 = vpop.xlane.xlu0 %2445
  %v2447 = vrcp.pop %v2431
  %v2448 = vrcp.pop %v2434
  %v2449 = vrcp.pop %v2437
  %v2450 = vrcp.pop %v2440
  %v2451 = vrcp.pop %v2443
  %v2452 = vrcp.pop %v2446
  %v2453 = vmul.f32 %v2418, %v2447
  %v2454 = vmul.f32 %v2420, %v2448
  %v2455 = vmul.f32 %v2422, %v2449
  %v2456 = vmul.f32 %v2424, %v2450
  %v2457 = vmul.f32 %v2426, %v2451
  %v2458 = vmul.f32 %v2428, %v2452
  %v2459 = vpack.c.bf16 %v2454, %v2453
  %v2460 = vpack.c.bf16 %v2456, %v2455
  %v2461 = vpack.c.bf16 %v2458, %v2457
  %2462 = vrot.lane.b32.xlu0 %v1844, 48
  %v2463 = vpop.permute.xlu0 %2462
  %2464 = vrot.lane.b32.xlu0 %v1845, 48
  %v2465 = vpop.permute.xlu0 %2464
  %2466 = vrot.lane.b32.xlu0 %v1846, 48
  %v2467 = vpop.permute.xlu0 %2466
  %v2472 = vsel %vm72, %v2459, 0
  %v2475 = vsel %vm72, %v2460, 0
  %v2478 = vsel %vm72, %v2461, 0
  %2480 = vmatprep.subr.bf16.mxu0 0
  %2481 = vmatpush1.bf16.msra.mxu0 %v2463
  %2482 = vmatprep.subr.bf16.mxu0 0
  %2483 = vmatpush1.bf16.msra.mxu0 %v2465
  %2484 = vmatprep.subr.bf16.mxu0 0
  %2485 = vmatpush1.bf16.msra.mxu0 %v2467
  %2486 = vmatprep.subr.bf16.mxu0 0
  %2487 = vmatpush1.bf16.msra.mxu0 0
  %2488 = vmatprep.subr.bf16.mxu0 0
  %2489 = vmatpush1.bf16.msra.mxu0 0
  %2490 = vmatprep.subr.bf16.mxu0 0
  %2491 = vmatpush1.bf16.msra.mxu0 0
  %2492 = vmatprep.subr.bf16.mxu0 0
  %2493 = vmatpush1.bf16.msra.mxu0 0
  %2494 = vmatprep.subr.bf16.mxu0 0
  %2495 = vmatpush1.bf16.msra.mxu0 0
  %2496 = vmatprep.subr.bf16.mxu0 0
  %2497 = vmatpush1.bf16.msra.mxu0 0
  %2498 = vmatprep.subr.bf16.mxu0 0
  %2499 = vmatpush1.bf16.msra.mxu0 0
  %2500 = vmatprep.subr.bf16.mxu0 0
  %2501 = vmatpush1.bf16.msra.mxu0 0
  %2502 = vmatprep.subr.bf16.mxu0 0
  %2503 = vmatpush1.bf16.msra.mxu0 0
  %2504 = vmatprep.subr.bf16.mxu0 0
  %2505 = vmatpush1.bf16.msra.mxu0 0
  %2506 = vmatprep.subr.bf16.mxu0 0
  %2507 = vmatpush1.bf16.msra.mxu0 0
  %2508 = vmatprep.subr.bf16.mxu0 0
  %2509 = vmatpush1.bf16.msra.mxu0 0
  %2510 = vmatprep.subr.bf16.mxu0 0
  %2511 = vmatpush1.bf16.msra.mxu0 0
  %2512 = vmatprep.mubr.bf16.mxu0 0
  %2513 = vmatmul.mubr.bf16.gmra.mrb[0].mxu0 %v2472
  %v2514 = vpop.f32.mrb[0].mxu0
  %v2515 = vadd.f32 0.0, %v2514
  %v2516 = vpop.f32.mrb[0].mxu0
  %v2517 = vpop.f32.mrb[0].mxu0
  %v2518 = vadd.f32 0.0, %v2517
  %v2519 = vpop.f32.mrb[0].mxu0
  %2520 = vmatprep.mubr.bf16.mxu0 0
  %2521 = vmatmul.mubr.bf16.gmra.mrb[0].mxu0 %v2475
  %v2522 = vpop.f32.mrb[0].mxu0
  %v2523 = vadd.f32 0.0, %v2522
  %v2524 = vpop.f32.mrb[0].mxu0
  %v2525 = vpop.f32.mrb[0].mxu0
  %v2526 = vadd.f32 0.0, %v2525
  %v2527 = vpop.f32.mrb[0].mxu0
  %2528 = vmatprep.mubr.bf16.mxu0 0
  %2529 = vmatmul.mubr.bf16.gmra.mrb[0].mxu0 %v2478
  %v2530 = vpop.f32.mrb[0].mxu0
  %v2531 = vadd.f32 0.0, %v2530
  %v2532 = vpop.f32.mrb[0].mxu0
  %v2533 = vpop.f32.mrb[0].mxu0
  %v2534 = vadd.f32 0.0, %v2533
  %v2535 = vpop.f32.mrb[0].mxu0
  %2536 = vdwg.mxu0
  %2537 = vrot.lane.b32.xlu0 %v1844, 104
  %v2538 = vpop.permute.xlu0 %2537
  %2539 = vrot.lane.b32.xlu0 %v1845, 104
  %v2540 = vpop.permute.xlu0 %2539
  %2541 = vrot.lane.b32.xlu0 %v1846, 104
  %v2542 = vpop.permute.xlu0 %2541
  %2543 = vrot.lane.b32.xlu0 %v1844, 72
  %v2544 = vpop.permute.xlu0 %2543
  %2545 = vrot.lane.b32.xlu0 %v1845, 72
  %v2546 = vpop.permute.xlu0 %2545
  %2547 = vrot.lane.b32.xlu0 %v1846, 72
  %v2548 = vpop.permute.xlu0 %2547
  %v2550 = vsel %vm248, %v2538, 0
  %v2553 = vsel %vm248, %v2540, 0
  %v2556 = vsel %vm248, %v2542, 0
  %v2559 = vsel %vm248, %v2544, 0
  %v2562 = vsel %vm248, %v2546, 0
  %v2565 = vsel %vm248, %v2548, 0
  %2567 = vmatprep.subr.bf16.mxu0 0
  %2568 = vmatpush1.bf16.xpose.msra.mxu0 %v2559
  %2569 = vmatprep.subr.bf16.mxu0 0
  %2570 = vmatpush1.bf16.xpose.msra.mxu0 %v2562
  %2571 = vmatprep.subr.bf16.mxu0 0
  %2572 = vmatpush1.bf16.xpose.msra.mxu0 %v2565
  %2573 = vmatprep.subr.bf16.mxu0 0
  %2574 = vmatpush1.bf16.xpose.msra.mxu0 0
  %2575 = vmatprep.subr.bf16.mxu0 0
  %2576 = vmatpush1.bf16.xpose.msra.mxu0 0
  %2577 = vmatprep.subr.bf16.mxu0 0
  %2578 = vmatpush1.bf16.xpose.msra.mxu0 0
  %2579 = vmatprep.subr.bf16.mxu0 0
  %2580 = vmatpush1.bf16.xpose.msra.mxu0 0
  %2581 = vmatprep.subr.bf16.mxu0 0
  %2582 = vmatpush1.bf16.xpose.msra.mxu0 0
  %2583 = vmatprep.subr.bf16.mxu0 0
  %2584 = vmatpush1.bf16.xpose.msra.mxu0 0
  %2585 = vmatprep.subr.bf16.mxu0 0
  %2586 = vmatpush1.bf16.xpose.msra.mxu0 0
  %2587 = vmatprep.subr.bf16.mxu0 0
  %2588 = vmatpush1.bf16.xpose.msra.mxu0 0
  %2589 = vmatprep.subr.bf16.mxu0 0
  %2590 = vmatpush1.bf16.xpose.msra.mxu0 0
  %2591 = vmatprep.subr.bf16.mxu0 0
  %2592 = vmatpush1.bf16.xpose.msra.mxu0 0
  %2593 = vmatprep.subr.bf16.mxu0 0
  %2594 = vmatpush1.bf16.xpose.msra.mxu0 0
  %2595 = vmatprep.subr.bf16.mxu0 0
  %2596 = vmatpush1.bf16.xpose.msra.mxu0 0
  %2597 = vmatprep.subr.bf16.mxu0 0
  %2598 = vmatpush1.bf16.xpose.msra.mxu0 0
  %2599 = vmatprep.mubr.bf16.mxu0 0
  %2600 = vmatmul.mubr.bf16.gmra.mrb[0].mxu0 %v2550
  %v2601 = vpop.f32.mrb[0].mxu0
  %v2602 = vadd.f32 %v139, %v2601
  %v2603 = vpop.f32.mrb[0].mxu0
  %v2604 = vpop.f32.mrb[0].mxu0
  %v2605 = vadd.f32 %v140, %v2604
  %v2606 = vpop.f32.mrb[0].mxu0
  %2607 = vmatprep.mubr.bf16.mxu0 0
  %2608 = vmatmul.mubr.bf16.gmra.mrb[0].mxu0 %v2553
  %v2609 = vpop.f32.mrb[0].mxu0
  %v2610 = vadd.f32 %v141, %v2609
  %v2611 = vpop.f32.mrb[0].mxu0
  %v2612 = vpop.f32.mrb[0].mxu0
  %v2613 = vadd.f32 %v142, %v2612
  %v2614 = vpop.f32.mrb[0].mxu0
  %2615 = vmatprep.mubr.bf16.mxu0 0
  %2616 = vmatmul.mubr.bf16.gmra.mrb[0].mxu0 %v2556
  %v2617 = vpop.f32.mrb[0].mxu0
  %v2618 = vadd.f32 %v143, %v2617
  %v2619 = vpop.f32.mrb[0].mxu0
  %v2620 = vpop.f32.mrb[0].mxu0
  %v2621 = vadd.f32 %v144, %v2620
  %v2622 = vpop.f32.mrb[0].mxu0
  %2623 = vdwg.mxu0
  %v2624 = vsel %vm72, %v2602, -inf
  %2625 = vmax.xlane.f32.xlu0 %v2624
  %v2626 = vpop.xlane.xlu0 %2625
  %v2627 = vsel %vm72, %v2605, -inf
  %2628 = vmax.xlane.f32.xlu0 %v2627
  %v2629 = vpop.xlane.xlu0 %2628
  %v2630 = vsel %vm72, %v2610, -inf
  %2631 = vmax.xlane.f32.xlu0 %v2630
  %v2632 = vpop.xlane.xlu0 %2631
  %v2633 = vsel %vm72, %v2613, -inf
  %2634 = vmax.xlane.f32.xlu0 %v2633
  %v2635 = vpop.xlane.xlu0 %2634
  %v2636 = vsel %vm72, %v2618, -inf
  %2637 = vmax.xlane.f32.xlu0 %v2636
  %v2638 = vpop.xlane.xlu0 %2637
  %v2639 = vsel %vm72, %v2621, -inf
  %2640 = vmax.xlane.f32.xlu0 %v2639
  %v2641 = vpop.xlane.xlu0 %2640
  %v2642 = vsub.f32 %v2602, %v2626
  %v2643 = vsub.f32 %v2605, %v2629
  %v2644 = vsub.f32 %v2610, %v2632
  %v2645 = vsub.f32 %v2613, %v2635
  %v2646 = vsub.f32 %v2618, %v2638
  %v2647 = vsub.f32 %v2621, %v2641
  %v2648 = vmul.f32 %v2642, 1.442695
  %v2649 = vpow.pop %v2648
  %v2650 = vmul.f32 %v2643, 1.442695
  %v2651 = vpow.pop %v2650
  %v2652 = vmul.f32 %v2644, 1.442695
  %v2653 = vpow.pop %v2652
  %v2654 = vmul.f32 %v2645, 1.442695
  %v2655 = vpow.pop %v2654
  %v2656 = vmul.f32 %v2646, 1.442695
  %v2657 = vpow.pop %v2656
  %v2658 = vmul.f32 %v2647, 1.442695
  %v2659 = vpow.pop %v2658
  %v2660 = vsel %vm72, %v2649, 0.0
  %2661 = vadd.xlane.f32.xlu0 %v2660
  %v2662 = vpop.xlane.xlu0 %2661
  %v2663 = vsel %vm72, %v2651, 0.0
  %2664 = vadd.xlane.f32.xlu0 %v2663
  %v2665 = vpop.xlane.xlu0 %2664
  %v2666 = vsel %vm72, %v2653, 0.0
  %2667 = vadd.xlane.f32.xlu0 %v2666
  %v2668 = vpop.xlane.xlu0 %2667
  %v2669 = vsel %vm72, %v2655, 0.0
  %2670 = vadd.xlane.f32.xlu0 %v2669
  %v2671 = vpop.xlane.xlu0 %2670
  %v2672 = vsel %vm72, %v2657, 0.0
  %2673 = vadd.xlane.f32.xlu0 %v2672
  %v2674 = vpop.xlane.xlu0 %2673
  %v2675 = vsel %vm72, %v2659, 0.0
  %2676 = vadd.xlane.f32.xlu0 %v2675
  %v2677 = vpop.xlane.xlu0 %2676
  %v2678 = vrcp.pop %v2662
  %v2679 = vrcp.pop %v2665
  %v2680 = vrcp.pop %v2668
  %v2681 = vrcp.pop %v2671
  %v2682 = vrcp.pop %v2674
  %v2683 = vrcp.pop %v2677
  %v2684 = vmul.f32 %v2649, %v2678
  %v2685 = vmul.f32 %v2651, %v2679
  %v2686 = vmul.f32 %v2653, %v2680
  %v2687 = vmul.f32 %v2655, %v2681
  %v2688 = vmul.f32 %v2657, %v2682
  %v2689 = vmul.f32 %v2659, %v2683
  %v2690 = vpack.c.bf16 %v2685, %v2684
  %v2691 = vpack.c.bf16 %v2687, %v2686
  %v2692 = vpack.c.bf16 %v2689, %v2688
  %2693 = vrot.lane.b32.xlu0 %v1844, 40
  %v2694 = vpop.permute.xlu0 %2693
  %2695 = vrot.lane.b32.xlu0 %v1845, 40
  %v2696 = vpop.permute.xlu0 %2695
  %2697 = vrot.lane.b32.xlu0 %v1846, 40
  %v2698 = vpop.permute.xlu0 %2697
  %v2703 = vsel %vm72, %v2690, 0
  %v2706 = vsel %vm72, %v2691, 0
  %v2709 = vsel %vm72, %v2692, 0
  %2711 = vmatprep.subr.bf16.mxu0 0
  %2712 = vmatpush1.bf16.msra.mxu0 %v2694
  %2713 = vmatprep.subr.bf16.mxu0 0
  %2714 = vmatpush1.bf16.msra.mxu0 %v2696
  %2715 = vmatprep.subr.bf16.mxu0 0
  %2716 = vmatpush1.bf16.msra.mxu0 %v2698
  %2717 = vmatprep.subr.bf16.mxu0 0
  %2718 = vmatpush1.bf16.msra.mxu0 0
  %2719 = vmatprep.subr.bf16.mxu0 0
  %2720 = vmatpush1.bf16.msra.mxu0 0
  %2721 = vmatprep.subr.bf16.mxu0 0
  %2722 = vmatpush1.bf16.msra.mxu0 0
  %2723 = vmatprep.subr.bf16.mxu0 0
  %2724 = vmatpush1.bf16.msra.mxu0 0
  %2725 = vmatprep.subr.bf16.mxu0 0
  %2726 = vmatpush1.bf16.msra.mxu0 0
  %2727 = vmatprep.subr.bf16.mxu0 0
  %2728 = vmatpush1.bf16.msra.mxu0 0
  %2729 = vmatprep.subr.bf16.mxu0 0
  %2730 = vmatpush1.bf16.msra.mxu0 0
  %2731 = vmatprep.subr.bf16.mxu0 0
  %2732 = vmatpush1.bf16.msra.mxu0 0
  %2733 = vmatprep.subr.bf16.mxu0 0
  %2734 = vmatpush1.bf16.msra.mxu0 0
  %2735 = vmatprep.subr.bf16.mxu0 0
  %2736 = vmatpush1.bf16.msra.mxu0 0
  %2737 = vmatprep.subr.bf16.mxu0 0
  %2738 = vmatpush1.bf16.msra.mxu0 0
  %2739 = vmatprep.subr.bf16.mxu0 0
  %2740 = vmatpush1.bf16.msra.mxu0 0
  %2741 = vmatprep.subr.bf16.mxu0 0
  %2742 = vmatpush1.bf16.msra.mxu0 0
  %2743 = vmatprep.mubr.bf16.mxu0 0
  %2744 = vmatmul.mubr.bf16.gmra.mrb[0].mxu0 %v2703
  %v2745 = vpop.f32.mrb[0].mxu0
  %v2746 = vadd.f32 0.0, %v2745
  %v2747 = vpop.f32.mrb[0].mxu0
  %v2748 = vpop.f32.mrb[0].mxu0
  %v2749 = vadd.f32 0.0, %v2748
  %v2750 = vpop.f32.mrb[0].mxu0
  %2751 = vmatprep.mubr.bf16.mxu0 0
  %2752 = vmatmul.mubr.bf16.gmra.mrb[0].mxu0 %v2706
  %v2753 = vpop.f32.mrb[0].mxu0
  %v2754 = vadd.f32 0.0, %v2753
  %v2755 = vpop.f32.mrb[0].mxu0
  %v2756 = vpop.f32.mrb[0].mxu0
  %v2757 = vadd.f32 0.0, %v2756
  %v2758 = vpop.f32.mrb[0].mxu0
  %2759 = vmatprep.mubr.bf16.mxu0 0
  %2760 = vmatmul.mubr.bf16.gmra.mrb[0].mxu0 %v2709
  %v2761 = vpop.f32.mrb[0].mxu0
  %v2762 = vadd.f32 0.0, %v2761
  %v2763 = vpop.f32.mrb[0].mxu0
  %v2764 = vpop.f32.mrb[0].mxu0
  %v2765 = vadd.f32 0.0, %v2764
  %v2766 = vpop.f32.mrb[0].mxu0
  %2767 = vdwg.mxu0
  %2774 = vrot.lane.b32.xlu0 %v2284, 8
  %v2775 = vpop.permute.xlu0 %2774
  %2776 = vrot.lane.b32.xlu0 %v2287, 8
  %v2777 = vpop.permute.xlu0 %2776
  %2778 = vrot.lane.b32.xlu0 %v2292, 8
  %v2779 = vpop.permute.xlu0 %2778
  %2780 = vrot.lane.b32.xlu0 %v2295, 8
  %v2781 = vpop.permute.xlu0 %2780
  %2782 = vrot.lane.b32.xlu0 %v2300, 8
  %v2783 = vpop.permute.xlu0 %2782
  %2784 = vrot.lane.b32.xlu0 %v2303, 8
  %v2785 = vpop.permute.xlu0 %2784
  %2798 = vrot.lane.b32.xlu0 %v2515, 16
  %v2799 = vpop.permute.xlu0 %2798
  %2800 = vrot.lane.b32.xlu0 %v2518, 16
  %v2801 = vpop.permute.xlu0 %2800
  %2802 = vrot.lane.b32.xlu0 %v2523, 16
  %v2803 = vpop.permute.xlu0 %2802
  %2804 = vrot.lane.b32.xlu0 %v2526, 16
  %v2805 = vpop.permute.xlu0 %2804
  %2806 = vrot.lane.b32.xlu0 %v2531, 16
  %v2807 = vpop.permute.xlu0 %2806
  %2808 = vrot.lane.b32.xlu0 %v2534, 16
  %v2809 = vpop.permute.xlu0 %2808
  %2822 = vrot.lane.b32.xlu0 %v2746, 24
  %v2823 = vpop.permute.xlu0 %2822
  %2824 = vrot.lane.b32.xlu0 %v2749, 24
  %v2825 = vpop.permute.xlu0 %2824
  %2826 = vrot.lane.b32.xlu0 %v2754, 24
  %v2827 = vpop.permute.xlu0 %2826
  %2828 = vrot.lane.b32.xlu0 %v2757, 24
  %v2829 = vpop.permute.xlu0 %2828
  %2830 = vrot.lane.b32.xlu0 %v2762, 24
  %v2831 = vpop.permute.xlu0 %2830
  %2832 = vrot.lane.b32.xlu0 %v2765, 24
  %v2833 = vpop.permute.xlu0 %2832
  %v2840 = vsel %vm248, %v2053, %v2775
  %v2841 = vsel %vm248, %v2056, %v2777
  %v2842 = vsel %vm248, %v2061, %v2779
  %v2843 = vsel %vm248, %v2064, %v2781
  %v2844 = vsel %vm248, %v2069, %v2783
  %v2845 = vsel %vm248, %v2072, %v2785
  %v2846 = vsel %vm1239, %v2840, %v2799
  %v2847 = vsel %vm1239, %v2841, %v2801
  %v2848 = vsel %vm1239, %v2842, %v2803
  %v2849 = vsel %vm1239, %v2843, %v2805
  %v2850 = vsel %vm1239, %v2844, %v2807
  %v2851 = vsel %vm1239, %v2845, %v2809
  %v2852 = vsel %vm1246, %v2846, %v2823
  %v2853 = vsel %vm1246, %v2847, %v2825
  %v2854 = vsel %vm1246, %v2848, %v2827
  %v2855 = vsel %vm1246, %v2849, %v2829
  %v2856 = vsel %vm1246, %v2850, %v2831
  %v2857 = vsel %vm1246, %v2851, %v2833
  %v2858 = vpack.c.bf16 %v2853, %v2852
  %v2859 = vpack.c.bf16 %v2855, %v2854
  %v2860 = vpack.c.bf16 %v2857, %v2856
  %s2861 = scalar_lea.vmem %s5, 16
  %v2862 = vld [vmem:[%s2861] sm:$0xf]
  %v2863 = vld [vmem:[%s2861 + $0x4] sm:$0xf]
  %v2864 = vld [vmem:[%s2861 + $0x8] sm:$0xf]
  %v2865 = vld [vmem:[%s2861 + $0xc] sm:$0xf]
  %v2866 = vlaneseq
  %v2867 = vshrl.u32 %v2866, 7
  %v2868 = vsub.s32 1, %v2867
  %v2869 = vrot.slane %v1753, %v2868
  %v2874 = vunpack.c.l.b16 %v2862
  %v2875 = vunpack.c.l.b16 %v2863
  %v2876 = vunpack.c.l.b16 %v2864
  %v2877 = vunpack.c.l.b16 %v2865
  %v2878 = vpack.c.b16 %v2875, %v2874
  %v2879 = vpack.c.b16 %v2877, %v2876
  %v2883 = vsel %vm169, %v2858, 0
  %v2886 = vsel %vm169, %v2859, 0
  %v2889 = vsel %vm169, %v2860, 0
  %2891 = vmatprep.subr.bf16.mxu0 0
  %2892 = vmatpush1.bf16.msra.mxu0 %v2878
  %2893 = vmatprep.subr.bf16.mxu0 0
  %2894 = vmatpush1.bf16.msra.mxu0 %v2879
  %2895 = vmatprep.subr.bf16.mxu0 0
  %2896 = vmatpush1.bf16.msra.mxu0 0
  %2897 = vmatprep.subr.bf16.mxu0 0
  %2898 = vmatpush1.bf16.msra.mxu0 0
  %2899 = vmatprep.subr.bf16.mxu0 0
  %2900 = vmatpush1.bf16.msra.mxu0 0
  %2901 = vmatprep.subr.bf16.mxu0 0
  %2902 = vmatpush1.bf16.msra.mxu0 0
  %2903 = vmatprep.subr.bf16.mxu0 0
  %2904 = vmatpush1.bf16.msra.mxu0 0
  %2905 = vmatprep.subr.bf16.mxu0 0
  %2906 = vmatpush1.bf16.msra.mxu0 0
  %2907 = vmatprep.subr.bf16.mxu0 0
  %2908 = vmatpush1.bf16.msra.mxu0 0
  %2909 = vmatprep.subr.bf16.mxu0 0
  %2910 = vmatpush1.bf16.msra.mxu0 0
  %2911 = vmatprep.subr.bf16.mxu0 0
  %2912 = vmatpush1.bf16.msra.mxu0 0
  %2913 = vmatprep.subr.bf16.mxu0 0
  %2914 = vmatpush1.bf16.msra.mxu0 0
  %2915 = vmatprep.subr.bf16.mxu0 0
  %2916 = vmatpush1.bf16.msra.mxu0 0
  %2917 = vmatprep.subr.bf16.mxu0 0
  %2918 = vmatpush1.bf16.msra.mxu0 0
  %2919 = vmatprep.subr.bf16.mxu0 0
  %2920 = vmatpush1.bf16.msra.mxu0 0
  %2921 = vmatprep.subr.bf16.mxu0 0
  %2922 = vmatpush1.bf16.msra.mxu0 0
  %2923 = vmatprep.mubr.bf16.mxu0 0
  %2924 = vmatmul.mubr.bf16.gmra.mrb[0].mxu0 %v2883
  %v2925 = vpop.f32.mrb[0].mxu0
  %v2926 = vadd.f32 %v2869, %v2925
  %v2927 = vpop.f32.mrb[0].mxu0
  %v2928 = vpop.f32.mrb[0].mxu0
  %v2929 = vadd.f32 %v2869, %v2928
  %v2930 = vpop.f32.mrb[0].mxu0
  %2931 = vmatprep.mubr.bf16.mxu0 0
  %2932 = vmatmul.mubr.bf16.gmra.mrb[0].mxu0 %v2886
  %v2933 = vpop.f32.mrb[0].mxu0
  %v2934 = vadd.f32 %v2869, %v2933
  %v2935 = vpop.f32.mrb[0].mxu0
  %v2936 = vpop.f32.mrb[0].mxu0
  %v2937 = vadd.f32 %v2869, %v2936
  %v2938 = vpop.f32.mrb[0].mxu0
  %2939 = vmatprep.mubr.bf16.mxu0 0
  %2940 = vmatmul.mubr.bf16.gmra.mrb[0].mxu0 %v2889
  %v2941 = vpop.f32.mrb[0].mxu0
  %v2942 = vadd.f32 %v2869, %v2941
  %v2943 = vpop.f32.mrb[0].mxu0
  %v2944 = vpop.f32.mrb[0].mxu0
  %v2945 = vadd.f32 %v2869, %v2944
  %v2946 = vpop.f32.mrb[0].mxu0
  %2947 = vdwg.mxu0
  %v2948 = vadd.f32 %v1746, %v2926
  %v2949 = vadd.f32 %v1747, %v2929
  %v2950 = vadd.f32 %v1748, %v2934
  %v2951 = vadd.f32 %v1749, %v2937
  %v2952 = vadd.f32 %v1750, %v2942
  %v2953 = vadd.f32 %v1751, %v2945
  %v2954 = vsel %vm169, %v2948, 0.0
  %2955 = vadd.xlane.f32.xlu0 %v2954
  %v2956 = vpop.xlane.xlu0 %2955
  %v2957 = vsel %vm169, %v2949, 0.0
  %2958 = vadd.xlane.f32.xlu0 %v2957
  %v2959 = vpop.xlane.xlu0 %2958
  %v2960 = vsel %vm169, %v2950, 0.0
  %2961 = vadd.xlane.f32.xlu0 %v2960
  %v2962 = vpop.xlane.xlu0 %2961
  %v2963 = vsel %vm169, %v2951, 0.0
  %2964 = vadd.xlane.f32.xlu0 %v2963
  %v2965 = vpop.xlane.xlu0 %2964
  %v2966 = vsel %vm169, %v2952, 0.0
  %2967 = vadd.xlane.f32.xlu0 %v2966
  %v2968 = vpop.xlane.xlu0 %2967
  %v2969 = vsel %vm169, %v2953, 0.0
  %2970 = vadd.xlane.f32.xlu0 %v2969
  %v2971 = vpop.xlane.xlu0 %2970
  %v2972 = vmul.f32 %v2956, %v1366
  %v2973 = vmul.f32 %v2959, %v1366
  %v2974 = vmul.f32 %v2962, %v1366
  %v2975 = vmul.f32 %v2965, %v1366
  %v2976 = vmul.f32 %v2968, %v1366
  %v2977 = vmul.f32 %v2971, %v1366
  %v2978 = vsub.f32 %v2948, %v2972
  %v2979 = vsub.f32 %v2949, %v2973
  %v2980 = vsub.f32 %v2950, %v2974
  %v2981 = vsub.f32 %v2951, %v2975
  %v2982 = vsub.f32 %v2952, %v2976
  %v2983 = vsub.f32 %v2953, %v2977
  %v2984 = vmul.f32 %v2978, %v2978
  %v2985 = vmul.f32 %v2979, %v2979
  %v2986 = vmul.f32 %v2980, %v2980
  %v2987 = vmul.f32 %v2981, %v2981
  %v2988 = vmul.f32 %v2982, %v2982
  %v2989 = vmul.f32 %v2983, %v2983
  %v2990 = vsel %vm169, %v2984, 0.0
  %2991 = vadd.xlane.f32.xlu0 %v2990
  %v2992 = vpop.xlane.xlu0 %2991
  %v2993 = vsel %vm169, %v2985, 0.0
  %2994 = vadd.xlane.f32.xlu0 %v2993
  %v2995 = vpop.xlane.xlu0 %2994
  %v2996 = vsel %vm169, %v2986, 0.0
  %2997 = vadd.xlane.f32.xlu0 %v2996
  %v2998 = vpop.xlane.xlu0 %2997
  %v2999 = vsel %vm169, %v2987, 0.0
  %3000 = vadd.xlane.f32.xlu0 %v2999
  %v3001 = vpop.xlane.xlu0 %3000
  %v3002 = vsel %vm169, %v2988, 0.0
  %3003 = vadd.xlane.f32.xlu0 %v3002
  %v3004 = vpop.xlane.xlu0 %3003
  %v3005 = vsel %vm169, %v2989, 0.0
  %3006 = vadd.xlane.f32.xlu0 %v3005
  %v3007 = vpop.xlane.xlu0 %3006
  %v3008 = vmul.f32 %v2992, %v1366
  %v3009 = vmul.f32 %v2995, %v1366
  %v3010 = vmul.f32 %v2998, %v1366
  %v3011 = vmul.f32 %v3001, %v1366
  %v3012 = vmul.f32 %v3004, %v1366
  %v3013 = vmul.f32 %v3007, %v1366
  %v3014 = vadd.f32 %v3008, 1e-05
  %v3015 = vadd.f32 %v3009, 1e-05
  %v3016 = vadd.f32 %v3010, 1e-05
  %v3017 = vadd.f32 %v3011, 1e-05
  %v3018 = vadd.f32 %v3012, 1e-05
  %v3019 = vadd.f32 %v3013, 1e-05
  %v3020 = vrsqrt.pop %v3014
  %v3021 = vrsqrt.pop %v3015
  %v3022 = vrsqrt.pop %v3016
  %v3023 = vrsqrt.pop %v3017
  %v3024 = vrsqrt.pop %v3018
  %v3025 = vrsqrt.pop %v3019
  %v3026 = vmul.f32 %v2978, %v3020
  %v3027 = vmul.f32 %v2979, %v3021
  %v3028 = vmul.f32 %v2980, %v3022
  %v3029 = vmul.f32 %v2981, %v3023
  %v3030 = vmul.f32 %v2982, %v3024
  %v3031 = vmul.f32 %v2983, %v3025
  %v3032 = vlaneseq
  %v3033 = vshrl.u32 %v3032, 7
  %v3034 = vsub.s32 2, %v3033
  %v3035 = vrot.slane %v1753, %v3034
  %v3036 = vmul.f32 %v3026, %v3035
  %v3037 = vmul.f32 %v3027, %v3035
  %v3038 = vmul.f32 %v3028, %v3035
  %v3039 = vmul.f32 %v3029, %v3035
  %v3040 = vmul.f32 %v3030, %v3035
  %v3041 = vmul.f32 %v3031, %v3035
  %v3042 = vlaneseq
  %v3043 = vshrl.u32 %v3042, 7
  %v3044 = vsub.s32 3, %v3043
  %v3045 = vrot.slane %v1753, %v3044
  %v3046 = vadd.f32 %v3036, %v3045
  %v3047 = vadd.f32 %v3037, %v3045
  %v3048 = vadd.f32 %v3038, %v3045
  %v3049 = vadd.f32 %v3039, %v3045
  %v3050 = vadd.f32 %v3040, %v3045
  %v3051 = vadd.f32 %v3041, %v3045
  %v3052 = vpack.c.bf16 %v3047, %v3046
  %v3053 = vpack.c.bf16 %v3049, %v3048
  %v3054 = vpack.c.bf16 %v3051, %v3050
  %s3055 = scalar_lea.vmem %s6, 16
  %v3056 = vld [vmem:[%s3055] sm:$0xf]
  %v3057 = vld [vmem:[%s3055 + $0x4] sm:$0xf]
  %v3058 = vld [vmem:[%s3055 + $0x8] sm:$0xf]
  %v3059 = vld [vmem:[%s3055 + $0xc] sm:$0xf]
  %v3060 = vlaneseq
  %v3061 = vshrl.u32 %v3060, 7
  %v3062 = vsub.s32 4, %v3061
  %v3063 = vrot.slane %v1753, %v3062
  %v3068 = vunpack.c.l.b16 %v3056
  %v3069 = vunpack.c.l.b16 %v3057
  %v3070 = vunpack.c.l.b16 %v3058
  %v3071 = vunpack.c.l.b16 %v3059
  %v3072 = vpack.c.b16 %v3069, %v3068
  %v3073 = vpack.c.b16 %v3071, %v3070
  %v3077 = vsel %vm169, %v3052, 0
  %v3080 = vsel %vm169, %v3053, 0
  %v3083 = vsel %vm169, %v3054, 0
  %3085 = vmatprep.subr.bf16.mxu0 0
  %3086 = vmatpush1.bf16.msra.mxu0 %v3072
  %3087 = vmatprep.subr.bf16.mxu0 0
  %3088 = vmatpush1.bf16.msra.mxu0 %v3073
  %3089 = vmatprep.subr.bf16.mxu0 0
  %3090 = vmatpush1.bf16.msra.mxu0 0
  %3091 = vmatprep.subr.bf16.mxu0 0
  %3092 = vmatpush1.bf16.msra.mxu0 0
  %3093 = vmatprep.subr.bf16.mxu0 0
  %3094 = vmatpush1.bf16.msra.mxu0 0
  %3095 = vmatprep.subr.bf16.mxu0 0
  %3096 = vmatpush1.bf16.msra.mxu0 0
  %3097 = vmatprep.subr.bf16.mxu0 0
  %3098 = vmatpush1.bf16.msra.mxu0 0
  %3099 = vmatprep.subr.bf16.mxu0 0
  %3100 = vmatpush1.bf16.msra.mxu0 0
  %3101 = vmatprep.subr.bf16.mxu0 0
  %3102 = vmatpush1.bf16.msra.mxu0 0
  %3103 = vmatprep.subr.bf16.mxu0 0
  %3104 = vmatpush1.bf16.msra.mxu0 0
  %3105 = vmatprep.subr.bf16.mxu0 0
  %3106 = vmatpush1.bf16.msra.mxu0 0
  %3107 = vmatprep.subr.bf16.mxu0 0
  %3108 = vmatpush1.bf16.msra.mxu0 0
  %3109 = vmatprep.subr.bf16.mxu0 0
  %3110 = vmatpush1.bf16.msra.mxu0 0
  %3111 = vmatprep.subr.bf16.mxu0 0
  %3112 = vmatpush1.bf16.msra.mxu0 0
  %3113 = vmatprep.subr.bf16.mxu0 0
  %3114 = vmatpush1.bf16.msra.mxu0 0
  %3115 = vmatprep.subr.bf16.mxu0 0
  %3116 = vmatpush1.bf16.msra.mxu0 0
  %3117 = vmatprep.mubr.bf16.mxu0 0
  %3118 = vmatmul.mubr.bf16.gmra.mrb[0].mxu0 %v3077
  %v3119 = vpop.f32.mrb[0].mxu0
  %v3120 = vadd.f32 %v3063, %v3119
  %v3121 = vpop.f32.mrb[0].mxu0
  %v3122 = vpop.f32.mrb[0].mxu0
  %v3123 = vadd.f32 %v3063, %v3122
  %v3124 = vpop.f32.mrb[0].mxu0
  %3125 = vmatprep.mubr.bf16.mxu0 0
  %3126 = vmatmul.mubr.bf16.gmra.mrb[0].mxu0 %v3080
  %v3127 = vpop.f32.mrb[0].mxu0
  %v3128 = vadd.f32 %v3063, %v3127
  %v3129 = vpop.f32.mrb[0].mxu0
  %v3130 = vpop.f32.mrb[0].mxu0
  %v3131 = vadd.f32 %v3063, %v3130
  %v3132 = vpop.f32.mrb[0].mxu0
  %3133 = vmatprep.mubr.bf16.mxu0 0
  %3134 = vmatmul.mubr.bf16.gmra.mrb[0].mxu0 %v3083
  %v3135 = vpop.f32.mrb[0].mxu0
  %v3136 = vadd.f32 %v3063, %v3135
  %v3137 = vpop.f32.mrb[0].mxu0
  %v3138 = vpop.f32.mrb[0].mxu0
  %v3139 = vadd.f32 %v3063, %v3138
  %v3140 = vpop.f32.mrb[0].mxu0
  %3141 = vdwg.mxu0
  %v3142 = vmax.f32 %v3120, 0.0
  %v3143 = vmax.f32 %v3123, 0.0
  %v3144 = vmax.f32 %v3128, 0.0
  %v3145 = vmax.f32 %v3131, 0.0
  %v3146 = vmax.f32 %v3136, 0.0
  %v3147 = vmax.f32 %v3139, 0.0
  %v3148 = vpack.c.bf16 %v3143, %v3142
  %v3149 = vpack.c.bf16 %v3145, %v3144
  %v3150 = vpack.c.bf16 %v3147, %v3146
  %s3151 = scalar_lea.vmem %s7, 32
  %v3152 = vld [vmem:[%s3151] sm:$0xf]
  %v3153 = vld [vmem:[%s3151 + $0x4] sm:$0xf]
  %v3154 = vld [vmem:[%s3151 + $0x8] sm:$0xf]
  %v3155 = vld [vmem:[%s3151 + $0xc] sm:$0xf]
  %v3156 = vld [vmem:[%s3151 + $0x10] sm:$0xf]
  %v3157 = vld [vmem:[%s3151 + $0x14] sm:$0xf]
  %v3158 = vld [vmem:[%s3151 + $0x18] sm:$0xf]
  %v3159 = vld [vmem:[%s3151 + $0x1c] sm:$0xf]
  %v3160 = vlaneseq
  %v3161 = vshrl.u32 %v3160, 7
  %v3162 = vsub.s32 5, %v3161
  %v3163 = vrot.slane %v1753, %v3162
  %v3172 = vunpack.c.l.b16 %v3152
  %v3173 = vunpack.c.l.b16 %v3153
  %v3174 = vunpack.c.l.b16 %v3154
  %v3175 = vunpack.c.l.b16 %v3155
  %v3176 = vunpack.c.l.b16 %v3156
  %v3177 = vunpack.c.l.b16 %v3157
  %v3178 = vunpack.c.l.b16 %v3158
  %v3179 = vunpack.c.l.b16 %v3159
  %v3180 = vpack.c.b16 %v3173, %v3172
  %v3181 = vpack.c.b16 %v3175, %v3174
  %v3182 = vpack.c.b16 %v3177, %v3176
  %v3183 = vpack.c.b16 %v3179, %v3178
  %v3189 = vsel %vm1581, %v3148, 0
  %v3192 = vsel %vm1581, %v3149, 0
  %v3195 = vsel %vm1581, %v3150, 0
  %3197 = vmatprep.subr.bf16.mxu0 0
  %3198 = vmatpush1.bf16.msra.mxu0 %v3180
  %3199 = vmatprep.subr.bf16.mxu0 0
  %3200 = vmatpush1.bf16.msra.mxu0 %v3181
  %3201 = vmatprep.subr.bf16.mxu0 0
  %3202 = vmatpush1.bf16.msra.mxu0 %v3182
  %3203 = vmatprep.subr.bf16.mxu0 0
  %3204 = vmatpush1.bf16.msra.mxu0 %v3183
  %3205 = vmatprep.subr.bf16.mxu0 0
  %3206 = vmatpush1.bf16.msra.mxu0 0
  %3207 = vmatprep.subr.bf16.mxu0 0
  %3208 = vmatpush1.bf16.msra.mxu0 0
  %3209 = vmatprep.subr.bf16.mxu0 0
  %3210 = vmatpush1.bf16.msra.mxu0 0
  %3211 = vmatprep.subr.bf16.mxu0 0
  %3212 = vmatpush1.bf16.msra.mxu0 0
  %3213 = vmatprep.subr.bf16.mxu0 0
  %3214 = vmatpush1.bf16.msra.mxu0 0
  %3215 = vmatprep.subr.bf16.mxu0 0
  %3216 = vmatpush1.bf16.msra.mxu0 0
  %3217 = vmatprep.subr.bf16.mxu0 0
  %3218 = vmatpush1.bf16.msra.mxu0 0
  %3219 = vmatprep.subr.bf16.mxu0 0
  %3220 = vmatpush1.bf16.msra.mxu0 0
  %3221 = vmatprep.subr.bf16.mxu0 0
  %3222 = vmatpush1.bf16.msra.mxu0 0
  %3223 = vmatprep.subr.bf16.mxu0 0
  %3224 = vmatpush1.bf16.msra.mxu0 0
  %3225 = vmatprep.subr.bf16.mxu0 0
  %3226 = vmatpush1.bf16.msra.mxu0 0
  %3227 = vmatprep.subr.bf16.mxu0 0
  %3228 = vmatpush1.bf16.msra.mxu0 0
  %3229 = vmatprep.mubr.bf16.mxu0 0
  %3230 = vmatmul.mubr.bf16.gmra.mrb[0].mxu0 %v3189
  %v3231 = vpop.f32.mrb[0].mxu0
  %v3232 = vadd.f32 %v3163, %v3231
  %v3233 = vpop.f32.mrb[0].mxu0
  %v3234 = vpop.f32.mrb[0].mxu0
  %v3235 = vadd.f32 %v3163, %v3234
  %v3236 = vpop.f32.mrb[0].mxu0
  %3237 = vmatprep.mubr.bf16.mxu0 0
  %3238 = vmatmul.mubr.bf16.gmra.mrb[0].mxu0 %v3192
  %v3239 = vpop.f32.mrb[0].mxu0
  %v3240 = vadd.f32 %v3163, %v3239
  %v3241 = vpop.f32.mrb[0].mxu0
  %v3242 = vpop.f32.mrb[0].mxu0
  %v3243 = vadd.f32 %v3163, %v3242
  %v3244 = vpop.f32.mrb[0].mxu0
  %3245 = vmatprep.mubr.bf16.mxu0 0
  %3246 = vmatmul.mubr.bf16.gmra.mrb[0].mxu0 %v3195
  %v3247 = vpop.f32.mrb[0].mxu0
  %v3248 = vadd.f32 %v3163, %v3247
  %v3249 = vpop.f32.mrb[0].mxu0
  %v3250 = vpop.f32.mrb[0].mxu0
  %v3251 = vadd.f32 %v3163, %v3250
  %v3252 = vpop.f32.mrb[0].mxu0
  %3253 = vdwg.mxu0
  %v3254 = vadd.f32 %v3046, %v3232
  %v3255 = vadd.f32 %v3047, %v3235
  %v3256 = vadd.f32 %v3048, %v3240
  %v3257 = vadd.f32 %v3049, %v3243
  %v3258 = vadd.f32 %v3050, %v3248
  %v3259 = vadd.f32 %v3051, %v3251
  %v3260 = vsel %vm169, %v3254, 0.0
  %3261 = vadd.xlane.f32.xlu0 %v3260
  %v3262 = vpop.xlane.xlu0 %3261
  %v3263 = vsel %vm169, %v3255, 0.0
  %3264 = vadd.xlane.f32.xlu0 %v3263
  %v3265 = vpop.xlane.xlu0 %3264
  %v3266 = vsel %vm169, %v3256, 0.0
  %3267 = vadd.xlane.f32.xlu0 %v3266
  %v3268 = vpop.xlane.xlu0 %3267
  %v3269 = vsel %vm169, %v3257, 0.0
  %3270 = vadd.xlane.f32.xlu0 %v3269
  %v3271 = vpop.xlane.xlu0 %3270
  %v3272 = vsel %vm169, %v3258, 0.0
  %3273 = vadd.xlane.f32.xlu0 %v3272
  %v3274 = vpop.xlane.xlu0 %3273
  %v3275 = vsel %vm169, %v3259, 0.0
  %3276 = vadd.xlane.f32.xlu0 %v3275
  %v3277 = vpop.xlane.xlu0 %3276
  %v3278 = vmul.f32 %v3262, %v1366
  %v3279 = vmul.f32 %v3265, %v1366
  %v3280 = vmul.f32 %v3268, %v1366
  %v3281 = vmul.f32 %v3271, %v1366
  %v3282 = vmul.f32 %v3274, %v1366
  %v3283 = vmul.f32 %v3277, %v1366
  %v3284 = vsub.f32 %v3254, %v3278
  %v3285 = vsub.f32 %v3255, %v3279
  %v3286 = vsub.f32 %v3256, %v3280
  %v3287 = vsub.f32 %v3257, %v3281
  %v3288 = vsub.f32 %v3258, %v3282
  %v3289 = vsub.f32 %v3259, %v3283
  %v3290 = vmul.f32 %v3284, %v3284
  %v3291 = vmul.f32 %v3285, %v3285
  %v3292 = vmul.f32 %v3286, %v3286
  %v3293 = vmul.f32 %v3287, %v3287
  %v3294 = vmul.f32 %v3288, %v3288
  %v3295 = vmul.f32 %v3289, %v3289
  %v3296 = vsel %vm169, %v3290, 0.0
  %3297 = vadd.xlane.f32.xlu0 %v3296
  %v3298 = vpop.xlane.xlu0 %3297
  %v3299 = vsel %vm169, %v3291, 0.0
  %3300 = vadd.xlane.f32.xlu0 %v3299
  %v3301 = vpop.xlane.xlu0 %3300
  %v3302 = vsel %vm169, %v3292, 0.0
  %3303 = vadd.xlane.f32.xlu0 %v3302
  %v3304 = vpop.xlane.xlu0 %3303
  %v3305 = vsel %vm169, %v3293, 0.0
  %3306 = vadd.xlane.f32.xlu0 %v3305
  %v3307 = vpop.xlane.xlu0 %3306
  %v3308 = vsel %vm169, %v3294, 0.0
  %3309 = vadd.xlane.f32.xlu0 %v3308
  %v3310 = vpop.xlane.xlu0 %3309
  %v3311 = vsel %vm169, %v3295, 0.0
  %3312 = vadd.xlane.f32.xlu0 %v3311
  %v3313 = vpop.xlane.xlu0 %3312
  %v3314 = vmul.f32 %v3298, %v1366
  %v3315 = vmul.f32 %v3301, %v1366
  %v3316 = vmul.f32 %v3304, %v1366
  %v3317 = vmul.f32 %v3307, %v1366
  %v3318 = vmul.f32 %v3310, %v1366
  %v3319 = vmul.f32 %v3313, %v1366
  %v3320 = vadd.f32 %v3314, 1e-05
  %v3321 = vadd.f32 %v3315, 1e-05
  %v3322 = vadd.f32 %v3316, 1e-05
  %v3323 = vadd.f32 %v3317, 1e-05
  %v3324 = vadd.f32 %v3318, 1e-05
  %v3325 = vadd.f32 %v3319, 1e-05
  %v3326 = vrsqrt.pop %v3320
  %v3327 = vrsqrt.pop %v3321
  %v3328 = vrsqrt.pop %v3322
  %v3329 = vrsqrt.pop %v3323
  %v3330 = vrsqrt.pop %v3324
  %v3331 = vrsqrt.pop %v3325
  %v3332 = vmul.f32 %v3284, %v3326
  %v3333 = vmul.f32 %v3285, %v3327
  %v3334 = vmul.f32 %v3286, %v3328
  %v3335 = vmul.f32 %v3287, %v3329
  %v3336 = vmul.f32 %v3288, %v3330
  %v3337 = vmul.f32 %v3289, %v3331
  %v3338 = vlaneseq
  %v3339 = vshrl.u32 %v3338, 7
  %v3340 = vsub.s32 6, %v3339
  %v3341 = vrot.slane %v1753, %v3340
  %v3342 = vmul.f32 %v3332, %v3341
  %v3343 = vmul.f32 %v3333, %v3341
  %v3344 = vmul.f32 %v3334, %v3341
  %v3345 = vmul.f32 %v3335, %v3341
  %v3346 = vmul.f32 %v3336, %v3341
  %v3347 = vmul.f32 %v3337, %v3341
  %v3348 = vlaneseq
  %v3349 = vshrl.u32 %v3348, 7
  %v3350 = vsub.s32 7, %v3349
  %v3351 = vrot.slane %v1753, %v3350
  %v3352 = vadd.f32 %v3342, %v3351
  %v3353 = vadd.f32 %v3343, %v3351
  %v3354 = vadd.f32 %v3344, %v3351
  %v3355 = vadd.f32 %v3345, %v3351
  %v3356 = vadd.f32 %v3346, %v3351
  %v3357 = vadd.f32 %v3347, %v3351
  %3358 = vst.msk [vmem:[%s9] sm:$0xff] %vm169, %v3352
  %3359 = vst.msk [vmem:[%s9 + $0x8] sm:$0xff] %vm169, %v3353
  %3360 = vst.msk [vmem:[%s9 + $0x10] sm:$0xff] %vm169, %v3354
  %3361 = vst.msk [vmem:[%s9 + $0x18] sm:$0xff] %vm169, %v3355
  %3362 = vst.msk [vmem:[%s9 + $0x20] sm:$0xff] %vm169, %v3356
  %3363 = vst.msk [vmem:[%s9 + $0x28] sm:$0xff] %vm169, %v3357
  // Predicated region
  $region38: #{vision_transformer.1} parent=0 // pred_check
    _
  $region39: #{vision_transformer.1} parent=0 // pred_check_branch
    %3365 = sbr.rel (0) target = $region41
  $region40: #{vision_transformer.1} parent=0 // pred_region
    _
  $region41: #{vision_transformer.1} parent=0 // pred_fallthru
    _
  // Predicated region
  $region42: #{vision_transformer.1} parent=0 // pred_check
    _
  $region43: #{vision_transformer.1} parent=0 // pred_check_branch
    %3367 = sbr.rel (0) target = $region45
  $region44: #{vision_transformer.1} parent=0 // pred_region
    _
  $region45: #{vision_transformer.1} parent=0 // pred_fallthru
    _

</llo_original>
